<compile_context>
chip_gen: v7x
topology: tpu7x:2x2x1
jax: 0.10.0
libtpu: 0.0.40
codegen_flags: <defaults>
</compile_context>

<pallas_src>
import functools
import math

import jax
import jax.numpy as jnp
import numpy as np
from jax.experimental import pallas as pl
from jax.experimental.pallas import tpu as pltpu


def _attention_kernel(t_ref, q_ref, a_ref, qm_ref, am_ref, fq_ref, fa_ref,
                      *, Lq, La, H, use_bf16_matmul):
    """One batch chunk of the fused attention forward.

    Lane-dense refs:
      t_ref : (1,)        f32 SMEM (learned temperature)
      q_ref : (Bt, Lq*H)  f32      a_ref : (Bt, La*H) f32
      qm_ref: (Bt, Lq)    f32      am_ref: (Bt, La)   f32
      fq_ref: (Bt, Lq*H)           fa_ref: (Bt, La*H)
    """
    Bt = q_ref.shape[0]
    temperature = t_ref[0]

    q = q_ref[...].reshape(Bt, Lq, H)          # (Bt, Lq, H)
    a = a_ref[...].reshape(Bt, La, H)          # (Bt, La, H)
    qm = qm_ref[...]                           # (Bt, Lq)
    am = am_ref[...]                           # (Bt, La)

    mm_dtype = jnp.bfloat16 if use_bf16_matmul else q.dtype

    # Fold temperature into q (Bt*Lq*H muls instead of Bt*Lq*La); still a
    # runtime SMEM scalar, not a wrapper-side pre-scale.
    q_scaled = (q * temperature).astype(mm_dtype)
    a_mm = a.astype(mm_dtype)

    # attn = (q*T) @ a^T : batched MXU contraction over H, no explicit transpose.
    attn = jax.lax.dot_general(
        q_scaled, a_mm, (((2,), (2,)), ((0,), (0,))),
        preferred_element_type=jnp.float32)                      # (Bt, Lq, La)

    # Mask on the VPU (compare + AND co-issues under the matmuls).
    # TODO(synk): modern torch `~mask` on a uint8 tensor is bitwise-not
    # (254/255 -> everything filled); we keep the intended old ByteTensor
    # logical-not semantics: fill positions where the mask product is 0.
    valid = (qm[:, :, None] != 0.0) & (am[:, None, :] != 0.0)    # (Bt, Lq, La)
    attn = jnp.where(valid, attn, -10000000.0)

    # ONE shared exp (global-max stabilized) feeds both softmaxes.  Rows/cols
    # whose local max is ~88 below the global max underflow and hit the uniform
    # fallback below -- a non-issue for softmax-scaled logits.
    gmax = jnp.max(jnp.max(attn, axis=2, keepdims=True), axis=1, keepdims=True)
    e = jnp.exp(attn - gmax)                                     # (Bt, Lq, La)
    sum_q = jnp.sum(e, axis=1, keepdims=True)                    # (Bt, 1, La)  dim=1 denom
    sum_a = jnp.sum(e, axis=2, keepdims=True)                    # (Bt, Lq, 1)  dim=2 denom

    # Deferred normalization: matmul the UNnormalized e, then scale the small
    # (Bt, L, H) results.  No full-size divides, no attn_q/attn_a temporaries.
    e_mm = e.astype(mm_dtype)
    q_mm = q.astype(mm_dtype)
    raw_fq = jax.lax.dot_general(                                # e   @ a -> (Bt, Lq, H)
        e_mm, a_mm, (((2,), (1,)), ((0,), (0,))),
        preferred_element_type=jnp.float32)
    raw_fa = jax.lax.dot_general(                                # e^T @ q -> (Bt, La, H)
        e_mm, q_mm, (((1,), (1,)), ((0,), (0,))),
        preferred_element_type=jnp.float32)

    sum_q_t = jnp.swapaxes(sum_q, 1, 2)                          # (Bt, La, 1), tiny relayout
    inv_sa = pl.reciprocal(sum_a, approx=False)                  # exact keeps 1e-5 parity
    inv_sq = pl.reciprocal(sum_q_t, approx=False)                # (approx=True is fine on HW)

    # Fully-masked row/col: torch softmax over an all -1e7 slice is uniform, so
    # the feature is the mean of a / q -- applied on the small post-matmul result.
    mean_a = jnp.mean(a, axis=1, keepdims=True)                  # (Bt, 1, H)
    mean_q = jnp.mean(q, axis=1, keepdims=True)                  # (Bt, 1, H)

    feature_q = jnp.where(sum_a > 0.0, raw_fq * inv_sa, mean_a)   # (Bt, Lq, H)
    feature_a = jnp.where(sum_q_t > 0.0, raw_fa * inv_sq, mean_q)  # (Bt, La, H)

    # Lane-dense stores (H < 128 would otherwise be masked partial stores).
    fq_ref[...] = feature_q.reshape(Bt, Lq * H).astype(fq_ref.dtype)
    fa_ref[...] = feature_a.reshape(Bt, La * H).astype(fa_ref.dtype)


def _tpu_budgets():
    """(block-sizing budget, raised vmem limit, tensorcore count) for this chip."""
    vmem_cap = 64 << 20          # conservative fallback (v7x-sized)
    num_cores = 1
    try:
        info = pltpu.get_tpu_info()
        vmem_cap = int(getattr(info, "vmem_capacity_bytes", vmem_cap))
        for name in ("num_tensorcores", "tensorcore_count", "num_cores",
                     "core_count"):
            v = getattr(info, name, None)
            if isinstance(v, int) and v > 0:
                num_cores = v
                break
    except Exception:
        pass
    budget = max(8 << 20, int(vmem_cap * 0.4))        # working set for block sizing
    vmem_limit = max(32 << 20, int(vmem_cap * 0.75))  # raised scoped-VMEM limit
    return budget, vmem_limit, num_cores


def _pick_block_b(B, Lq, La, H, vmem_budget_bytes, num_cores):
    """Largest batch chunk that divides B, fits the VMEM budget, and only
    splits for multiple TensorCores when the chip actually has them."""
    per_elem = 4 * (8 * (Lq * H + La * H)      # dbl-buffered flat I/O + raw_fq/raw_fa
                    + 4 * Lq * La              # attn / e / mask / broadcast temps
                    + 2 * (Lq + La))           # masks + softmax sums
    cap = max(1, vmem_budget_bytes // max(per_elem, 1))
    if num_cores > 1 and B > 1:
        target = max(1, -(-B // num_cores))    # ceil(B / cores): one+ step per core
    else:
        target = B                             # single TC: biggest block that fits
    target = max(1, min(target, cap, B))
    for bt in range(target, 0, -1):
        if B % bt == 0:
            return bt
    return 1


def one_scale_one_attention(q, a, q_mask, a_mask, temperature, *,
                            block_b=None, use_bf16_matmul=False):
    B, Lq, H = q.shape
    La = a.shape[1]

    # Lane-dense layouts (free wrapper-side reshapes of contiguous arrays).
    qf = jnp.reshape(q, (B, Lq * H))
    af = jnp.reshape(a, (B, La * H))
    qm2 = jnp.reshape(q_mask, (B, Lq)).astype(jnp.float32)
    am2 = jnp.reshape(a_mask, (B, La)).astype(jnp.float32)
    t = jnp.reshape(jnp.asarray(temperature, dtype=jnp.float32), (1,))

    vmem_budget, vmem_limit, num_cores = _tpu_budgets()
    if block_b is None:
        block_b = _pick_block_b(B, Lq, La, H, vmem_budget, num_cores)
    assert B % block_b == 0, "batch chunk must divide B"
    grid = (B // block_b,)

    kernel = functools.partial(_attention_kernel, Lq=Lq, La=La, H=H,
                               use_bf16_matmul=use_bf16_matmul)

    fq_flat, fa_flat = pl.pallas_call(
        kernel,
        out_shape=(jax.ShapeDtypeStruct((B, Lq * H), q.dtype),
                   jax.ShapeDtypeStruct((B, La * H), a.dtype)),
        grid_spec=pltpu.PrefetchScalarGridSpec(
            num_scalar_prefetch=0,
            grid=grid,
            in_specs=[
                pl.BlockSpec(memory_space=pltpu.MemorySpace.SMEM),      # temperature
                pl.BlockSpec((block_b, Lq * H), lambda b: (b, 0)),      # q (flat)
                pl.BlockSpec((block_b, La * H), lambda b: (b, 0)),      # a (flat)
                pl.BlockSpec((block_b, Lq), lambda b: (b, 0)),          # q_mask (2-D)
                pl.BlockSpec((block_b, La), lambda b: (b, 0)),          # a_mask (2-D)
            ],
            out_specs=[
                pl.BlockSpec((block_b, Lq * H), lambda b: (b, 0)),
                pl.BlockSpec((block_b, La * H), lambda b: (b, 0)),
            ],
        ),
        compiler_params=pltpu.CompilerParams(
            dimension_semantics=("parallel",),
            vmem_limit_bytes=vmem_limit),
    )(t, qf, af, qm2, am2)

    feature_q = jnp.reshape(fq_flat, (B, Lq, H))
    feature_a = jnp.reshape(fa_flat, (B, La, H))

    # Module returns ([q, feature_q], [a, feature_a]); q and a pass through.
    return [q, feature_q], [a, feature_a]


def reference(q, a, q_mask, a_mask, temperature):
    """Plain-JAX reference matching the PyTorch forward (logical-not mask)."""
    hp = jax.lax.Precision.HIGHEST
    attn = jnp.matmul(q, jnp.transpose(a, (0, 2, 1)), precision=hp) * temperature
    mask = jnp.matmul(q_mask, jnp.transpose(a_mask, (0, 2, 1)), precision=hp) != 0.0
    attn = jnp.where(mask, attn, -10000000.0)
    attn_q = jax.nn.softmax(attn, axis=1)
    attn_a = jax.nn.softmax(attn, axis=2)
    feature_a = jnp.matmul(jnp.transpose(attn_q, (0, 2, 1)), q, precision=hp)
    feature_q = jnp.matmul(attn_a, a, precision=hp)
    return feature_q, feature_a


if __name__ == "__main__":
    jax.config.update("jax_default_matmul_precision", "highest")

    B, Lq, La, H = 2, 8, 16, 32

    key = jax.random.PRNGKey(0)
    k_q, k_a = jax.random.split(key, 2)
    q = jax.random.normal(k_q, (B, Lq, H), dtype=jnp.float32)
    a = jax.random.normal(k_a, (B, La, H), dtype=jnp.float32)

    # 0/1 validity masks with padding rows to exercise masked_fill and the
    # fully-masked (uniform-softmax) fallback path on both axes.
    q_mask = jnp.ones((B, Lq, 1), dtype=jnp.float32)
    q_mask = q_mask.at[1, Lq - 2:, 0].set(0.0)
    a_mask = jnp.ones((B, La, 1), dtype=jnp.float32)
    a_mask = a_mask.at[0, La - 3:, 0].set(0.0)

    temperature = 1.0 / math.sqrt(H)   # nn.Parameter init value

    (q_out, feature_q), (a_out, feature_a) = one_scale_one_attention(
        q, a, q_mask, a_mask, temperature)
    jax.block_until_ready((feature_q, feature_a))

    fq_ref, fa_ref = reference(q, a, q_mask, a_mask, temperature)
    np.testing.assert_allclose(np.asarray(feature_q), np.asarray(fq_ref),
                               rtol=1e-5, atol=1e-5)
    np.testing.assert_allclose(np.asarray(feature_a), np.asarray(fa_ref),
                               rtol=1e-5, atol=1e-5)
    np.testing.assert_array_equal(np.asarray(q_out), np.asarray(q))
    np.testing.assert_array_equal(np.asarray(a_out), np.asarray(a))

    # Optional bf16-MXU path (perf-review item): looser tolerance vs f32 ref.
    (_, fq_bf16), (_, fa_bf16) = one_scale_one_attention(
        q, a, q_mask, a_mask, temperature, use_bf16_matmul=True)
    jax.block_until_ready((fq_bf16, fa_bf16))
    np.testing.assert_allclose(np.asarray(fq_bf16), np.asarray(fq_ref),
                               rtol=5e-2, atol=5e-2)
    np.testing.assert_allclose(np.asarray(fa_bf16), np.asarray(fa_ref),
                               rtol=5e-2, atol=5e-2)

    print("KERNEL_OK")
</pallas_src>

<mosaic_0001>
module attributes {stable_mosaic.version = 11 : i64} {
  func.func @_attention_kernel(%arg0: i32, %arg1: memref<1xf32, #tpu.memory_space<smem>>, %arg2: memref<2x256xf32, #tpu.memory_space<vmem>>, %arg3: memref<2x512xf32, #tpu.memory_space<vmem>>, %arg4: memref<2x8xf32, #tpu.memory_space<vmem>>, %arg5: memref<2x16xf32, #tpu.memory_space<vmem>>, %arg6: memref<2x256xf32, #tpu.memory_space<vmem>>, %arg7: memref<2x512xf32, #tpu.memory_space<vmem>>) attributes {dimension_semantics = [#tpu.dimension_semantics<parallel>], iteration_bounds = array<i64: 1>, scalar_prefetch = 0 : i64, scratch_operands = 0 : i64, tpu.core_type = #tpu.core_type<tc>, window_params = [{transform_indices = @transform_0, window_bounds = array<i64: 1>}, {transform_indices = @transform_1, window_bounds = array<i64: 2, 256>}, {transform_indices = @transform_2, window_bounds = array<i64: 2, 512>}, {transform_indices = @transform_3, window_bounds = array<i64: 2, 8>}, {transform_indices = @transform_4, window_bounds = array<i64: 2, 16>}, {transform_indices = @transform_5, window_bounds = array<i64: 2, 256>}, {transform_indices = @transform_6, window_bounds = array<i64: 2, 512>}]} {
    %c0 = arith.constant 0 : index
    %0 = memref.load %arg1[%c0] : memref<1xf32, #tpu.memory_space<smem>>
    %c0_0 = arith.constant 0 : index
    %c0_1 = arith.constant 0 : index
    %1 = vector.load %arg2[%c0_0, %c0_1] : memref<2x256xf32, #tpu.memory_space<vmem>>, vector<2x256xf32>
    %2 = vector.shape_cast %1 : vector<2x256xf32> to vector<2x8x32xf32>
    %c0_2 = arith.constant 0 : index
    %c0_3 = arith.constant 0 : index
    %3 = vector.load %arg3[%c0_2, %c0_3] : memref<2x512xf32, #tpu.memory_space<vmem>>, vector<2x512xf32>
    %4 = vector.shape_cast %3 : vector<2x512xf32> to vector<2x16x32xf32>
    %c0_4 = arith.constant 0 : index
    %c0_5 = arith.constant 0 : index
    %5 = vector.load %arg4[%c0_4, %c0_5] : memref<2x8xf32, #tpu.memory_space<vmem>>, vector<2x8xf32>
    %c0_6 = arith.constant 0 : index
    %c0_7 = arith.constant 0 : index
    %6 = vector.load %arg5[%c0_6, %c0_7] : memref<2x16xf32, #tpu.memory_space<vmem>>, vector<2x16xf32>
    %7 = vector.broadcast %0 : f32 to vector<2x8x32xf32>
    %8 = arith.mulf %2, %7 : vector<2x8x32xf32>
    %cst = arith.constant dense<0.000000e+00> : vector<2x8x16xf32>
    %9 = tpu.matmul %8, %4, %cst {dimension_numbers = #tpu.dot_dimension_numbers<[2], [2], [1], [1], [0, 0, 0, 1, 1, 1], [0], [0]>, precision = #tpu.contract_precision<fp32>} : vector<2x8x32xf32>, vector<2x16x32xf32>, vector<2x8x16xf32> -> vector<2x8x16xf32>
    %10 = vector.shape_cast %5 : vector<2x8xf32> to vector<2x8x1xf32>
    %cst_8 = arith.constant 0.000000e+00 : f32
    %11 = vector.broadcast %cst_8 : f32 to vector<2x8x1xf32>
    %12 = arith.cmpf one, %10, %11 : vector<2x8x1xf32>
    %13 = vector.shape_cast %6 : vector<2x16xf32> to vector<2x1x16xf32>
    %cst_9 = arith.constant 0.000000e+00 : f32
    %14 = vector.broadcast %cst_9 : f32 to vector<2x1x16xf32>
    %15 = arith.cmpf one, %13, %14 : vector<2x1x16xf32>
    %16 = vector.broadcast %12 : vector<2x8x1xi1> to vector<2x8x16xi1>
    %17 = vector.broadcast %15 : vector<2x1x16xi1> to vector<2x8x16xi1>
    %18 = arith.andi %16, %17 : vector<2x8x16xi1>
    %cst_10 = arith.constant -1.000000e+07 : f32
    %19 = vector.broadcast %cst_10 : f32 to vector<2x8x16xf32>
    %20 = arith.select %18, %9, %19 : vector<2x8x16xi1>, vector<2x8x16xf32>
    %cst_11 = arith.constant dense<0xFF800000> : vector<2x8xf32>
    %21 = vector.multi_reduction <maximumf>, %20, %cst_11 [2] : vector<2x8x16xf32> to vector<2x8xf32>
    %22 = vector.shape_cast %21 : vector<2x8xf32> to vector<2x8x1xf32>
    %cst_12 = arith.constant dense<0xFF800000> : vector<2x1xf32>
    %23 = vector.multi_reduction <maximumf>, %22, %cst_12 [1] : vector<2x8x1xf32> to vector<2x1xf32>
    %24 = vector.shape_cast %23 : vector<2x1xf32> to vector<2x1x1xf32>
    %25 = vector.broadcast %24 : vector<2x1x1xf32> to vector<2x8x16xf32>
    %26 = arith.subf %20, %25 : vector<2x8x16xf32>
    %27 = math.exp %26 : vector<2x8x16xf32>
    %cst_13 = arith.constant dense<0.000000e+00> : vector<2x16xf32>
    %28 = vector.multi_reduction <add>, %27, %cst_13 [1] : vector<2x8x16xf32> to vector<2x16xf32>
    %29 = vector.shape_cast %28 : vector<2x16xf32> to vector<2x1x16xf32>
    %cst_14 = arith.constant dense<0.000000e+00> : vector<2x8xf32>
    %30 = vector.multi_reduction <add>, %27, %cst_14 [2] : vector<2x8x16xf32> to vector<2x8xf32>
    %31 = vector.shape_cast %30 : vector<2x8xf32> to vector<2x8x1xf32>
    %cst_15 = arith.constant dense<0.000000e+00> : vector<2x8x32xf32>
    %32 = tpu.matmul %27, %4, %cst_15 {dimension_numbers = #tpu.dot_dimension_numbers<[2], [1], [1], [2], [0, 0, 0, 1, 1, 2], [0], [0]>, precision = #tpu.contract_precision<fp32>} : vector<2x8x16xf32>, vector<2x16x32xf32>, vector<2x8x32xf32> -> vector<2x8x32xf32>
    %cst_16 = arith.constant dense<0.000000e+00> : vector<2x16x32xf32>
    %33 = tpu.matmul %27, %2, %cst_16 {dimension_numbers = #tpu.dot_dimension_numbers<[1], [1], [2], [2], [0, 0, 0, 2, 1, 2], [0], [0]>, precision = #tpu.contract_precision<fp32>} : vector<2x8x16xf32>, vector<2x8x32xf32>, vector<2x16x32xf32> -> vector<2x16x32xf32>
    %34 = tpu.transpose %29, [0, 2, 1] : vector<2x1x16xf32> -> vector<2x16x1xf32>
    %35 = tpu.reciprocal %31 : vector<2x8x1xf32> -> vector<2x8x1xf32>
    %36 = tpu.reciprocal %34 : vector<2x16x1xf32> -> vector<2x16x1xf32>
    %cst_17 = arith.constant dense<0.000000e+00> : vector<2x32xf32>
    %37 = vector.multi_reduction <add>, %4, %cst_17 [1] : vector<2x16x32xf32> to vector<2x32xf32>
    %38 = vector.shape_cast %37 : vector<2x32xf32> to vector<2x1x32xf32>
    %cst_18 = arith.constant 1.600000e+01 : f32
    %39 = vector.broadcast %cst_18 : f32 to vector<2x1x32xf32>
    %40 = arith.divf %38, %39 : vector<2x1x32xf32>
    %cst_19 = arith.constant dense<0.000000e+00> : vector<2x32xf32>
    %41 = vector.multi_reduction <add>, %2, %cst_19 [1] : vector<2x8x32xf32> to vector<2x32xf32>
    %42 = vector.shape_cast %41 : vector<2x32xf32> to vector<2x1x32xf32>
    %cst_20 = arith.constant 8.000000e+00 : f32
    %43 = vector.broadcast %cst_20 : f32 to vector<2x1x32xf32>
    %44 = arith.divf %42, %43 : vector<2x1x32xf32>
    %cst_21 = arith.constant 0.000000e+00 : f32
    %45 = vector.broadcast %cst_21 : f32 to vector<2x8x1xf32>
    %46 = arith.cmpf ogt, %31, %45 : vector<2x8x1xf32>
    %47 = vector.broadcast %35 : vector<2x8x1xf32> to vector<2x8x32xf32>
    %48 = arith.mulf %32, %47 : vector<2x8x32xf32>
    %49 = vector.shape_cast %46 : vector<2x8x1xi1> to vector<2x8x1xi1>
    %50 = vector.broadcast %49 : vector<2x8x1xi1> to vector<2x8x32xi1>
    %51 = vector.shape_cast %40 : vector<2x1x32xf32> to vector<2x1x32xf32>
    %52 = vector.broadcast %51 : vector<2x1x32xf32> to vector<2x8x32xf32>
    %53 = arith.select %50, %48, %52 : vector<2x8x32xi1>, vector<2x8x32xf32>
    %cst_22 = arith.constant 0.000000e+00 : f32
    %54 = vector.broadcast %cst_22 : f32 to vector<2x16x1xf32>
    %55 = arith.cmpf ogt, %34, %54 : vector<2x16x1xf32>
    %56 = vector.broadcast %36 : vector<2x16x1xf32> to vector<2x16x32xf32>
    %57 = arith.mulf %33, %56 : vector<2x16x32xf32>
    %58 = vector.shape_cast %55 : vector<2x16x1xi1> to vector<2x16x1xi1>
    %59 = vector.broadcast %58 : vector<2x16x1xi1> to vector<2x16x32xi1>
    %60 = vector.shape_cast %44 : vector<2x1x32xf32> to vector<2x1x32xf32>
    %61 = vector.broadcast %60 : vector<2x1x32xf32> to vector<2x16x32xf32>
    %62 = arith.select %59, %57, %61 : vector<2x16x32xi1>, vector<2x16x32xf32>
    %63 = vector.shape_cast %53 : vector<2x8x32xf32> to vector<2x256xf32>
    %c0_23 = arith.constant 0 : index
    %c0_24 = arith.constant 0 : index
    %64 = vector.load %arg6[%c0_23, %c0_24] : memref<2x256xf32, #tpu.memory_space<vmem>>, vector<2x256xf32>
    tpu.vector_store %arg6[%c0_23, %c0_24], %63 {strides = array<i32>} : memref<2x256xf32, #tpu.memory_space<vmem>>, vector<2x256xf32>,
    %65 = vector.shape_cast %62 : vector<2x16x32xf32> to vector<2x512xf32>
    %c0_25 = arith.constant 0 : index
    %c0_26 = arith.constant 0 : index
    %66 = vector.load %arg7[%c0_25, %c0_26] : memref<2x512xf32, #tpu.memory_space<vmem>>, vector<2x512xf32>
    tpu.vector_store %arg7[%c0_25, %c0_26], %65 {strides = array<i32>} : memref<2x512xf32, #tpu.memory_space<vmem>>, vector<2x512xf32>,
    return
  }
  func.func @transform_0(%arg0: i32) -> i32 {
    %c0_i32 = arith.constant 0 : i32
    %c0_i32_0 = arith.constant 0 : i32
    return %c0_i32 : i32
  }
  func.func @transform_1(%arg0: i32) -> (i32, i32) {
    %c0_i32 = arith.constant 0 : i32
    %c0_i32_0 = arith.constant 0 : i32
    return %arg0, %c0_i32 : i32, i32
  }
  func.func @transform_2(%arg0: i32) -> (i32, i32) {
    %c0_i32 = arith.constant 0 : i32
    %c0_i32_0 = arith.constant 0 : i32
    return %arg0, %c0_i32 : i32, i32
  }
  func.func @transform_3(%arg0: i32) -> (i32, i32) {
    %c0_i32 = arith.constant 0 : i32
    %c0_i32_0 = arith.constant 0 : i32
    return %arg0, %c0_i32 : i32, i32
  }
  func.func @transform_4(%arg0: i32) -> (i32, i32) {
    %c0_i32 = arith.constant 0 : i32
    %c0_i32_0 = arith.constant 0 : i32
    return %arg0, %c0_i32 : i32, i32
  }
  func.func @transform_5(%arg0: i32) -> (i32, i32) {
    %c0_i32 = arith.constant 0 : i32
    %c0_i32_0 = arith.constant 0 : i32
    return %arg0, %c0_i32 : i32, i32
  }
  func.func @transform_6(%arg0: i32) -> (i32, i32) {
    %c0_i32 = arith.constant 0 : i32
    %c0_i32_0 = arith.constant 0 : i32
    return %arg0, %c0_i32 : i32, i32
  }
}

</mosaic_0001>

<llo_original>
// kernel: tpu_custom_call.1
$region0: #{tpu_custom_call.1}
  #allocation0 [shape = 'u32[]', space=smem, size = 0x4, offset = 0x4, fixed_abs, tag = 'smem constant byte address 0x4 - core index']
  #allocation1 [shape = 'u32[144,128]{1,0:T(1,128)}', space=vmem, size = 0x12000, scoped, tag = 'internal scratch']
  #allocation2 [shape = 'f32[1]{0:T(128)S(6)}', space=smem, size = 0x200, scoped, tag = 'scoped memory for tpu_custom_call.1']
  %s0 = inlined_call_operand.<no memory space> [shape: f32[1], index: 0, kind: input, shape index: {}]
  %s1 = inlined_call_operand.hbm [shape: f32[2,256], index: 1, kind: input, shape index: {}]
  %s2 = inlined_call_operand.hbm [shape: f32[2,512], index: 2, kind: input, shape index: {}]
  %s3 = inlined_call_operand.vmem [shape: f32[2,8], index: 3, kind: input, shape index: {}]
  %s4 = inlined_call_operand.vmem [shape: f32[2,16], index: 4, kind: input, shape index: {}]
  %s5 = inlined_call_operand.hbm [shape: f32[2,256], index: 5, kind: output, shape index: {0}]
  %s6 = inlined_call_operand.hbm [shape: f32[2,512], index: 6, kind: output, shape index: {1}]
  %7 = xla_tuple %s5, %s6
  %s8 = sld [smem:[#allocation0]]
  $region46: #{tpu_custom_call.1} parent=0
    _
  %s10 = ssub.s32 1, %s8
  %s11 = scalar_select 0, %s10, %s8
  %12 = sst [smem:[#allocation2]] %s0
  $region1: #{tpu_custom_call.1} parent=0
    #allocation3 [shape = 'u8[2048]{0}', space=vmem, size = 0x800, scoped, tag = 'input window, operand 1, single buffered']
    #allocation4 [shape = 's32[1]{0}', space=sflag, size = 0x4, scoped, tag = 'scoped memory for tpu_custom_call.1']
    #allocation5 [shape = 's32[1]{0}', space=sflag, size = 0x4, scoped, tag = 'scoped memory for tpu_custom_call.1']
    #allocation6 [shape = 'u8[4096]{0}', space=vmem, size = 0x1000, scoped, tag = 'input window, operand 2, single buffered']
    #allocation7 [shape = 's32[1]{0}', space=sflag, size = 0x4, scoped, tag = 'scoped memory for tpu_custom_call.1']
    #allocation8 [shape = 'u8[2048]{0}', space=vmem, size = 0x800, scoped, tag = 'output window, operand 0, single buffered']
    #allocation9 [shape = 'u8[4096]{0}', space=vmem, size = 0x1000, scoped, tag = 'output window, operand 1, single buffered']
    #allocation10 [shape = 's32[1]{0}', space=sflag, size = 0x4, scoped, tag = 'scoped memory for tpu_custom_call.1']
    %13 = vsyncpa [#allocation4], 0
    %14 = vsyncpa [#allocation7], 0
    %15 = vsyncpa [#allocation5], 0
    %16 = vsyncpa [#allocation10], 0
    // Predicated region
    $region2: #{tpu_custom_call.1} parent=1 // pred_check
      _
    $region3: #{tpu_custom_call.1} parent=1 // pred_check_branch
      %18 = sbr.rel (0) target = $region5
    $region4: #{tpu_custom_call.1} parent=1 // pred_region
      _
    $region5: #{tpu_custom_call.1} parent=1 // pred_fallthru
      _
    // Predicated region
    $region6: #{tpu_custom_call.1} parent=1 // pred_check
      _
    $region7: #{tpu_custom_call.1} parent=1 // pred_check_branch
      %20 = sbr.rel (0) target = $region9
    $region8: #{tpu_custom_call.1} parent=1 // pred_region
      %s22 = ssub.s32 64, 64
      %23 = vsyncadd [#allocation4], %s22
      %s25 = sshll.u32 [#allocation3], 4
      %s26 = int_to_ptr.vmem [resolvable:$true] %s25
      %28 = dma.hbm_to_vmem [thread:$0]  %s1, 64, %s26, [#allocation4]
    $region9: #{tpu_custom_call.1} parent=1 // pred_fallthru
      _
    // Predicated region
    $region10: #{tpu_custom_call.1} parent=1 // pred_check
      _
    $region11: #{tpu_custom_call.1} parent=1 // pred_check_branch
      %30 = sbr.rel (0) target = $region13
    $region12: #{tpu_custom_call.1} parent=1 // pred_region
      %s32 = ssub.s32 128, 128
      %33 = vsyncadd [#allocation7], %s32
      %s35 = sshll.u32 [#allocation6], 4
      %s36 = int_to_ptr.vmem [resolvable:$true] %s35
      %38 = dma.hbm_to_vmem [thread:$0]  %s2, 128, %s36, [#allocation7]
    $region13: #{tpu_custom_call.1} parent=1 // pred_fallthru
      _
    // Predicated region
    $region14: #{tpu_custom_call.1} parent=1 // pred_check
      _
    $region15: #{tpu_custom_call.1} parent=1 // pred_check_branch
      %40 = sbr.rel (0) target = $region17
    $region16: #{tpu_custom_call.1} parent=1 // pred_region
      _
    $region17: #{tpu_custom_call.1} parent=1 // pred_fallthru
      _
    // Predicated region
    $region18: #{tpu_custom_call.1} parent=1 // pred_check
      _
    $region19: #{tpu_custom_call.1} parent=1 // pred_check_branch
      %42 = sbr.rel (0) target = $region21
    $region20: #{tpu_custom_call.1} parent=1 // pred_region
      _
    $region21: #{tpu_custom_call.1} parent=1 // pred_fallthru
      _
    // Predicated region
    $region22: #{tpu_custom_call.1} parent=1 // pred_check
      _
    $region23: #{tpu_custom_call.1} parent=1 // pred_check_branch
      %44 = sbr.rel (0) target = $region25
    $region24: #{tpu_custom_call.1} parent=1 // pred_region
      %45 = dma.done [#allocation4], 64
    $region25: #{tpu_custom_call.1} parent=1 // pred_fallthru
      _
    // Predicated region
    $region26: #{tpu_custom_call.1} parent=1 // pred_check
      _
    $region27: #{tpu_custom_call.1} parent=1 // pred_check_branch
      %47 = sbr.rel (0) target = $region29
    $region28: #{tpu_custom_call.1} parent=1 // pred_region
      %48 = dma.done [#allocation7], 128
    $region29: #{tpu_custom_call.1} parent=1 // pred_fallthru
      _
    %s49 = sld [smem:[#allocation2]]
    %v50 = vld [vmem:[#allocation3] sm:$0xf]
    %v52 = vrot.slane %v50, 2
    %54 = vrot.lane.b32.xlu0 %v50, 96
    %v55 = vpop.permute.xlu0 %54
    %v56 = vrot.slane %v55, 2
    %58 = vrot.lane.b32.xlu0 %v50, 64
    %v59 = vpop.permute.xlu0 %58
    %v60 = vrot.slane %v59, 2
    %62 = vrot.lane.b32.xlu0 %v50, 32
    %v63 = vpop.permute.xlu0 %62
    %v64 = vrot.slane %v63, 2
    %v69 = vcombine.low %v50, %v55
    %v71 = vunpack.c.l.s4 1934713408
    %v72 = vunpack.c.0.s8 %v71
    %v73 = vlaneseq
    %v74 = vshrl.u32 %v73, 7
    %v75 = vsub.s32 %v72, %v74
    %v76 = vrot.slane %v69, %v75
    %v77 = vcombine.high %v76, 0.0
    %v78 = vcombine.low %v59, %v63
    %v80 = vunpack.c.l.s4 1934713408
    %v81 = vunpack.c.0.s8 %v80
    %v82 = vlaneseq
    %v83 = vshrl.u32 %v82, 7
    %v84 = vsub.s32 %v81, %v83
    %v85 = vrot.slane %v78, %v84
    %v86 = vcombine.high %v85, 0.0
    %v87 = vcombine.low %v52, %v56
    %v89 = vunpack.c.l.s4 1934713408
    %v90 = vunpack.c.0.s8 %v89
    %v91 = vlaneseq
    %v92 = vshrl.u32 %v91, 7
    %v93 = vsub.s32 %v90, %v92
    %v94 = vrot.slane %v87, %v93
    %v95 = vcombine.high %v94, 0.0
    %v96 = vcombine.low %v60, %v64
    %v98 = vunpack.c.l.s4 1934713408
    %v99 = vunpack.c.0.s8 %v98
    %v100 = vlaneseq
    %v101 = vshrl.u32 %v100, 7
    %v102 = vsub.s32 %v99, %v101
    %v103 = vrot.slane %v96, %v102
    %v104 = vcombine.high %v103, 0.0
    %v105 = vld [vmem:[#allocation6] sm:$0xff]
    %v107 = vrot.slane %v105, 2
    %109 = vrot.lane.b32.xlu0 %v105, 96
    %v110 = vpop.permute.xlu0 %109
    %v111 = vrot.slane %v110, 2
    %113 = vrot.lane.b32.xlu0 %v105, 64
    %v114 = vpop.permute.xlu0 %113
    %v115 = vrot.slane %v114, 2
    %117 = vrot.lane.b32.xlu0 %v105, 32
    %v118 = vpop.permute.xlu0 %117
    %v119 = vrot.slane %v118, 2
    %v121 = vrot.slane %v105, 4
    %v123 = vrot.slane %v110, 4
    %v125 = vrot.slane %v114, 4
    %v127 = vrot.slane %v118, 4
    %v129 = vrot.slane %v105, 6
    %v131 = vrot.slane %v110, 6
    %v133 = vrot.slane %v114, 6
    %v135 = vrot.slane %v118, 6
    %v140 = vcombine.low %v105, %v110
    %v142 = vunpack.c.l.s4 1934713408
    %v143 = vunpack.c.0.s8 %v142
    %v144 = vlaneseq
    %v145 = vshrl.u32 %v144, 7
    %v146 = vsub.s32 %v143, %v145
    %v147 = vrot.slane %v140, %v146
    %v148 = vcombine.high %v147, 0.0
    %v149 = vcombine.low %v114, %v118
    %v151 = vunpack.c.l.s4 1934713408
    %v152 = vunpack.c.0.s8 %v151
    %v153 = vlaneseq
    %v154 = vshrl.u32 %v153, 7
    %v155 = vsub.s32 %v152, %v154
    %v156 = vrot.slane %v149, %v155
    %v157 = vcombine.high %v156, 0.0
    %v158 = vcombine.low %v107, %v111
    %v160 = vunpack.c.l.s4 1934713408
    %v161 = vunpack.c.0.s8 %v160
    %v162 = vlaneseq
    %v163 = vshrl.u32 %v162, 7
    %v164 = vsub.s32 %v161, %v163
    %v165 = vrot.slane %v158, %v164
    %v166 = vcombine.high %v165, 0.0
    %v167 = vcombine.low %v115, %v119
    %v169 = vunpack.c.l.s4 1934713408
    %v170 = vunpack.c.0.s8 %v169
    %v171 = vlaneseq
    %v172 = vshrl.u32 %v171, 7
    %v173 = vsub.s32 %v170, %v172
    %v174 = vrot.slane %v167, %v173
    %v175 = vcombine.high %v174, 0.0
    %v176 = vcombine.low %v121, %v123
    %v178 = vunpack.c.l.s4 1934713408
    %v179 = vunpack.c.0.s8 %v178
    %v180 = vlaneseq
    %v181 = vshrl.u32 %v180, 7
    %v182 = vsub.s32 %v179, %v181
    %v183 = vrot.slane %v176, %v182
    %v184 = vcombine.high %v183, 0.0
    %v185 = vcombine.low %v125, %v127
    %v187 = vunpack.c.l.s4 1934713408
    %v188 = vunpack.c.0.s8 %v187
    %v189 = vlaneseq
    %v190 = vshrl.u32 %v189, 7
    %v191 = vsub.s32 %v188, %v190
    %v192 = vrot.slane %v185, %v191
    %v193 = vcombine.high %v192, 0.0
    %v194 = vcombine.low %v129, %v131
    %v196 = vunpack.c.l.s4 1934713408
    %v197 = vunpack.c.0.s8 %v196
    %v198 = vlaneseq
    %v199 = vshrl.u32 %v198, 7
    %v200 = vsub.s32 %v197, %v199
    %v201 = vrot.slane %v194, %v200
    %v202 = vcombine.high %v201, 0.0
    %v203 = vcombine.low %v133, %v135
    %v205 = vunpack.c.l.s4 1934713408
    %v206 = vunpack.c.0.s8 %v205
    %v207 = vlaneseq
    %v208 = vshrl.u32 %v207, 7
    %v209 = vsub.s32 %v206, %v208
    %v210 = vrot.slane %v203, %v209
    %v211 = vcombine.high %v210, 0.0
    %v212 = vld [vmem:[%s3] sm:$0x3]
    %v213 = vld [vmem:[%s4] sm:$0x3]
    %v214 = vstv %s49
    %v215 = vmul.f32 %v76, %v214
    %v216 = vmul.f32 %v85, %v214
    %v217 = vmul.f32 %v94, %v214
    %v218 = vmul.f32 %v103, %v214
    %v219 = vmul.f32 %v77, %v214
    %v220 = vmul.f32 %v86, %v214
    %v221 = vmul.f32 %v95, %v214
    %v222 = vmul.f32 %v104, %v214
    %v227 = vcombine.low %v215, %v216
    %v228 = vcombine.low %v217, %v218
    %v230 = vunpack.c.l.s4 1983009808
    %v231 = vunpack.c.0.s8 %v230
    %v232 = vlaneseq
    %v233 = vshrl.u32 %v232, 7
    %v234 = vsub.s32 %v231, %v233
    %v235 = vrot.slane %v227, %v234
    %v237 = vunpack.c.l.s4 1983009808
    %v238 = vunpack.c.0.s8 %v237
    %v239 = vlaneseq
    %v240 = vshrl.u32 %v239, 7
    %v241 = vsub.s32 %v238, %v240
    %v242 = vrot.slane %v228, %v241
    %v243 = vcombine.low %v235, %v242
    %v252 = vcombine.low %v147, %v156
    %v253 = vcombine.low %v165, %v174
    %v255 = vunpack.c.l.s4 1983009808
    %v256 = vunpack.c.0.s8 %v255
    %v257 = vlaneseq
    %v258 = vshrl.u32 %v257, 7
    %v259 = vsub.s32 %v256, %v258
    %v260 = vrot.slane %v252, %v259
    %v262 = vunpack.c.l.s4 1983009808
    %v263 = vunpack.c.0.s8 %v262
    %v264 = vlaneseq
    %v265 = vshrl.u32 %v264, 7
    %v266 = vsub.s32 %v263, %v265
    %v267 = vrot.slane %v253, %v266
    %v268 = vcombine.low %v260, %v267
    %v269 = vcombine.low %v183, %v192
    %v270 = vcombine.low %v201, %v210
    %v272 = vunpack.c.l.s4 1983009808
    %v273 = vunpack.c.0.s8 %v272
    %v274 = vlaneseq
    %v275 = vshrl.u32 %v274, 7
    %v276 = vsub.s32 %v273, %v275
    %v277 = vrot.slane %v269, %v276
    %v279 = vunpack.c.l.s4 1983009808
    %v280 = vunpack.c.0.s8 %v279
    %v281 = vlaneseq
    %v282 = vshrl.u32 %v281, 7
    %v283 = vsub.s32 %v280, %v282
    %v284 = vrot.slane %v270, %v283
    %v285 = vcombine.low %v277, %v284
    %vm286 = vcmask 261120
    %v287 = vsel %vm286, %v243, 0
    %v289 = vsel %vm286, %v268, 0
    %v291 = vsel %vm286, %v285, 0
    %293 = vmatprep.subr.mxu0 0.0
    %v294 = vand.u32 %v289, 4294901760
    %295 = vmatpush1.xpose.msra.mxu0 %v294
    %296 = vmatprep.subr.mxu0 0.0
    %v297 = vand.u32 %v291, 4294901760
    %298 = vmatpush1.xpose.msra.mxu0 %v297
    %299 = vmatprep.subr.mxu0 0.0
    %300 = vmatpush1.xpose.msra.mxu0 0.0
    %301 = vmatprep.subr.mxu0 0.0
    %302 = vmatpush1.xpose.msra.mxu0 0.0
    %303 = vmatprep.subr.mxu0 0.0
    %304 = vmatpush1.xpose.msra.mxu0 0.0
    %305 = vmatprep.subr.mxu0 0.0
    %306 = vmatpush1.xpose.msra.mxu0 0.0
    %307 = vmatprep.subr.mxu0 0.0
    %308 = vmatpush1.xpose.msra.mxu0 0.0
    %309 = vmatprep.subr.mxu0 0.0
    %310 = vmatpush1.xpose.msra.mxu0 0.0
    %311 = vmatprep.subr.mxu0 0.0
    %312 = vmatpush1.xpose.msra.mxu0 0.0
    %313 = vmatprep.subr.mxu0 0.0
    %314 = vmatpush1.xpose.msra.mxu0 0.0
    %315 = vmatprep.subr.mxu0 0.0
    %316 = vmatpush1.xpose.msra.mxu0 0.0
    %317 = vmatprep.subr.mxu0 0.0
    %318 = vmatpush1.xpose.msra.mxu0 0.0
    %319 = vmatprep.subr.mxu0 0.0
    %320 = vmatpush1.xpose.msra.mxu0 0.0
    %321 = vmatprep.subr.mxu0 0.0
    %322 = vmatpush1.xpose.msra.mxu0 0.0
    %323 = vmatprep.subr.mxu0 0.0
    %324 = vmatpush1.xpose.msra.mxu0 0.0
    %325 = vmatprep.subr.mxu0 0.0
    %326 = vmatpush1.xpose.msra.mxu0 0.0
    %327 = vmatprep.subr.mxu0 0.0
    %328 = vmatpush1.xpose.msra.mxu0 0.0
    %329 = vmatprep.subr.mxu0 0.0
    %330 = vmatpush1.xpose.msra.mxu0 0.0
    %331 = vmatprep.subr.mxu0 0.0
    %332 = vmatpush1.xpose.msra.mxu0 0.0
    %333 = vmatprep.subr.mxu0 0.0
    %334 = vmatpush1.xpose.msra.mxu0 0.0
    %335 = vmatprep.subr.mxu0 0.0
    %336 = vmatpush1.xpose.msra.mxu0 0.0
    %337 = vmatprep.subr.mxu0 0.0
    %338 = vmatpush1.xpose.msra.mxu0 0.0
    %339 = vmatprep.subr.mxu0 0.0
    %340 = vmatpush1.xpose.msra.mxu0 0.0
    %341 = vmatprep.subr.mxu0 0.0
    %342 = vmatpush1.xpose.msra.mxu0 0.0
    %343 = vmatprep.subr.mxu0 0.0
    %344 = vmatpush1.xpose.msra.mxu0 0.0
    %345 = vmatprep.subr.mxu0 0.0
    %346 = vmatpush1.xpose.msra.mxu0 0.0
    %347 = vmatprep.subr.mxu0 0.0
    %348 = vmatpush1.xpose.msra.mxu0 0.0
    %349 = vmatprep.subr.mxu0 0.0
    %350 = vmatpush1.xpose.msra.mxu0 0.0
    %351 = vmatprep.subr.mxu0 0.0
    %352 = vmatpush1.xpose.msra.mxu0 0.0
    %353 = vmatprep.subr.mxu0 0.0
    %354 = vmatpush1.xpose.msra.mxu0 0.0
    %355 = vmatprep.subr.mxu0 0.0
    %356 = vmatpush1.xpose.msra.mxu0 0.0
    %357 = vmatprep.subr.mxu0 0.0
    %358 = vmatpush1.xpose.msra.mxu0 0.0
    %359 = vmatprep.mubr.f32.mxu0 0.0
    %v360 = vand.u32 %v287, 4294901760
    %v361 = vsub.f32 %v287, %v360
    %v362 = vand.u32 %v361, 4294901760
    %v363 = vsub.f32 %v361, %v362
    %v364 = vand.u32 %v363, 4294901760
    %365 = vmatmul.mubr.f32.gmra.mrb[0].mxu0 %v364
    %v366 = vpop.f32.mrb[0].mxu0
    %v367 = vadd.f32 0.0, %v366
    %v368 = vpop.f32.mrb[0].mxu0
    %369 = vdwg.mxu0
    %370 = vmatprep.subr.mxu0 0.0
    %v371 = vand.u32 %v289, 4294901760
    %v372 = vsub.f32 %v289, %v371
    %v373 = vand.u32 %v372, 4294901760
    %v374 = vsub.f32 %v372, %v373
    %v375 = vand.u32 %v374, 4294901760
    %376 = vmatpush1.xpose.msra.mxu0 %v375
    %377 = vmatprep.subr.mxu0 0.0
    %v378 = vand.u32 %v291, 4294901760
    %v379 = vsub.f32 %v291, %v378
    %v380 = vand.u32 %v379, 4294901760
    %v381 = vsub.f32 %v379, %v380
    %v382 = vand.u32 %v381, 4294901760
    %383 = vmatpush1.xpose.msra.mxu0 %v382
    %384 = vmatprep.subr.mxu0 0.0
    %385 = vmatpush1.xpose.msra.mxu0 0.0
    %386 = vmatprep.subr.mxu0 0.0
    %387 = vmatpush1.xpose.msra.mxu0 0.0
    %388 = vmatprep.subr.mxu0 0.0
    %389 = vmatpush1.xpose.msra.mxu0 0.0
    %390 = vmatprep.subr.mxu0 0.0
    %391 = vmatpush1.xpose.msra.mxu0 0.0
    %392 = vmatprep.subr.mxu0 0.0
    %393 = vmatpush1.xpose.msra.mxu0 0.0
    %394 = vmatprep.subr.mxu0 0.0
    %395 = vmatpush1.xpose.msra.mxu0 0.0
    %396 = vmatprep.subr.mxu0 0.0
    %397 = vmatpush1.xpose.msra.mxu0 0.0
    %398 = vmatprep.subr.mxu0 0.0
    %399 = vmatpush1.xpose.msra.mxu0 0.0
    %400 = vmatprep.subr.mxu0 0.0
    %401 = vmatpush1.xpose.msra.mxu0 0.0
    %402 = vmatprep.subr.mxu0 0.0
    %403 = vmatpush1.xpose.msra.mxu0 0.0
    %404 = vmatprep.subr.mxu0 0.0
    %405 = vmatpush1.xpose.msra.mxu0 0.0
    %406 = vmatprep.subr.mxu0 0.0
    %407 = vmatpush1.xpose.msra.mxu0 0.0
    %408 = vmatprep.subr.mxu0 0.0
    %409 = vmatpush1.xpose.msra.mxu0 0.0
    %410 = vmatprep.subr.mxu0 0.0
    %411 = vmatpush1.xpose.msra.mxu0 0.0
    %412 = vmatprep.subr.mxu0 0.0
    %413 = vmatpush1.xpose.msra.mxu0 0.0
    %414 = vmatprep.subr.mxu0 0.0
    %415 = vmatpush1.xpose.msra.mxu0 0.0
    %416 = vmatprep.subr.mxu0 0.0
    %417 = vmatpush1.xpose.msra.mxu0 0.0
    %418 = vmatprep.subr.mxu0 0.0
    %419 = vmatpush1.xpose.msra.mxu0 0.0
    %420 = vmatprep.subr.mxu0 0.0
    %421 = vmatpush1.xpose.msra.mxu0 0.0
    %422 = vmatprep.subr.mxu0 0.0
    %423 = vmatpush1.xpose.msra.mxu0 0.0
    %424 = vmatprep.subr.mxu0 0.0
    %425 = vmatpush1.xpose.msra.mxu0 0.0
    %426 = vmatprep.subr.mxu0 0.0
    %427 = vmatpush1.xpose.msra.mxu0 0.0
    %428 = vmatprep.subr.mxu0 0.0
    %429 = vmatpush1.xpose.msra.mxu0 0.0
    %430 = vmatprep.subr.mxu0 0.0
    %431 = vmatpush1.xpose.msra.mxu0 0.0
    %432 = vmatprep.subr.mxu0 0.0
    %433 = vmatpush1.xpose.msra.mxu0 0.0
    %434 = vmatprep.subr.mxu0 0.0
    %435 = vmatpush1.xpose.msra.mxu0 0.0
    %436 = vmatprep.subr.mxu0 0.0
    %437 = vmatpush1.xpose.msra.mxu0 0.0
    %438 = vmatprep.subr.mxu0 0.0
    %439 = vmatpush1.xpose.msra.mxu0 0.0
    %440 = vmatprep.subr.mxu0 0.0
    %441 = vmatpush1.xpose.msra.mxu0 0.0
    %442 = vmatprep.subr.mxu0 0.0
    %443 = vmatpush1.xpose.msra.mxu0 0.0
    %444 = vmatprep.mubr.f32.mxu0 0.0
    %v445 = vand.u32 %v287, 4294901760
    %446 = vmatmul.mubr.f32.gmra.mrb[0].mxu0 %v445
    %v447 = vpop.f32.mrb[0].mxu0
    %v448 = vadd.f32 %v367, %v447
    %v449 = vpop.f32.mrb[0].mxu0
    %450 = vdwg.mxu0
    %451 = vmatprep.subr.mxu0 0.0
    %v452 = vand.u32 %v289, 4294901760
    %v453 = vsub.f32 %v289, %v452
    %454 = vmatpush1.xpose.msra.mxu0 %v453
    %455 = vmatprep.subr.mxu0 0.0
    %v456 = vand.u32 %v291, 4294901760
    %v457 = vsub.f32 %v291, %v456
    %458 = vmatpush1.xpose.msra.mxu0 %v457
    %459 = vmatprep.subr.mxu0 0.0
    %460 = vmatpush1.xpose.msra.mxu0 0.0
    %461 = vmatprep.subr.mxu0 0.0
    %462 = vmatpush1.xpose.msra.mxu0 0.0
    %463 = vmatprep.subr.mxu0 0.0
    %464 = vmatpush1.xpose.msra.mxu0 0.0
    %465 = vmatprep.subr.mxu0 0.0
    %466 = vmatpush1.xpose.msra.mxu0 0.0
    %467 = vmatprep.subr.mxu0 0.0
    %468 = vmatpush1.xpose.msra.mxu0 0.0
    %469 = vmatprep.subr.mxu0 0.0
    %470 = vmatpush1.xpose.msra.mxu0 0.0
    %471 = vmatprep.subr.mxu0 0.0
    %472 = vmatpush1.xpose.msra.mxu0 0.0
    %473 = vmatprep.subr.mxu0 0.0
    %474 = vmatpush1.xpose.msra.mxu0 0.0
    %475 = vmatprep.subr.mxu0 0.0
    %476 = vmatpush1.xpose.msra.mxu0 0.0
    %477 = vmatprep.subr.mxu0 0.0
    %478 = vmatpush1.xpose.msra.mxu0 0.0
    %479 = vmatprep.subr.mxu0 0.0
    %480 = vmatpush1.xpose.msra.mxu0 0.0
    %481 = vmatprep.subr.mxu0 0.0
    %482 = vmatpush1.xpose.msra.mxu0 0.0
    %483 = vmatprep.subr.mxu0 0.0
    %484 = vmatpush1.xpose.msra.mxu0 0.0
    %485 = vmatprep.subr.mxu0 0.0
    %486 = vmatpush1.xpose.msra.mxu0 0.0
    %487 = vmatprep.subr.mxu0 0.0
    %488 = vmatpush1.xpose.msra.mxu0 0.0
    %489 = vmatprep.subr.mxu0 0.0
    %490 = vmatpush1.xpose.msra.mxu0 0.0
    %491 = vmatprep.subr.mxu0 0.0
    %492 = vmatpush1.xpose.msra.mxu0 0.0
    %493 = vmatprep.subr.mxu0 0.0
    %494 = vmatpush1.xpose.msra.mxu0 0.0
    %495 = vmatprep.subr.mxu0 0.0
    %496 = vmatpush1.xpose.msra.mxu0 0.0
    %497 = vmatprep.subr.mxu0 0.0
    %498 = vmatpush1.xpose.msra.mxu0 0.0
    %499 = vmatprep.subr.mxu0 0.0
    %500 = vmatpush1.xpose.msra.mxu0 0.0
    %501 = vmatprep.subr.mxu0 0.0
    %502 = vmatpush1.xpose.msra.mxu0 0.0
    %503 = vmatprep.subr.mxu0 0.0
    %504 = vmatpush1.xpose.msra.mxu0 0.0
    %505 = vmatprep.subr.mxu0 0.0
    %506 = vmatpush1.xpose.msra.mxu0 0.0
    %507 = vmatprep.subr.mxu0 0.0
    %508 = vmatpush1.xpose.msra.mxu0 0.0
    %509 = vmatprep.subr.mxu0 0.0
    %510 = vmatpush1.xpose.msra.mxu0 0.0
    %511 = vmatprep.subr.mxu0 0.0
    %512 = vmatpush1.xpose.msra.mxu0 0.0
    %513 = vmatprep.subr.mxu0 0.0
    %514 = vmatpush1.xpose.msra.mxu0 0.0
    %515 = vmatprep.subr.mxu0 0.0
    %516 = vmatpush1.xpose.msra.mxu0 0.0
    %517 = vmatprep.subr.mxu0 0.0
    %518 = vmatpush1.xpose.msra.mxu0 0.0
    %519 = vmatprep.mubr.f32.mxu0 0.0
    %v520 = vand.u32 %v287, 4294901760
    %v521 = vsub.f32 %v287, %v520
    %522 = vmatmul.mubr.f32.gmra.mrb[0].mxu0 %v521
    %v523 = vpop.f32.mrb[0].mxu0
    %v524 = vadd.f32 %v448, %v523
    %v525 = vpop.f32.mrb[0].mxu0
    %526 = vdwg.mxu0
    %527 = vmatprep.subr.mxu0 0.0
    %v528 = vand.u32 %v289, 4294901760
    %529 = vmatpush1.xpose.msra.mxu0 %v528
    %530 = vmatprep.subr.mxu0 0.0
    %v531 = vand.u32 %v291, 4294901760
    %532 = vmatpush1.xpose.msra.mxu0 %v531
    %533 = vmatprep.subr.mxu0 0.0
    %534 = vmatpush1.xpose.msra.mxu0 0.0
    %535 = vmatprep.subr.mxu0 0.0
    %536 = vmatpush1.xpose.msra.mxu0 0.0
    %537 = vmatprep.subr.mxu0 0.0
    %538 = vmatpush1.xpose.msra.mxu0 0.0
    %539 = vmatprep.subr.mxu0 0.0
    %540 = vmatpush1.xpose.msra.mxu0 0.0
    %541 = vmatprep.subr.mxu0 0.0
    %542 = vmatpush1.xpose.msra.mxu0 0.0
    %543 = vmatprep.subr.mxu0 0.0
    %544 = vmatpush1.xpose.msra.mxu0 0.0
    %545 = vmatprep.subr.mxu0 0.0
    %546 = vmatpush1.xpose.msra.mxu0 0.0
    %547 = vmatprep.subr.mxu0 0.0
    %548 = vmatpush1.xpose.msra.mxu0 0.0
    %549 = vmatprep.subr.mxu0 0.0
    %550 = vmatpush1.xpose.msra.mxu0 0.0
    %551 = vmatprep.subr.mxu0 0.0
    %552 = vmatpush1.xpose.msra.mxu0 0.0
    %553 = vmatprep.subr.mxu0 0.0
    %554 = vmatpush1.xpose.msra.mxu0 0.0
    %555 = vmatprep.subr.mxu0 0.0
    %556 = vmatpush1.xpose.msra.mxu0 0.0
    %557 = vmatprep.subr.mxu0 0.0
    %558 = vmatpush1.xpose.msra.mxu0 0.0
    %559 = vmatprep.subr.mxu0 0.0
    %560 = vmatpush1.xpose.msra.mxu0 0.0
    %561 = vmatprep.subr.mxu0 0.0
    %562 = vmatpush1.xpose.msra.mxu0 0.0
    %563 = vmatprep.subr.mxu0 0.0
    %564 = vmatpush1.xpose.msra.mxu0 0.0
    %565 = vmatprep.subr.mxu0 0.0
    %566 = vmatpush1.xpose.msra.mxu0 0.0
    %567 = vmatprep.subr.mxu0 0.0
    %568 = vmatpush1.xpose.msra.mxu0 0.0
    %569 = vmatprep.subr.mxu0 0.0
    %570 = vmatpush1.xpose.msra.mxu0 0.0
    %571 = vmatprep.subr.mxu0 0.0
    %572 = vmatpush1.xpose.msra.mxu0 0.0
    %573 = vmatprep.subr.mxu0 0.0
    %574 = vmatpush1.xpose.msra.mxu0 0.0
    %575 = vmatprep.subr.mxu0 0.0
    %576 = vmatpush1.xpose.msra.mxu0 0.0
    %577 = vmatprep.subr.mxu0 0.0
    %578 = vmatpush1.xpose.msra.mxu0 0.0
    %579 = vmatprep.subr.mxu0 0.0
    %580 = vmatpush1.xpose.msra.mxu0 0.0
    %581 = vmatprep.subr.mxu0 0.0
    %582 = vmatpush1.xpose.msra.mxu0 0.0
    %583 = vmatprep.subr.mxu0 0.0
    %584 = vmatpush1.xpose.msra.mxu0 0.0
    %585 = vmatprep.subr.mxu0 0.0
    %586 = vmatpush1.xpose.msra.mxu0 0.0
    %587 = vmatprep.subr.mxu0 0.0
    %588 = vmatpush1.xpose.msra.mxu0 0.0
    %589 = vmatprep.subr.mxu0 0.0
    %590 = vmatpush1.xpose.msra.mxu0 0.0
    %591 = vmatprep.subr.mxu0 0.0
    %592 = vmatpush1.xpose.msra.mxu0 0.0
    %593 = vmatprep.mubr.f32.mxu0 0.0
    %v594 = vand.u32 %v287, 4294901760
    %v595 = vsub.f32 %v287, %v594
    %v596 = vand.u32 %v595, 4294901760
    %597 = vmatmul.mubr.f32.gmra.mrb[0].mxu0 %v596
    %v598 = vpop.f32.mrb[0].mxu0
    %v599 = vadd.f32 %v524, %v598
    %v600 = vpop.f32.mrb[0].mxu0
    %601 = vdwg.mxu0
    %602 = vmatprep.subr.mxu0 0.0
    %v603 = vand.u32 %v289, 4294901760
    %v604 = vsub.f32 %v289, %v603
    %v605 = vand.u32 %v604, 4294901760
    %606 = vmatpush1.xpose.msra.mxu0 %v605
    %607 = vmatprep.subr.mxu0 0.0
    %v608 = vand.u32 %v291, 4294901760
    %v609 = vsub.f32 %v291, %v608
    %v610 = vand.u32 %v609, 4294901760
    %611 = vmatpush1.xpose.msra.mxu0 %v610
    %612 = vmatprep.subr.mxu0 0.0
    %613 = vmatpush1.xpose.msra.mxu0 0.0
    %614 = vmatprep.subr.mxu0 0.0
    %615 = vmatpush1.xpose.msra.mxu0 0.0
    %616 = vmatprep.subr.mxu0 0.0
    %617 = vmatpush1.xpose.msra.mxu0 0.0
    %618 = vmatprep.subr.mxu0 0.0
    %619 = vmatpush1.xpose.msra.mxu0 0.0
    %620 = vmatprep.subr.mxu0 0.0
    %621 = vmatpush1.xpose.msra.mxu0 0.0
    %622 = vmatprep.subr.mxu0 0.0
    %623 = vmatpush1.xpose.msra.mxu0 0.0
    %624 = vmatprep.subr.mxu0 0.0
    %625 = vmatpush1.xpose.msra.mxu0 0.0
    %626 = vmatprep.subr.mxu0 0.0
    %627 = vmatpush1.xpose.msra.mxu0 0.0
    %628 = vmatprep.subr.mxu0 0.0
    %629 = vmatpush1.xpose.msra.mxu0 0.0
    %630 = vmatprep.subr.mxu0 0.0
    %631 = vmatpush1.xpose.msra.mxu0 0.0
    %632 = vmatprep.subr.mxu0 0.0
    %633 = vmatpush1.xpose.msra.mxu0 0.0
    %634 = vmatprep.subr.mxu0 0.0
    %635 = vmatpush1.xpose.msra.mxu0 0.0
    %636 = vmatprep.subr.mxu0 0.0
    %637 = vmatpush1.xpose.msra.mxu0 0.0
    %638 = vmatprep.subr.mxu0 0.0
    %639 = vmatpush1.xpose.msra.mxu0 0.0
    %640 = vmatprep.subr.mxu0 0.0
    %641 = vmatpush1.xpose.msra.mxu0 0.0
    %642 = vmatprep.subr.mxu0 0.0
    %643 = vmatpush1.xpose.msra.mxu0 0.0
    %644 = vmatprep.subr.mxu0 0.0
    %645 = vmatpush1.xpose.msra.mxu0 0.0
    %646 = vmatprep.subr.mxu0 0.0
    %647 = vmatpush1.xpose.msra.mxu0 0.0
    %648 = vmatprep.subr.mxu0 0.0
    %649 = vmatpush1.xpose.msra.mxu0 0.0
    %650 = vmatprep.subr.mxu0 0.0
    %651 = vmatpush1.xpose.msra.mxu0 0.0
    %652 = vmatprep.subr.mxu0 0.0
    %653 = vmatpush1.xpose.msra.mxu0 0.0
    %654 = vmatprep.subr.mxu0 0.0
    %655 = vmatpush1.xpose.msra.mxu0 0.0
    %656 = vmatprep.subr.mxu0 0.0
    %657 = vmatpush1.xpose.msra.mxu0 0.0
    %658 = vmatprep.subr.mxu0 0.0
    %659 = vmatpush1.xpose.msra.mxu0 0.0
    %660 = vmatprep.subr.mxu0 0.0
    %661 = vmatpush1.xpose.msra.mxu0 0.0
    %662 = vmatprep.subr.mxu0 0.0
    %663 = vmatpush1.xpose.msra.mxu0 0.0
    %664 = vmatprep.subr.mxu0 0.0
    %665 = vmatpush1.xpose.msra.mxu0 0.0
    %666 = vmatprep.subr.mxu0 0.0
    %667 = vmatpush1.xpose.msra.mxu0 0.0
    %668 = vmatprep.subr.mxu0 0.0
    %669 = vmatpush1.xpose.msra.mxu0 0.0
    %670 = vmatprep.subr.mxu0 0.0
    %671 = vmatpush1.xpose.msra.mxu0 0.0
    %672 = vmatprep.mubr.f32.mxu0 0.0
    %v673 = vand.u32 %v287, 4294901760
    %674 = vmatmul.mubr.f32.gmra.mrb[0].mxu0 %v673
    %v675 = vpop.f32.mrb[0].mxu0
    %v676 = vadd.f32 %v599, %v675
    %v677 = vpop.f32.mrb[0].mxu0
    %678 = vdwg.mxu0
    %679 = vmatprep.subr.mxu0 0.0
    %v680 = vand.u32 %v289, 4294901760
    %681 = vmatpush1.xpose.msra.mxu0 %v680
    %682 = vmatprep.subr.mxu0 0.0
    %v683 = vand.u32 %v291, 4294901760
    %684 = vmatpush1.xpose.msra.mxu0 %v683
    %685 = vmatprep.subr.mxu0 0.0
    %686 = vmatpush1.xpose.msra.mxu0 0.0
    %687 = vmatprep.subr.mxu0 0.0
    %688 = vmatpush1.xpose.msra.mxu0 0.0
    %689 = vmatprep.subr.mxu0 0.0
    %690 = vmatpush1.xpose.msra.mxu0 0.0
    %691 = vmatprep.subr.mxu0 0.0
    %692 = vmatpush1.xpose.msra.mxu0 0.0
    %693 = vmatprep.subr.mxu0 0.0
    %694 = vmatpush1.xpose.msra.mxu0 0.0
    %695 = vmatprep.subr.mxu0 0.0
    %696 = vmatpush1.xpose.msra.mxu0 0.0
    %697 = vmatprep.subr.mxu0 0.0
    %698 = vmatpush1.xpose.msra.mxu0 0.0
    %699 = vmatprep.subr.mxu0 0.0
    %700 = vmatpush1.xpose.msra.mxu0 0.0
    %701 = vmatprep.subr.mxu0 0.0
    %702 = vmatpush1.xpose.msra.mxu0 0.0
    %703 = vmatprep.subr.mxu0 0.0
    %704 = vmatpush1.xpose.msra.mxu0 0.0
    %705 = vmatprep.subr.mxu0 0.0
    %706 = vmatpush1.xpose.msra.mxu0 0.0
    %707 = vmatprep.subr.mxu0 0.0
    %708 = vmatpush1.xpose.msra.mxu0 0.0
    %709 = vmatprep.subr.mxu0 0.0
    %710 = vmatpush1.xpose.msra.mxu0 0.0
    %711 = vmatprep.subr.mxu0 0.0
    %712 = vmatpush1.xpose.msra.mxu0 0.0
    %713 = vmatprep.subr.mxu0 0.0
    %714 = vmatpush1.xpose.msra.mxu0 0.0
    %715 = vmatprep.subr.mxu0 0.0
    %716 = vmatpush1.xpose.msra.mxu0 0.0
    %717 = vmatprep.subr.mxu0 0.0
    %718 = vmatpush1.xpose.msra.mxu0 0.0
    %719 = vmatprep.subr.mxu0 0.0
    %720 = vmatpush1.xpose.msra.mxu0 0.0
    %721 = vmatprep.subr.mxu0 0.0
    %722 = vmatpush1.xpose.msra.mxu0 0.0
    %723 = vmatprep.subr.mxu0 0.0
    %724 = vmatpush1.xpose.msra.mxu0 0.0
    %725 = vmatprep.subr.mxu0 0.0
    %726 = vmatpush1.xpose.msra.mxu0 0.0
    %727 = vmatprep.subr.mxu0 0.0
    %728 = vmatpush1.xpose.msra.mxu0 0.0
    %729 = vmatprep.subr.mxu0 0.0
    %730 = vmatpush1.xpose.msra.mxu0 0.0
    %731 = vmatprep.subr.mxu0 0.0
    %732 = vmatpush1.xpose.msra.mxu0 0.0
    %733 = vmatprep.subr.mxu0 0.0
    %734 = vmatpush1.xpose.msra.mxu0 0.0
    %735 = vmatprep.subr.mxu0 0.0
    %736 = vmatpush1.xpose.msra.mxu0 0.0
    %737 = vmatprep.subr.mxu0 0.0
    %738 = vmatpush1.xpose.msra.mxu0 0.0
    %739 = vmatprep.subr.mxu0 0.0
    %740 = vmatpush1.xpose.msra.mxu0 0.0
    %741 = vmatprep.subr.mxu0 0.0
    %742 = vmatpush1.xpose.msra.mxu0 0.0
    %743 = vmatprep.subr.mxu0 0.0
    %744 = vmatpush1.xpose.msra.mxu0 0.0
    %745 = vmatprep.mubr.f32.mxu0 0.0
    %v746 = vand.u32 %v287, 4294901760
    %747 = vmatmul.mubr.f32.gmra.mrb[0].mxu0 %v746
    %v748 = vpop.f32.mrb[0].mxu0
    %v749 = vadd.f32 %v676, %v748
    %v750 = vpop.f32.mrb[0].mxu0
    %751 = vdwg.mxu0
    %v756 = vcombine.low %v219, %v220
    %v757 = vcombine.low %v221, %v222
    %v759 = vunpack.c.l.s4 1983009808
    %v760 = vunpack.c.0.s8 %v759
    %v761 = vlaneseq
    %v762 = vshrl.u32 %v761, 7
    %v763 = vsub.s32 %v760, %v762
    %v764 = vrot.slane %v756, %v763
    %v766 = vunpack.c.l.s4 1983009808
    %v767 = vunpack.c.0.s8 %v766
    %v768 = vlaneseq
    %v769 = vshrl.u32 %v768, 7
    %v770 = vsub.s32 %v767, %v769
    %v771 = vrot.slane %v757, %v770
    %v772 = vcombine.low %v764, %v771
    %v781 = vcombine.low %v148, %v157
    %v782 = vcombine.low %v166, %v175
    %v784 = vunpack.c.l.s4 1983009808
    %v785 = vunpack.c.0.s8 %v784
    %v786 = vlaneseq
    %v787 = vshrl.u32 %v786, 7
    %v788 = vsub.s32 %v785, %v787
    %v789 = vrot.slane %v781, %v788
    %v791 = vunpack.c.l.s4 1983009808
    %v792 = vunpack.c.0.s8 %v791
    %v793 = vlaneseq
    %v794 = vshrl.u32 %v793, 7
    %v795 = vsub.s32 %v792, %v794
    %v796 = vrot.slane %v782, %v795
    %v797 = vcombine.low %v789, %v796
    %v798 = vcombine.low %v184, %v193
    %v799 = vcombine.low %v202, %v211
    %v801 = vunpack.c.l.s4 1983009808
    %v802 = vunpack.c.0.s8 %v801
    %v803 = vlaneseq
    %v804 = vshrl.u32 %v803, 7
    %v805 = vsub.s32 %v802, %v804
    %v806 = vrot.slane %v798, %v805
    %v808 = vunpack.c.l.s4 1983009808
    %v809 = vunpack.c.0.s8 %v808
    %v810 = vlaneseq
    %v811 = vshrl.u32 %v810, 7
    %v812 = vsub.s32 %v809, %v811
    %v813 = vrot.slane %v799, %v812
    %v814 = vcombine.low %v806, %v813
    %v815 = vsel %vm286, %v772, 0
    %v817 = vsel %vm286, %v797, 0
    %v819 = vsel %vm286, %v814, 0
    %821 = vmatprep.subr.mxu0 0.0
    %v822 = vand.u32 %v817, 4294901760
    %823 = vmatpush1.xpose.msra.mxu0 %v822
    %824 = vmatprep.subr.mxu0 0.0
    %v825 = vand.u32 %v819, 4294901760
    %826 = vmatpush1.xpose.msra.mxu0 %v825
    %827 = vmatprep.subr.mxu0 0.0
    %828 = vmatpush1.xpose.msra.mxu0 0.0
    %829 = vmatprep.subr.mxu0 0.0
    %830 = vmatpush1.xpose.msra.mxu0 0.0
    %831 = vmatprep.subr.mxu0 0.0
    %832 = vmatpush1.xpose.msra.mxu0 0.0
    %833 = vmatprep.subr.mxu0 0.0
    %834 = vmatpush1.xpose.msra.mxu0 0.0
    %835 = vmatprep.subr.mxu0 0.0
    %836 = vmatpush1.xpose.msra.mxu0 0.0
    %837 = vmatprep.subr.mxu0 0.0
    %838 = vmatpush1.xpose.msra.mxu0 0.0
    %839 = vmatprep.subr.mxu0 0.0
    %840 = vmatpush1.xpose.msra.mxu0 0.0
    %841 = vmatprep.subr.mxu0 0.0
    %842 = vmatpush1.xpose.msra.mxu0 0.0
    %843 = vmatprep.subr.mxu0 0.0
    %844 = vmatpush1.xpose.msra.mxu0 0.0
    %845 = vmatprep.subr.mxu0 0.0
    %846 = vmatpush1.xpose.msra.mxu0 0.0
    %847 = vmatprep.subr.mxu0 0.0
    %848 = vmatpush1.xpose.msra.mxu0 0.0
    %849 = vmatprep.subr.mxu0 0.0
    %850 = vmatpush1.xpose.msra.mxu0 0.0
    %851 = vmatprep.subr.mxu0 0.0
    %852 = vmatpush1.xpose.msra.mxu0 0.0
    %853 = vmatprep.subr.mxu0 0.0
    %854 = vmatpush1.xpose.msra.mxu0 0.0
    %855 = vmatprep.subr.mxu0 0.0
    %856 = vmatpush1.xpose.msra.mxu0 0.0
    %857 = vmatprep.subr.mxu0 0.0
    %858 = vmatpush1.xpose.msra.mxu0 0.0
    %859 = vmatprep.subr.mxu0 0.0
    %860 = vmatpush1.xpose.msra.mxu0 0.0
    %861 = vmatprep.subr.mxu0 0.0
    %862 = vmatpush1.xpose.msra.mxu0 0.0
    %863 = vmatprep.subr.mxu0 0.0
    %864 = vmatpush1.xpose.msra.mxu0 0.0
    %865 = vmatprep.subr.mxu0 0.0
    %866 = vmatpush1.xpose.msra.mxu0 0.0
    %867 = vmatprep.subr.mxu0 0.0
    %868 = vmatpush1.xpose.msra.mxu0 0.0
    %869 = vmatprep.subr.mxu0 0.0
    %870 = vmatpush1.xpose.msra.mxu0 0.0
    %871 = vmatprep.subr.mxu0 0.0
    %872 = vmatpush1.xpose.msra.mxu0 0.0
    %873 = vmatprep.subr.mxu0 0.0
    %874 = vmatpush1.xpose.msra.mxu0 0.0
    %875 = vmatprep.subr.mxu0 0.0
    %876 = vmatpush1.xpose.msra.mxu0 0.0
    %877 = vmatprep.subr.mxu0 0.0
    %878 = vmatpush1.xpose.msra.mxu0 0.0
    %879 = vmatprep.subr.mxu0 0.0
    %880 = vmatpush1.xpose.msra.mxu0 0.0
    %881 = vmatprep.subr.mxu0 0.0
    %882 = vmatpush1.xpose.msra.mxu0 0.0
    %883 = vmatprep.subr.mxu0 0.0
    %884 = vmatpush1.xpose.msra.mxu0 0.0
    %885 = vmatprep.subr.mxu0 0.0
    %886 = vmatpush1.xpose.msra.mxu0 0.0
    %887 = vmatprep.mubr.f32.mxu0 0.0
    %v888 = vand.u32 %v815, 4294901760
    %v889 = vsub.f32 %v815, %v888
    %v890 = vand.u32 %v889, 4294901760
    %v891 = vsub.f32 %v889, %v890
    %v892 = vand.u32 %v891, 4294901760
    %893 = vmatmul.mubr.f32.gmra.mrb[0].mxu0 %v892
    %v894 = vpop.f32.mrb[0].mxu0
    %v895 = vadd.f32 0.0, %v894
    %v896 = vpop.f32.mrb[0].mxu0
    %897 = vdwg.mxu0
    %898 = vmatprep.subr.mxu0 0.0
    %v899 = vand.u32 %v817, 4294901760
    %v900 = vsub.f32 %v817, %v899
    %v901 = vand.u32 %v900, 4294901760
    %v902 = vsub.f32 %v900, %v901
    %v903 = vand.u32 %v902, 4294901760
    %904 = vmatpush1.xpose.msra.mxu0 %v903
    %905 = vmatprep.subr.mxu0 0.0
    %v906 = vand.u32 %v819, 4294901760
    %v907 = vsub.f32 %v819, %v906
    %v908 = vand.u32 %v907, 4294901760
    %v909 = vsub.f32 %v907, %v908
    %v910 = vand.u32 %v909, 4294901760
    %911 = vmatpush1.xpose.msra.mxu0 %v910
    %912 = vmatprep.subr.mxu0 0.0
    %913 = vmatpush1.xpose.msra.mxu0 0.0
    %914 = vmatprep.subr.mxu0 0.0
    %915 = vmatpush1.xpose.msra.mxu0 0.0
    %916 = vmatprep.subr.mxu0 0.0
    %917 = vmatpush1.xpose.msra.mxu0 0.0
    %918 = vmatprep.subr.mxu0 0.0
    %919 = vmatpush1.xpose.msra.mxu0 0.0
    %920 = vmatprep.subr.mxu0 0.0
    %921 = vmatpush1.xpose.msra.mxu0 0.0
    %922 = vmatprep.subr.mxu0 0.0
    %923 = vmatpush1.xpose.msra.mxu0 0.0
    %924 = vmatprep.subr.mxu0 0.0
    %925 = vmatpush1.xpose.msra.mxu0 0.0
    %926 = vmatprep.subr.mxu0 0.0
    %927 = vmatpush1.xpose.msra.mxu0 0.0
    %928 = vmatprep.subr.mxu0 0.0
    %929 = vmatpush1.xpose.msra.mxu0 0.0
    %930 = vmatprep.subr.mxu0 0.0
    %931 = vmatpush1.xpose.msra.mxu0 0.0
    %932 = vmatprep.subr.mxu0 0.0
    %933 = vmatpush1.xpose.msra.mxu0 0.0
    %934 = vmatprep.subr.mxu0 0.0
    %935 = vmatpush1.xpose.msra.mxu0 0.0
    %936 = vmatprep.subr.mxu0 0.0
    %937 = vmatpush1.xpose.msra.mxu0 0.0
    %938 = vmatprep.subr.mxu0 0.0
    %939 = vmatpush1.xpose.msra.mxu0 0.0
    %940 = vmatprep.subr.mxu0 0.0
    %941 = vmatpush1.xpose.msra.mxu0 0.0
    %942 = vmatprep.subr.mxu0 0.0
    %943 = vmatpush1.xpose.msra.mxu0 0.0
    %944 = vmatprep.subr.mxu0 0.0
    %945 = vmatpush1.xpose.msra.mxu0 0.0
    %946 = vmatprep.subr.mxu0 0.0
    %947 = vmatpush1.xpose.msra.mxu0 0.0
    %948 = vmatprep.subr.mxu0 0.0
    %949 = vmatpush1.xpose.msra.mxu0 0.0
    %950 = vmatprep.subr.mxu0 0.0
    %951 = vmatpush1.xpose.msra.mxu0 0.0
    %952 = vmatprep.subr.mxu0 0.0
    %953 = vmatpush1.xpose.msra.mxu0 0.0
    %954 = vmatprep.subr.mxu0 0.0
    %955 = vmatpush1.xpose.msra.mxu0 0.0
    %956 = vmatprep.subr.mxu0 0.0
    %957 = vmatpush1.xpose.msra.mxu0 0.0
    %958 = vmatprep.subr.mxu0 0.0
    %959 = vmatpush1.xpose.msra.mxu0 0.0
    %960 = vmatprep.subr.mxu0 0.0
    %961 = vmatpush1.xpose.msra.mxu0 0.0
    %962 = vmatprep.subr.mxu0 0.0
    %963 = vmatpush1.xpose.msra.mxu0 0.0
    %964 = vmatprep.subr.mxu0 0.0
    %965 = vmatpush1.xpose.msra.mxu0 0.0
    %966 = vmatprep.subr.mxu0 0.0
    %967 = vmatpush1.xpose.msra.mxu0 0.0
    %968 = vmatprep.subr.mxu0 0.0
    %969 = vmatpush1.xpose.msra.mxu0 0.0
    %970 = vmatprep.subr.mxu0 0.0
    %971 = vmatpush1.xpose.msra.mxu0 0.0
    %972 = vmatprep.mubr.f32.mxu0 0.0
    %v973 = vand.u32 %v815, 4294901760
    %974 = vmatmul.mubr.f32.gmra.mrb[0].mxu0 %v973
    %v975 = vpop.f32.mrb[0].mxu0
    %v976 = vadd.f32 %v895, %v975
    %v977 = vpop.f32.mrb[0].mxu0
    %978 = vdwg.mxu0
    %979 = vmatprep.subr.mxu0 0.0
    %v980 = vand.u32 %v817, 4294901760
    %v981 = vsub.f32 %v817, %v980
    %982 = vmatpush1.xpose.msra.mxu0 %v981
    %983 = vmatprep.subr.mxu0 0.0
    %v984 = vand.u32 %v819, 4294901760
    %v985 = vsub.f32 %v819, %v984
    %986 = vmatpush1.xpose.msra.mxu0 %v985
    %987 = vmatprep.subr.mxu0 0.0
    %988 = vmatpush1.xpose.msra.mxu0 0.0
    %989 = vmatprep.subr.mxu0 0.0
    %990 = vmatpush1.xpose.msra.mxu0 0.0
    %991 = vmatprep.subr.mxu0 0.0
    %992 = vmatpush1.xpose.msra.mxu0 0.0
    %993 = vmatprep.subr.mxu0 0.0
    %994 = vmatpush1.xpose.msra.mxu0 0.0
    %995 = vmatprep.subr.mxu0 0.0
    %996 = vmatpush1.xpose.msra.mxu0 0.0
    %997 = vmatprep.subr.mxu0 0.0
    %998 = vmatpush1.xpose.msra.mxu0 0.0
    %999 = vmatprep.subr.mxu0 0.0
    %1000 = vmatpush1.xpose.msra.mxu0 0.0
    %1001 = vmatprep.subr.mxu0 0.0
    %1002 = vmatpush1.xpose.msra.mxu0 0.0
    %1003 = vmatprep.subr.mxu0 0.0
    %1004 = vmatpush1.xpose.msra.mxu0 0.0
    %1005 = vmatprep.subr.mxu0 0.0
    %1006 = vmatpush1.xpose.msra.mxu0 0.0
    %1007 = vmatprep.subr.mxu0 0.0
    %1008 = vmatpush1.xpose.msra.mxu0 0.0
    %1009 = vmatprep.subr.mxu0 0.0
    %1010 = vmatpush1.xpose.msra.mxu0 0.0
    %1011 = vmatprep.subr.mxu0 0.0
    %1012 = vmatpush1.xpose.msra.mxu0 0.0
    %1013 = vmatprep.subr.mxu0 0.0
    %1014 = vmatpush1.xpose.msra.mxu0 0.0
    %1015 = vmatprep.subr.mxu0 0.0
    %1016 = vmatpush1.xpose.msra.mxu0 0.0
    %1017 = vmatprep.subr.mxu0 0.0
    %1018 = vmatpush1.xpose.msra.mxu0 0.0
    %1019 = vmatprep.subr.mxu0 0.0
    %1020 = vmatpush1.xpose.msra.mxu0 0.0
    %1021 = vmatprep.subr.mxu0 0.0
    %1022 = vmatpush1.xpose.msra.mxu0 0.0
    %1023 = vmatprep.subr.mxu0 0.0
    %1024 = vmatpush1.xpose.msra.mxu0 0.0
    %1025 = vmatprep.subr.mxu0 0.0
    %1026 = vmatpush1.xpose.msra.mxu0 0.0
    %1027 = vmatprep.subr.mxu0 0.0
    %1028 = vmatpush1.xpose.msra.mxu0 0.0
    %1029 = vmatprep.subr.mxu0 0.0
    %1030 = vmatpush1.xpose.msra.mxu0 0.0
    %1031 = vmatprep.subr.mxu0 0.0
    %1032 = vmatpush1.xpose.msra.mxu0 0.0
    %1033 = vmatprep.subr.mxu0 0.0
    %1034 = vmatpush1.xpose.msra.mxu0 0.0
    %1035 = vmatprep.subr.mxu0 0.0
    %1036 = vmatpush1.xpose.msra.mxu0 0.0
    %1037 = vmatprep.subr.mxu0 0.0
    %1038 = vmatpush1.xpose.msra.mxu0 0.0
    %1039 = vmatprep.subr.mxu0 0.0
    %1040 = vmatpush1.xpose.msra.mxu0 0.0
    %1041 = vmatprep.subr.mxu0 0.0
    %1042 = vmatpush1.xpose.msra.mxu0 0.0
    %1043 = vmatprep.subr.mxu0 0.0
    %1044 = vmatpush1.xpose.msra.mxu0 0.0
    %1045 = vmatprep.subr.mxu0 0.0
    %1046 = vmatpush1.xpose.msra.mxu0 0.0
    %1047 = vmatprep.mubr.f32.mxu0 0.0
    %v1048 = vand.u32 %v815, 4294901760
    %v1049 = vsub.f32 %v815, %v1048
    %1050 = vmatmul.mubr.f32.gmra.mrb[0].mxu0 %v1049
    %v1051 = vpop.f32.mrb[0].mxu0
    %v1052 = vadd.f32 %v976, %v1051
    %v1053 = vpop.f32.mrb[0].mxu0
    %1054 = vdwg.mxu0
    %1055 = vmatprep.subr.mxu0 0.0
    %v1056 = vand.u32 %v817, 4294901760
    %1057 = vmatpush1.xpose.msra.mxu0 %v1056
    %1058 = vmatprep.subr.mxu0 0.0
    %v1059 = vand.u32 %v819, 4294901760
    %1060 = vmatpush1.xpose.msra.mxu0 %v1059
    %1061 = vmatprep.subr.mxu0 0.0
    %1062 = vmatpush1.xpose.msra.mxu0 0.0
    %1063 = vmatprep.subr.mxu0 0.0
    %1064 = vmatpush1.xpose.msra.mxu0 0.0
    %1065 = vmatprep.subr.mxu0 0.0
    %1066 = vmatpush1.xpose.msra.mxu0 0.0
    %1067 = vmatprep.subr.mxu0 0.0
    %1068 = vmatpush1.xpose.msra.mxu0 0.0
    %1069 = vmatprep.subr.mxu0 0.0
    %1070 = vmatpush1.xpose.msra.mxu0 0.0
    %1071 = vmatprep.subr.mxu0 0.0
    %1072 = vmatpush1.xpose.msra.mxu0 0.0
    %1073 = vmatprep.subr.mxu0 0.0
    %1074 = vmatpush1.xpose.msra.mxu0 0.0
    %1075 = vmatprep.subr.mxu0 0.0
    %1076 = vmatpush1.xpose.msra.mxu0 0.0
    %1077 = vmatprep.subr.mxu0 0.0
    %1078 = vmatpush1.xpose.msra.mxu0 0.0
    %1079 = vmatprep.subr.mxu0 0.0
    %1080 = vmatpush1.xpose.msra.mxu0 0.0
    %1081 = vmatprep.subr.mxu0 0.0
    %1082 = vmatpush1.xpose.msra.mxu0 0.0
    %1083 = vmatprep.subr.mxu0 0.0
    %1084 = vmatpush1.xpose.msra.mxu0 0.0
    %1085 = vmatprep.subr.mxu0 0.0
    %1086 = vmatpush1.xpose.msra.mxu0 0.0
    %1087 = vmatprep.subr.mxu0 0.0
    %1088 = vmatpush1.xpose.msra.mxu0 0.0
    %1089 = vmatprep.subr.mxu0 0.0
    %1090 = vmatpush1.xpose.msra.mxu0 0.0
    %1091 = vmatprep.subr.mxu0 0.0
    %1092 = vmatpush1.xpose.msra.mxu0 0.0
    %1093 = vmatprep.subr.mxu0 0.0
    %1094 = vmatpush1.xpose.msra.mxu0 0.0
    %1095 = vmatprep.subr.mxu0 0.0
    %1096 = vmatpush1.xpose.msra.mxu0 0.0
    %1097 = vmatprep.subr.mxu0 0.0
    %1098 = vmatpush1.xpose.msra.mxu0 0.0
    %1099 = vmatprep.subr.mxu0 0.0
    %1100 = vmatpush1.xpose.msra.mxu0 0.0
    %1101 = vmatprep.subr.mxu0 0.0
    %1102 = vmatpush1.xpose.msra.mxu0 0.0
    %1103 = vmatprep.subr.mxu0 0.0
    %1104 = vmatpush1.xpose.msra.mxu0 0.0
    %1105 = vmatprep.subr.mxu0 0.0
    %1106 = vmatpush1.xpose.msra.mxu0 0.0
    %1107 = vmatprep.subr.mxu0 0.0
    %1108 = vmatpush1.xpose.msra.mxu0 0.0
    %1109 = vmatprep.subr.mxu0 0.0
    %1110 = vmatpush1.xpose.msra.mxu0 0.0
    %1111 = vmatprep.subr.mxu0 0.0
    %1112 = vmatpush1.xpose.msra.mxu0 0.0
    %1113 = vmatprep.subr.mxu0 0.0
    %1114 = vmatpush1.xpose.msra.mxu0 0.0
    %1115 = vmatprep.subr.mxu0 0.0
    %1116 = vmatpush1.xpose.msra.mxu0 0.0
    %1117 = vmatprep.subr.mxu0 0.0
    %1118 = vmatpush1.xpose.msra.mxu0 0.0
    %1119 = vmatprep.subr.mxu0 0.0
    %1120 = vmatpush1.xpose.msra.mxu0 0.0
    %1121 = vmatprep.mubr.f32.mxu0 0.0
    %v1122 = vand.u32 %v815, 4294901760
    %v1123 = vsub.f32 %v815, %v1122
    %v1124 = vand.u32 %v1123, 4294901760
    %1125 = vmatmul.mubr.f32.gmra.mrb[0].mxu0 %v1124
    %v1126 = vpop.f32.mrb[0].mxu0
    %v1127 = vadd.f32 %v1052, %v1126
    %v1128 = vpop.f32.mrb[0].mxu0
    %1129 = vdwg.mxu0
    %1130 = vmatprep.subr.mxu0 0.0
    %v1131 = vand.u32 %v817, 4294901760
    %v1132 = vsub.f32 %v817, %v1131
    %v1133 = vand.u32 %v1132, 4294901760
    %1134 = vmatpush1.xpose.msra.mxu0 %v1133
    %1135 = vmatprep.subr.mxu0 0.0
    %v1136 = vand.u32 %v819, 4294901760
    %v1137 = vsub.f32 %v819, %v1136
    %v1138 = vand.u32 %v1137, 4294901760
    %1139 = vmatpush1.xpose.msra.mxu0 %v1138
    %1140 = vmatprep.subr.mxu0 0.0
    %1141 = vmatpush1.xpose.msra.mxu0 0.0
    %1142 = vmatprep.subr.mxu0 0.0
    %1143 = vmatpush1.xpose.msra.mxu0 0.0
    %1144 = vmatprep.subr.mxu0 0.0
    %1145 = vmatpush1.xpose.msra.mxu0 0.0
    %1146 = vmatprep.subr.mxu0 0.0
    %1147 = vmatpush1.xpose.msra.mxu0 0.0
    %1148 = vmatprep.subr.mxu0 0.0
    %1149 = vmatpush1.xpose.msra.mxu0 0.0
    %1150 = vmatprep.subr.mxu0 0.0
    %1151 = vmatpush1.xpose.msra.mxu0 0.0
    %1152 = vmatprep.subr.mxu0 0.0
    %1153 = vmatpush1.xpose.msra.mxu0 0.0
    %1154 = vmatprep.subr.mxu0 0.0
    %1155 = vmatpush1.xpose.msra.mxu0 0.0
    %1156 = vmatprep.subr.mxu0 0.0
    %1157 = vmatpush1.xpose.msra.mxu0 0.0
    %1158 = vmatprep.subr.mxu0 0.0
    %1159 = vmatpush1.xpose.msra.mxu0 0.0
    %1160 = vmatprep.subr.mxu0 0.0
    %1161 = vmatpush1.xpose.msra.mxu0 0.0
    %1162 = vmatprep.subr.mxu0 0.0
    %1163 = vmatpush1.xpose.msra.mxu0 0.0
    %1164 = vmatprep.subr.mxu0 0.0
    %1165 = vmatpush1.xpose.msra.mxu0 0.0
    %1166 = vmatprep.subr.mxu0 0.0
    %1167 = vmatpush1.xpose.msra.mxu0 0.0
    %1168 = vmatprep.subr.mxu0 0.0
    %1169 = vmatpush1.xpose.msra.mxu0 0.0
    %1170 = vmatprep.subr.mxu0 0.0
    %1171 = vmatpush1.xpose.msra.mxu0 0.0
    %1172 = vmatprep.subr.mxu0 0.0
    %1173 = vmatpush1.xpose.msra.mxu0 0.0
    %1174 = vmatprep.subr.mxu0 0.0
    %1175 = vmatpush1.xpose.msra.mxu0 0.0
    %1176 = vmatprep.subr.mxu0 0.0
    %1177 = vmatpush1.xpose.msra.mxu0 0.0
    %1178 = vmatprep.subr.mxu0 0.0
    %1179 = vmatpush1.xpose.msra.mxu0 0.0
    %1180 = vmatprep.subr.mxu0 0.0
    %1181 = vmatpush1.xpose.msra.mxu0 0.0
    %1182 = vmatprep.subr.mxu0 0.0
    %1183 = vmatpush1.xpose.msra.mxu0 0.0
    %1184 = vmatprep.subr.mxu0 0.0
    %1185 = vmatpush1.xpose.msra.mxu0 0.0
    %1186 = vmatprep.subr.mxu0 0.0
    %1187 = vmatpush1.xpose.msra.mxu0 0.0
    %1188 = vmatprep.subr.mxu0 0.0
    %1189 = vmatpush1.xpose.msra.mxu0 0.0
    %1190 = vmatprep.subr.mxu0 0.0
    %1191 = vmatpush1.xpose.msra.mxu0 0.0
    %1192 = vmatprep.subr.mxu0 0.0
    %1193 = vmatpush1.xpose.msra.mxu0 0.0
    %1194 = vmatprep.subr.mxu0 0.0
    %1195 = vmatpush1.xpose.msra.mxu0 0.0
    %1196 = vmatprep.subr.mxu0 0.0
    %1197 = vmatpush1.xpose.msra.mxu0 0.0
    %1198 = vmatprep.subr.mxu0 0.0
    %1199 = vmatpush1.xpose.msra.mxu0 0.0
    %1200 = vmatprep.mubr.f32.mxu0 0.0
    %v1201 = vand.u32 %v815, 4294901760
    %1202 = vmatmul.mubr.f32.gmra.mrb[0].mxu0 %v1201
    %v1203 = vpop.f32.mrb[0].mxu0
    %v1204 = vadd.f32 %v1127, %v1203
    %v1205 = vpop.f32.mrb[0].mxu0
    %1206 = vdwg.mxu0
    %1207 = vmatprep.subr.mxu0 0.0
    %v1208 = vand.u32 %v817, 4294901760
    %1209 = vmatpush1.xpose.msra.mxu0 %v1208
    %1210 = vmatprep.subr.mxu0 0.0
    %v1211 = vand.u32 %v819, 4294901760
    %1212 = vmatpush1.xpose.msra.mxu0 %v1211
    %1213 = vmatprep.subr.mxu0 0.0
    %1214 = vmatpush1.xpose.msra.mxu0 0.0
    %1215 = vmatprep.subr.mxu0 0.0
    %1216 = vmatpush1.xpose.msra.mxu0 0.0
    %1217 = vmatprep.subr.mxu0 0.0
    %1218 = vmatpush1.xpose.msra.mxu0 0.0
    %1219 = vmatprep.subr.mxu0 0.0
    %1220 = vmatpush1.xpose.msra.mxu0 0.0
    %1221 = vmatprep.subr.mxu0 0.0
    %1222 = vmatpush1.xpose.msra.mxu0 0.0
    %1223 = vmatprep.subr.mxu0 0.0
    %1224 = vmatpush1.xpose.msra.mxu0 0.0
    %1225 = vmatprep.subr.mxu0 0.0
    %1226 = vmatpush1.xpose.msra.mxu0 0.0
    %1227 = vmatprep.subr.mxu0 0.0
    %1228 = vmatpush1.xpose.msra.mxu0 0.0
    %1229 = vmatprep.subr.mxu0 0.0
    %1230 = vmatpush1.xpose.msra.mxu0 0.0
    %1231 = vmatprep.subr.mxu0 0.0
    %1232 = vmatpush1.xpose.msra.mxu0 0.0
    %1233 = vmatprep.subr.mxu0 0.0
    %1234 = vmatpush1.xpose.msra.mxu0 0.0
    %1235 = vmatprep.subr.mxu0 0.0
    %1236 = vmatpush1.xpose.msra.mxu0 0.0
    %1237 = vmatprep.subr.mxu0 0.0
    %1238 = vmatpush1.xpose.msra.mxu0 0.0
    %1239 = vmatprep.subr.mxu0 0.0
    %1240 = vmatpush1.xpose.msra.mxu0 0.0
    %1241 = vmatprep.subr.mxu0 0.0
    %1242 = vmatpush1.xpose.msra.mxu0 0.0
    %1243 = vmatprep.subr.mxu0 0.0
    %1244 = vmatpush1.xpose.msra.mxu0 0.0
    %1245 = vmatprep.subr.mxu0 0.0
    %1246 = vmatpush1.xpose.msra.mxu0 0.0
    %1247 = vmatprep.subr.mxu0 0.0
    %1248 = vmatpush1.xpose.msra.mxu0 0.0
    %1249 = vmatprep.subr.mxu0 0.0
    %1250 = vmatpush1.xpose.msra.mxu0 0.0
    %1251 = vmatprep.subr.mxu0 0.0
    %1252 = vmatpush1.xpose.msra.mxu0 0.0
    %1253 = vmatprep.subr.mxu0 0.0
    %1254 = vmatpush1.xpose.msra.mxu0 0.0
    %1255 = vmatprep.subr.mxu0 0.0
    %1256 = vmatpush1.xpose.msra.mxu0 0.0
    %1257 = vmatprep.subr.mxu0 0.0
    %1258 = vmatpush1.xpose.msra.mxu0 0.0
    %1259 = vmatprep.subr.mxu0 0.0
    %1260 = vmatpush1.xpose.msra.mxu0 0.0
    %1261 = vmatprep.subr.mxu0 0.0
    %1262 = vmatpush1.xpose.msra.mxu0 0.0
    %1263 = vmatprep.subr.mxu0 0.0
    %1264 = vmatpush1.xpose.msra.mxu0 0.0
    %1265 = vmatprep.subr.mxu0 0.0
    %1266 = vmatpush1.xpose.msra.mxu0 0.0
    %1267 = vmatprep.subr.mxu0 0.0
    %1268 = vmatpush1.xpose.msra.mxu0 0.0
    %1269 = vmatprep.subr.mxu0 0.0
    %1270 = vmatpush1.xpose.msra.mxu0 0.0
    %1271 = vmatprep.subr.mxu0 0.0
    %1272 = vmatpush1.xpose.msra.mxu0 0.0
    %1273 = vmatprep.mubr.f32.mxu0 0.0
    %v1274 = vand.u32 %v815, 4294901760
    %1275 = vmatmul.mubr.f32.gmra.mrb[0].mxu0 %v1274
    %v1276 = vpop.f32.mrb[0].mxu0
    %v1277 = vadd.f32 %v1204, %v1276
    %v1278 = vpop.f32.mrb[0].mxu0
    %1279 = vdwg.mxu0
    %v1280 = vlaneseq
    %v1281 = vshrl.u32 %v1280, 7
    %v1282 = vsub.s32 0, %v1281
    %v1283 = vrot.slane %v212, %v1282
    %1285 = vbcast.lane.b32.xlu0 %v1283, 256
    %v1286 = vpop.permute.xlu0 %1285
    %v1287 = vlaneseq
    %v1288 = vshrl.u32 %v1287, 7
    %v1289 = vsub.s32 1, %v1288
    %v1290 = vrot.slane %v212, %v1289
    %1292 = vbcast.lane.b32.xlu0 %v1290, 256
    %v1293 = vpop.permute.xlu0 %1292
    %vm1294 = vcmp.ne.f32.partialorder %v1286, 0.0
    %vm1295 = vcmp.ne.f32.partialorder %v1293, 0.0
    %v1298 = vunpack.c.l.s4 1966171168
    %v1299 = vunpack.c.0.s8 %v1298
    %v1300 = vlaneseq
    %v1301 = vshrl.u32 %v1300, 7
    %v1302 = vsub.s32 %v1299, %v1301
    %v1303 = vrot.slane %v213, %v1302
    %v1304 = vcombine.high %v1303, %v1303
    %v1306 = vunpack.c.l.s4 1966171168
    %v1307 = vunpack.c.0.s8 %v1306
    %v1308 = vlaneseq
    %v1309 = vshrl.u32 %v1308, 7
    %v1310 = vsub.s32 %v1307, %v1309
    %v1311 = vrot.slane %v1303, %v1310
    %v1313 = vunpack.c.l.s4 1966171168
    %v1314 = vunpack.c.0.s8 %v1313
    %v1315 = vlaneseq
    %v1316 = vshrl.u32 %v1315, 7
    %v1317 = vsub.s32 %v1314, %v1316
    %v1318 = vrot.slane %v1304, %v1317
    %vm1321 = vcmp.ne.f32.partialorder %v1311, 0.0
    %vm1322 = vcmp.ne.f32.partialorder %v1318, 0.0
    %v1323 = vsel %vm1294, 1, 0
    %v1324 = vsel %vm1295, 1, 0
    %vm1325 = vcmp.eq.s32.totalorder %v1323, 1
    %vm1326 = vcmp.eq.s32.totalorder %v1324, 1
    %v1327 = vsel %vm1321, 1, 0
    %v1328 = vsel %vm1322, 1, 0
    %v1329 = vlaneseq
    %v1330 = vshrl.u32 %v1329, 7
    %v1331 = vsub.s32 0, %v1330
    %v1332 = vrot.slane %v1327, %v1331
    %v1333 = vlaneseq
    %v1334 = vshrl.u32 %v1333, 7
    %v1335 = vsub.s32 0, %v1334
    %v1336 = vrot.slane %v1328, %v1335
    %vm1337 = vcmp.eq.s32.totalorder %v1332, 1
    %vm1338 = vcmp.eq.s32.totalorder %v1336, 1
    %vm1339 = vmand %vm1325, %vm1337
    %vm1340 = vmand %vm1326, %vm1338
    %v1341 = vsel %vm1339, %v749, -10000000.0
    %v1342 = vsel %vm1340, %v1277, -10000000.0
    %vm1343 = vcmask 130048
    %v1344 = vsel %vm1343, %v1341, -inf
    %1345 = vmax.xlane.f32.xlu0 %v1344
    %v1346 = vpop.xlane.xlu0 %1345
    %v1347 = vsel %vm1343, %v1342, -inf
    %1348 = vmax.xlane.f32.xlu0 %v1347
    %v1349 = vpop.xlane.xlu0 %1348
    %v1350 = vrot.slane %v1346, 4
    %v1351 = vmax.f32 %v1346, %v1350
    %v1352 = vrot.slane %v1351, 2
    %v1353 = vmax.f32 %v1351, %v1352
    %v1354 = vrot.slane %v1353, 1
    %v1355 = vmax.f32 %v1353, %v1354
    %v1356 = vrot.slane %v1349, 4
    %v1357 = vmax.f32 %v1349, %v1356
    %v1358 = vrot.slane %v1357, 2
    %v1359 = vmax.f32 %v1357, %v1358
    %v1360 = vrot.slane %v1359, 1
    %v1361 = vmax.f32 %v1359, %v1360
    %v1362 = vsub.f32 %v1341, %v1355
    %v1363 = vsub.f32 %v1342, %v1361
    %v1364 = vmul.f32 %v1362, 1.442695
    %v1365 = vpow.pop %v1364
    %v1366 = vmul.f32 %v1363, 1.442695
    %v1367 = vpow.pop %v1366
    %v1368 = vsel %vm1343, %v1365, 0.0
    %v1369 = vrot.slane %v1368, 4
    %v1370 = vadd.f32 %v1368, %v1369
    %v1371 = vrot.slane %v1370, 2
    %v1372 = vadd.f32 %v1370, %v1371
    %v1373 = vrot.slane %v1372, 1
    %v1374 = vadd.f32 %v1372, %v1373
    %v1375 = vsel %vm1343, %v1367, 0.0
    %v1376 = vrot.slane %v1375, 4
    %v1377 = vadd.f32 %v1375, %v1376
    %v1378 = vrot.slane %v1377, 2
    %v1379 = vadd.f32 %v1377, %v1378
    %v1380 = vrot.slane %v1379, 1
    %v1381 = vadd.f32 %v1379, %v1380
    %1382 = vadd.xlane.f32.xlu0 %v1368
    %v1383 = vpop.xlane.xlu0 %1382
    %1384 = vadd.xlane.f32.xlu0 %v1375
    %v1385 = vpop.xlane.xlu0 %1384
    %v1389 = vsel %vm1343, %v1365, 0
    %1391 = vmatprep.subr.mxu0 0.0
    %v1392 = vand.u32 %v268, 4294901760
    %1393 = vmatpush1.msra.mxu0 %v1392
    %1394 = vmatprep.subr.mxu0 0.0
    %v1395 = vand.u32 %v285, 4294901760
    %1396 = vmatpush1.msra.mxu0 %v1395
    %1397 = vmatprep.subr.mxu0 0.0
    %1398 = vmatpush1.msra.mxu0 0.0
    %1399 = vmatprep.subr.mxu0 0.0
    %1400 = vmatpush1.msra.mxu0 0.0
    %1401 = vmatprep.subr.mxu0 0.0
    %1402 = vmatpush1.msra.mxu0 0.0
    %1403 = vmatprep.subr.mxu0 0.0
    %1404 = vmatpush1.msra.mxu0 0.0
    %1405 = vmatprep.subr.mxu0 0.0
    %1406 = vmatpush1.msra.mxu0 0.0
    %1407 = vmatprep.subr.mxu0 0.0
    %1408 = vmatpush1.msra.mxu0 0.0
    %1409 = vmatprep.subr.mxu0 0.0
    %1410 = vmatpush1.msra.mxu0 0.0
    %1411 = vmatprep.subr.mxu0 0.0
    %1412 = vmatpush1.msra.mxu0 0.0
    %1413 = vmatprep.subr.mxu0 0.0
    %1414 = vmatpush1.msra.mxu0 0.0
    %1415 = vmatprep.subr.mxu0 0.0
    %1416 = vmatpush1.msra.mxu0 0.0
    %1417 = vmatprep.subr.mxu0 0.0
    %1418 = vmatpush1.msra.mxu0 0.0
    %1419 = vmatprep.subr.mxu0 0.0
    %1420 = vmatpush1.msra.mxu0 0.0
    %1421 = vmatprep.subr.mxu0 0.0
    %1422 = vmatpush1.msra.mxu0 0.0
    %1423 = vmatprep.subr.mxu0 0.0
    %1424 = vmatpush1.msra.mxu0 0.0
    %1425 = vmatprep.subr.mxu0 0.0
    %1426 = vmatpush1.msra.mxu0 0.0
    %1427 = vmatprep.subr.mxu0 0.0
    %1428 = vmatpush1.msra.mxu0 0.0
    %1429 = vmatprep.subr.mxu0 0.0
    %1430 = vmatpush1.msra.mxu0 0.0
    %1431 = vmatprep.subr.mxu0 0.0
    %1432 = vmatpush1.msra.mxu0 0.0
    %1433 = vmatprep.subr.mxu0 0.0
    %1434 = vmatpush1.msra.mxu0 0.0
    %1435 = vmatprep.subr.mxu0 0.0
    %1436 = vmatpush1.msra.mxu0 0.0
    %1437 = vmatprep.subr.mxu0 0.0
    %1438 = vmatpush1.msra.mxu0 0.0
    %1439 = vmatprep.subr.mxu0 0.0
    %1440 = vmatpush1.msra.mxu0 0.0
    %1441 = vmatprep.subr.mxu0 0.0
    %1442 = vmatpush1.msra.mxu0 0.0
    %1443 = vmatprep.subr.mxu0 0.0
    %1444 = vmatpush1.msra.mxu0 0.0
    %1445 = vmatprep.subr.mxu0 0.0
    %1446 = vmatpush1.msra.mxu0 0.0
    %1447 = vmatprep.subr.mxu0 0.0
    %1448 = vmatpush1.msra.mxu0 0.0
    %1449 = vmatprep.subr.mxu0 0.0
    %1450 = vmatpush1.msra.mxu0 0.0
    %1451 = vmatprep.subr.mxu0 0.0
    %1452 = vmatpush1.msra.mxu0 0.0
    %1453 = vmatprep.subr.mxu0 0.0
    %1454 = vmatpush1.msra.mxu0 0.0
    %1455 = vmatprep.subr.mxu0 0.0
    %1456 = vmatpush1.msra.mxu0 0.0
    %1457 = vmatprep.mubr.f32.mxu0 0.0
    %v1458 = vand.u32 %v1389, 4294901760
    %v1459 = vsub.f32 %v1389, %v1458
    %v1460 = vand.u32 %v1459, 4294901760
    %v1461 = vsub.f32 %v1459, %v1460
    %v1462 = vand.u32 %v1461, 4294901760
    %1463 = vmatmul.mubr.f32.gmra.mrb[0].mxu0 %v1462
    %v1464 = vpop.f32.mrb[0].mxu0
    %v1465 = vadd.f32 0.0, %v1464
    %v1466 = vpop.f32.mrb[0].mxu0
    %1467 = vdwg.mxu0
    %1468 = vmatprep.subr.mxu0 0.0
    %v1469 = vand.u32 %v268, 4294901760
    %v1470 = vsub.f32 %v268, %v1469
    %v1471 = vand.u32 %v1470, 4294901760
    %v1472 = vsub.f32 %v1470, %v1471
    %v1473 = vand.u32 %v1472, 4294901760
    %1474 = vmatpush1.msra.mxu0 %v1473
    %1475 = vmatprep.subr.mxu0 0.0
    %v1476 = vand.u32 %v285, 4294901760
    %v1477 = vsub.f32 %v285, %v1476
    %v1478 = vand.u32 %v1477, 4294901760
    %v1479 = vsub.f32 %v1477, %v1478
    %v1480 = vand.u32 %v1479, 4294901760
    %1481 = vmatpush1.msra.mxu0 %v1480
    %1482 = vmatprep.subr.mxu0 0.0
    %1483 = vmatpush1.msra.mxu0 0.0
    %1484 = vmatprep.subr.mxu0 0.0
    %1485 = vmatpush1.msra.mxu0 0.0
    %1486 = vmatprep.subr.mxu0 0.0
    %1487 = vmatpush1.msra.mxu0 0.0
    %1488 = vmatprep.subr.mxu0 0.0
    %1489 = vmatpush1.msra.mxu0 0.0
    %1490 = vmatprep.subr.mxu0 0.0
    %1491 = vmatpush1.msra.mxu0 0.0
    %1492 = vmatprep.subr.mxu0 0.0
    %1493 = vmatpush1.msra.mxu0 0.0
    %1494 = vmatprep.subr.mxu0 0.0
    %1495 = vmatpush1.msra.mxu0 0.0
    %1496 = vmatprep.subr.mxu0 0.0
    %1497 = vmatpush1.msra.mxu0 0.0
    %1498 = vmatprep.subr.mxu0 0.0
    %1499 = vmatpush1.msra.mxu0 0.0
    %1500 = vmatprep.subr.mxu0 0.0
    %1501 = vmatpush1.msra.mxu0 0.0
    %1502 = vmatprep.subr.mxu0 0.0
    %1503 = vmatpush1.msra.mxu0 0.0
    %1504 = vmatprep.subr.mxu0 0.0
    %1505 = vmatpush1.msra.mxu0 0.0
    %1506 = vmatprep.subr.mxu0 0.0
    %1507 = vmatpush1.msra.mxu0 0.0
    %1508 = vmatprep.subr.mxu0 0.0
    %1509 = vmatpush1.msra.mxu0 0.0
    %1510 = vmatprep.subr.mxu0 0.0
    %1511 = vmatpush1.msra.mxu0 0.0
    %1512 = vmatprep.subr.mxu0 0.0
    %1513 = vmatpush1.msra.mxu0 0.0
    %1514 = vmatprep.subr.mxu0 0.0
    %1515 = vmatpush1.msra.mxu0 0.0
    %1516 = vmatprep.subr.mxu0 0.0
    %1517 = vmatpush1.msra.mxu0 0.0
    %1518 = vmatprep.subr.mxu0 0.0
    %1519 = vmatpush1.msra.mxu0 0.0
    %1520 = vmatprep.subr.mxu0 0.0
    %1521 = vmatpush1.msra.mxu0 0.0
    %1522 = vmatprep.subr.mxu0 0.0
    %1523 = vmatpush1.msra.mxu0 0.0
    %1524 = vmatprep.subr.mxu0 0.0
    %1525 = vmatpush1.msra.mxu0 0.0
    %1526 = vmatprep.subr.mxu0 0.0
    %1527 = vmatpush1.msra.mxu0 0.0
    %1528 = vmatprep.subr.mxu0 0.0
    %1529 = vmatpush1.msra.mxu0 0.0
    %1530 = vmatprep.subr.mxu0 0.0
    %1531 = vmatpush1.msra.mxu0 0.0
    %1532 = vmatprep.subr.mxu0 0.0
    %1533 = vmatpush1.msra.mxu0 0.0
    %1534 = vmatprep.subr.mxu0 0.0
    %1535 = vmatpush1.msra.mxu0 0.0
    %1536 = vmatprep.subr.mxu0 0.0
    %1537 = vmatpush1.msra.mxu0 0.0
    %1538 = vmatprep.subr.mxu0 0.0
    %1539 = vmatpush1.msra.mxu0 0.0
    %1540 = vmatprep.subr.mxu0 0.0
    %1541 = vmatpush1.msra.mxu0 0.0
    %1542 = vmatprep.mubr.f32.mxu0 0.0
    %v1543 = vand.u32 %v1389, 4294901760
    %1544 = vmatmul.mubr.f32.gmra.mrb[0].mxu0 %v1543
    %v1545 = vpop.f32.mrb[0].mxu0
    %v1546 = vadd.f32 %v1465, %v1545
    %v1547 = vpop.f32.mrb[0].mxu0
    %1548 = vdwg.mxu0
    %1549 = vmatprep.subr.mxu0 0.0
    %v1550 = vand.u32 %v268, 4294901760
    %v1551 = vsub.f32 %v268, %v1550
    %1552 = vmatpush1.msra.mxu0 %v1551
    %1553 = vmatprep.subr.mxu0 0.0
    %v1554 = vand.u32 %v285, 4294901760
    %v1555 = vsub.f32 %v285, %v1554
    %1556 = vmatpush1.msra.mxu0 %v1555
    %1557 = vmatprep.subr.mxu0 0.0
    %1558 = vmatpush1.msra.mxu0 0.0
    %1559 = vmatprep.subr.mxu0 0.0
    %1560 = vmatpush1.msra.mxu0 0.0
    %1561 = vmatprep.subr.mxu0 0.0
    %1562 = vmatpush1.msra.mxu0 0.0
    %1563 = vmatprep.subr.mxu0 0.0
    %1564 = vmatpush1.msra.mxu0 0.0
    %1565 = vmatprep.subr.mxu0 0.0
    %1566 = vmatpush1.msra.mxu0 0.0
    %1567 = vmatprep.subr.mxu0 0.0
    %1568 = vmatpush1.msra.mxu0 0.0
    %1569 = vmatprep.subr.mxu0 0.0
    %1570 = vmatpush1.msra.mxu0 0.0
    %1571 = vmatprep.subr.mxu0 0.0
    %1572 = vmatpush1.msra.mxu0 0.0
    %1573 = vmatprep.subr.mxu0 0.0
    %1574 = vmatpush1.msra.mxu0 0.0
    %1575 = vmatprep.subr.mxu0 0.0
    %1576 = vmatpush1.msra.mxu0 0.0
    %1577 = vmatprep.subr.mxu0 0.0
    %1578 = vmatpush1.msra.mxu0 0.0
    %1579 = vmatprep.subr.mxu0 0.0
    %1580 = vmatpush1.msra.mxu0 0.0
    %1581 = vmatprep.subr.mxu0 0.0
    %1582 = vmatpush1.msra.mxu0 0.0
    %1583 = vmatprep.subr.mxu0 0.0
    %1584 = vmatpush1.msra.mxu0 0.0
    %1585 = vmatprep.subr.mxu0 0.0
    %1586 = vmatpush1.msra.mxu0 0.0
    %1587 = vmatprep.subr.mxu0 0.0
    %1588 = vmatpush1.msra.mxu0 0.0
    %1589 = vmatprep.subr.mxu0 0.0
    %1590 = vmatpush1.msra.mxu0 0.0
    %1591 = vmatprep.subr.mxu0 0.0
    %1592 = vmatpush1.msra.mxu0 0.0
    %1593 = vmatprep.subr.mxu0 0.0
    %1594 = vmatpush1.msra.mxu0 0.0
    %1595 = vmatprep.subr.mxu0 0.0
    %1596 = vmatpush1.msra.mxu0 0.0
    %1597 = vmatprep.subr.mxu0 0.0
    %1598 = vmatpush1.msra.mxu0 0.0
    %1599 = vmatprep.subr.mxu0 0.0
    %1600 = vmatpush1.msra.mxu0 0.0
    %1601 = vmatprep.subr.mxu0 0.0
    %1602 = vmatpush1.msra.mxu0 0.0
    %1603 = vmatprep.subr.mxu0 0.0
    %1604 = vmatpush1.msra.mxu0 0.0
    %1605 = vmatprep.subr.mxu0 0.0
    %1606 = vmatpush1.msra.mxu0 0.0
    %1607 = vmatprep.subr.mxu0 0.0
    %1608 = vmatpush1.msra.mxu0 0.0
    %1609 = vmatprep.subr.mxu0 0.0
    %1610 = vmatpush1.msra.mxu0 0.0
    %1611 = vmatprep.subr.mxu0 0.0
    %1612 = vmatpush1.msra.mxu0 0.0
    %1613 = vmatprep.subr.mxu0 0.0
    %1614 = vmatpush1.msra.mxu0 0.0
    %1615 = vmatprep.subr.mxu0 0.0
    %1616 = vmatpush1.msra.mxu0 0.0
    %1617 = vmatprep.mubr.f32.mxu0 0.0
    %v1618 = vand.u32 %v1389, 4294901760
    %v1619 = vsub.f32 %v1389, %v1618
    %1620 = vmatmul.mubr.f32.gmra.mrb[0].mxu0 %v1619
    %v1621 = vpop.f32.mrb[0].mxu0
    %v1622 = vadd.f32 %v1546, %v1621
    %v1623 = vpop.f32.mrb[0].mxu0
    %1624 = vdwg.mxu0
    %1625 = vmatprep.subr.mxu0 0.0
    %v1626 = vand.u32 %v268, 4294901760
    %1627 = vmatpush1.msra.mxu0 %v1626
    %1628 = vmatprep.subr.mxu0 0.0
    %v1629 = vand.u32 %v285, 4294901760
    %1630 = vmatpush1.msra.mxu0 %v1629
    %1631 = vmatprep.subr.mxu0 0.0
    %1632 = vmatpush1.msra.mxu0 0.0
    %1633 = vmatprep.subr.mxu0 0.0
    %1634 = vmatpush1.msra.mxu0 0.0
    %1635 = vmatprep.subr.mxu0 0.0
    %1636 = vmatpush1.msra.mxu0 0.0
    %1637 = vmatprep.subr.mxu0 0.0
    %1638 = vmatpush1.msra.mxu0 0.0
    %1639 = vmatprep.subr.mxu0 0.0
    %1640 = vmatpush1.msra.mxu0 0.0
    %1641 = vmatprep.subr.mxu0 0.0
    %1642 = vmatpush1.msra.mxu0 0.0
    %1643 = vmatprep.subr.mxu0 0.0
    %1644 = vmatpush1.msra.mxu0 0.0
    %1645 = vmatprep.subr.mxu0 0.0
    %1646 = vmatpush1.msra.mxu0 0.0
    %1647 = vmatprep.subr.mxu0 0.0
    %1648 = vmatpush1.msra.mxu0 0.0
    %1649 = vmatprep.subr.mxu0 0.0
    %1650 = vmatpush1.msra.mxu0 0.0
    %1651 = vmatprep.subr.mxu0 0.0
    %1652 = vmatpush1.msra.mxu0 0.0
    %1653 = vmatprep.subr.mxu0 0.0
    %1654 = vmatpush1.msra.mxu0 0.0
    %1655 = vmatprep.subr.mxu0 0.0
    %1656 = vmatpush1.msra.mxu0 0.0
    %1657 = vmatprep.subr.mxu0 0.0
    %1658 = vmatpush1.msra.mxu0 0.0
    %1659 = vmatprep.subr.mxu0 0.0
    %1660 = vmatpush1.msra.mxu0 0.0
    %1661 = vmatprep.subr.mxu0 0.0
    %1662 = vmatpush1.msra.mxu0 0.0
    %1663 = vmatprep.subr.mxu0 0.0
    %1664 = vmatpush1.msra.mxu0 0.0
    %1665 = vmatprep.subr.mxu0 0.0
    %1666 = vmatpush1.msra.mxu0 0.0
    %1667 = vmatprep.subr.mxu0 0.0
    %1668 = vmatpush1.msra.mxu0 0.0
    %1669 = vmatprep.subr.mxu0 0.0
    %1670 = vmatpush1.msra.mxu0 0.0
    %1671 = vmatprep.subr.mxu0 0.0
    %1672 = vmatpush1.msra.mxu0 0.0
    %1673 = vmatprep.subr.mxu0 0.0
    %1674 = vmatpush1.msra.mxu0 0.0
    %1675 = vmatprep.subr.mxu0 0.0
    %1676 = vmatpush1.msra.mxu0 0.0
    %1677 = vmatprep.subr.mxu0 0.0
    %1678 = vmatpush1.msra.mxu0 0.0
    %1679 = vmatprep.subr.mxu0 0.0
    %1680 = vmatpush1.msra.mxu0 0.0
    %1681 = vmatprep.subr.mxu0 0.0
    %1682 = vmatpush1.msra.mxu0 0.0
    %1683 = vmatprep.subr.mxu0 0.0
    %1684 = vmatpush1.msra.mxu0 0.0
    %1685 = vmatprep.subr.mxu0 0.0
    %1686 = vmatpush1.msra.mxu0 0.0
    %1687 = vmatprep.subr.mxu0 0.0
    %1688 = vmatpush1.msra.mxu0 0.0
    %1689 = vmatprep.subr.mxu0 0.0
    %1690 = vmatpush1.msra.mxu0 0.0
    %1691 = vmatprep.mubr.f32.mxu0 0.0
    %v1692 = vand.u32 %v1389, 4294901760
    %v1693 = vsub.f32 %v1389, %v1692
    %v1694 = vand.u32 %v1693, 4294901760
    %1695 = vmatmul.mubr.f32.gmra.mrb[0].mxu0 %v1694
    %v1696 = vpop.f32.mrb[0].mxu0
    %v1697 = vadd.f32 %v1622, %v1696
    %v1698 = vpop.f32.mrb[0].mxu0
    %1699 = vdwg.mxu0
    %1700 = vmatprep.subr.mxu0 0.0
    %v1701 = vand.u32 %v268, 4294901760
    %v1702 = vsub.f32 %v268, %v1701
    %v1703 = vand.u32 %v1702, 4294901760
    %1704 = vmatpush1.msra.mxu0 %v1703
    %1705 = vmatprep.subr.mxu0 0.0
    %v1706 = vand.u32 %v285, 4294901760
    %v1707 = vsub.f32 %v285, %v1706
    %v1708 = vand.u32 %v1707, 4294901760
    %1709 = vmatpush1.msra.mxu0 %v1708
    %1710 = vmatprep.subr.mxu0 0.0
    %1711 = vmatpush1.msra.mxu0 0.0
    %1712 = vmatprep.subr.mxu0 0.0
    %1713 = vmatpush1.msra.mxu0 0.0
    %1714 = vmatprep.subr.mxu0 0.0
    %1715 = vmatpush1.msra.mxu0 0.0
    %1716 = vmatprep.subr.mxu0 0.0
    %1717 = vmatpush1.msra.mxu0 0.0
    %1718 = vmatprep.subr.mxu0 0.0
    %1719 = vmatpush1.msra.mxu0 0.0
    %1720 = vmatprep.subr.mxu0 0.0
    %1721 = vmatpush1.msra.mxu0 0.0
    %1722 = vmatprep.subr.mxu0 0.0
    %1723 = vmatpush1.msra.mxu0 0.0
    %1724 = vmatprep.subr.mxu0 0.0
    %1725 = vmatpush1.msra.mxu0 0.0
    %1726 = vmatprep.subr.mxu0 0.0
    %1727 = vmatpush1.msra.mxu0 0.0
    %1728 = vmatprep.subr.mxu0 0.0
    %1729 = vmatpush1.msra.mxu0 0.0
    %1730 = vmatprep.subr.mxu0 0.0
    %1731 = vmatpush1.msra.mxu0 0.0
    %1732 = vmatprep.subr.mxu0 0.0
    %1733 = vmatpush1.msra.mxu0 0.0
    %1734 = vmatprep.subr.mxu0 0.0
    %1735 = vmatpush1.msra.mxu0 0.0
    %1736 = vmatprep.subr.mxu0 0.0
    %1737 = vmatpush1.msra.mxu0 0.0
    %1738 = vmatprep.subr.mxu0 0.0
    %1739 = vmatpush1.msra.mxu0 0.0
    %1740 = vmatprep.subr.mxu0 0.0
    %1741 = vmatpush1.msra.mxu0 0.0
    %1742 = vmatprep.subr.mxu0 0.0
    %1743 = vmatpush1.msra.mxu0 0.0
    %1744 = vmatprep.subr.mxu0 0.0
    %1745 = vmatpush1.msra.mxu0 0.0
    %1746 = vmatprep.subr.mxu0 0.0
    %1747 = vmatpush1.msra.mxu0 0.0
    %1748 = vmatprep.subr.mxu0 0.0
    %1749 = vmatpush1.msra.mxu0 0.0
    %1750 = vmatprep.subr.mxu0 0.0
    %1751 = vmatpush1.msra.mxu0 0.0
    %1752 = vmatprep.subr.mxu0 0.0
    %1753 = vmatpush1.msra.mxu0 0.0
    %1754 = vmatprep.subr.mxu0 0.0
    %1755 = vmatpush1.msra.mxu0 0.0
    %1756 = vmatprep.subr.mxu0 0.0
    %1757 = vmatpush1.msra.mxu0 0.0
    %1758 = vmatprep.subr.mxu0 0.0
    %1759 = vmatpush1.msra.mxu0 0.0
    %1760 = vmatprep.subr.mxu0 0.0
    %1761 = vmatpush1.msra.mxu0 0.0
    %1762 = vmatprep.subr.mxu0 0.0
    %1763 = vmatpush1.msra.mxu0 0.0
    %1764 = vmatprep.subr.mxu0 0.0
    %1765 = vmatpush1.msra.mxu0 0.0
    %1766 = vmatprep.subr.mxu0 0.0
    %1767 = vmatpush1.msra.mxu0 0.0
    %1768 = vmatprep.subr.mxu0 0.0
    %1769 = vmatpush1.msra.mxu0 0.0
    %1770 = vmatprep.mubr.f32.mxu0 0.0
    %v1771 = vand.u32 %v1389, 4294901760
    %1772 = vmatmul.mubr.f32.gmra.mrb[0].mxu0 %v1771
    %v1773 = vpop.f32.mrb[0].mxu0
    %v1774 = vadd.f32 %v1697, %v1773
    %v1775 = vpop.f32.mrb[0].mxu0
    %1776 = vdwg.mxu0
    %1777 = vmatprep.subr.mxu0 0.0
    %v1778 = vand.u32 %v268, 4294901760
    %1779 = vmatpush1.msra.mxu0 %v1778
    %1780 = vmatprep.subr.mxu0 0.0
    %v1781 = vand.u32 %v285, 4294901760
    %1782 = vmatpush1.msra.mxu0 %v1781
    %1783 = vmatprep.subr.mxu0 0.0
    %1784 = vmatpush1.msra.mxu0 0.0
    %1785 = vmatprep.subr.mxu0 0.0
    %1786 = vmatpush1.msra.mxu0 0.0
    %1787 = vmatprep.subr.mxu0 0.0
    %1788 = vmatpush1.msra.mxu0 0.0
    %1789 = vmatprep.subr.mxu0 0.0
    %1790 = vmatpush1.msra.mxu0 0.0
    %1791 = vmatprep.subr.mxu0 0.0
    %1792 = vmatpush1.msra.mxu0 0.0
    %1793 = vmatprep.subr.mxu0 0.0
    %1794 = vmatpush1.msra.mxu0 0.0
    %1795 = vmatprep.subr.mxu0 0.0
    %1796 = vmatpush1.msra.mxu0 0.0
    %1797 = vmatprep.subr.mxu0 0.0
    %1798 = vmatpush1.msra.mxu0 0.0
    %1799 = vmatprep.subr.mxu0 0.0
    %1800 = vmatpush1.msra.mxu0 0.0
    %1801 = vmatprep.subr.mxu0 0.0
    %1802 = vmatpush1.msra.mxu0 0.0
    %1803 = vmatprep.subr.mxu0 0.0
    %1804 = vmatpush1.msra.mxu0 0.0
    %1805 = vmatprep.subr.mxu0 0.0
    %1806 = vmatpush1.msra.mxu0 0.0
    %1807 = vmatprep.subr.mxu0 0.0
    %1808 = vmatpush1.msra.mxu0 0.0
    %1809 = vmatprep.subr.mxu0 0.0
    %1810 = vmatpush1.msra.mxu0 0.0
    %1811 = vmatprep.subr.mxu0 0.0
    %1812 = vmatpush1.msra.mxu0 0.0
    %1813 = vmatprep.subr.mxu0 0.0
    %1814 = vmatpush1.msra.mxu0 0.0
    %1815 = vmatprep.subr.mxu0 0.0
    %1816 = vmatpush1.msra.mxu0 0.0
    %1817 = vmatprep.subr.mxu0 0.0
    %1818 = vmatpush1.msra.mxu0 0.0
    %1819 = vmatprep.subr.mxu0 0.0
    %1820 = vmatpush1.msra.mxu0 0.0
    %1821 = vmatprep.subr.mxu0 0.0
    %1822 = vmatpush1.msra.mxu0 0.0
    %1823 = vmatprep.subr.mxu0 0.0
    %1824 = vmatpush1.msra.mxu0 0.0
    %1825 = vmatprep.subr.mxu0 0.0
    %1826 = vmatpush1.msra.mxu0 0.0
    %1827 = vmatprep.subr.mxu0 0.0
    %1828 = vmatpush1.msra.mxu0 0.0
    %1829 = vmatprep.subr.mxu0 0.0
    %1830 = vmatpush1.msra.mxu0 0.0
    %1831 = vmatprep.subr.mxu0 0.0
    %1832 = vmatpush1.msra.mxu0 0.0
    %1833 = vmatprep.subr.mxu0 0.0
    %1834 = vmatpush1.msra.mxu0 0.0
    %1835 = vmatprep.subr.mxu0 0.0
    %1836 = vmatpush1.msra.mxu0 0.0
    %1837 = vmatprep.subr.mxu0 0.0
    %1838 = vmatpush1.msra.mxu0 0.0
    %1839 = vmatprep.subr.mxu0 0.0
    %1840 = vmatpush1.msra.mxu0 0.0
    %1841 = vmatprep.subr.mxu0 0.0
    %1842 = vmatpush1.msra.mxu0 0.0
    %1843 = vmatprep.mubr.f32.mxu0 0.0
    %v1844 = vand.u32 %v1389, 4294901760
    %1845 = vmatmul.mubr.f32.gmra.mrb[0].mxu0 %v1844
    %v1846 = vpop.f32.mrb[0].mxu0
    %v1847 = vadd.f32 %v1774, %v1846
    %v1848 = vpop.f32.mrb[0].mxu0
    %1849 = vdwg.mxu0
    %v1853 = vsel %vm1343, %v1367, 0
    %1855 = vmatprep.subr.mxu0 0.0
    %v1856 = vand.u32 %v797, 4294901760
    %1857 = vmatpush1.msra.mxu0 %v1856
    %1858 = vmatprep.subr.mxu0 0.0
    %v1859 = vand.u32 %v814, 4294901760
    %1860 = vmatpush1.msra.mxu0 %v1859
    %1861 = vmatprep.subr.mxu0 0.0
    %1862 = vmatpush1.msra.mxu0 0.0
    %1863 = vmatprep.subr.mxu0 0.0
    %1864 = vmatpush1.msra.mxu0 0.0
    %1865 = vmatprep.subr.mxu0 0.0
    %1866 = vmatpush1.msra.mxu0 0.0
    %1867 = vmatprep.subr.mxu0 0.0
    %1868 = vmatpush1.msra.mxu0 0.0
    %1869 = vmatprep.subr.mxu0 0.0
    %1870 = vmatpush1.msra.mxu0 0.0
    %1871 = vmatprep.subr.mxu0 0.0
    %1872 = vmatpush1.msra.mxu0 0.0
    %1873 = vmatprep.subr.mxu0 0.0
    %1874 = vmatpush1.msra.mxu0 0.0
    %1875 = vmatprep.subr.mxu0 0.0
    %1876 = vmatpush1.msra.mxu0 0.0
    %1877 = vmatprep.subr.mxu0 0.0
    %1878 = vmatpush1.msra.mxu0 0.0
    %1879 = vmatprep.subr.mxu0 0.0
    %1880 = vmatpush1.msra.mxu0 0.0
    %1881 = vmatprep.subr.mxu0 0.0
    %1882 = vmatpush1.msra.mxu0 0.0
    %1883 = vmatprep.subr.mxu0 0.0
    %1884 = vmatpush1.msra.mxu0 0.0
    %1885 = vmatprep.subr.mxu0 0.0
    %1886 = vmatpush1.msra.mxu0 0.0
    %1887 = vmatprep.subr.mxu0 0.0
    %1888 = vmatpush1.msra.mxu0 0.0
    %1889 = vmatprep.subr.mxu0 0.0
    %1890 = vmatpush1.msra.mxu0 0.0
    %1891 = vmatprep.subr.mxu0 0.0
    %1892 = vmatpush1.msra.mxu0 0.0
    %1893 = vmatprep.subr.mxu0 0.0
    %1894 = vmatpush1.msra.mxu0 0.0
    %1895 = vmatprep.subr.mxu0 0.0
    %1896 = vmatpush1.msra.mxu0 0.0
    %1897 = vmatprep.subr.mxu0 0.0
    %1898 = vmatpush1.msra.mxu0 0.0
    %1899 = vmatprep.subr.mxu0 0.0
    %1900 = vmatpush1.msra.mxu0 0.0
    %1901 = vmatprep.subr.mxu0 0.0
    %1902 = vmatpush1.msra.mxu0 0.0
    %1903 = vmatprep.subr.mxu0 0.0
    %1904 = vmatpush1.msra.mxu0 0.0
    %1905 = vmatprep.subr.mxu0 0.0
    %1906 = vmatpush1.msra.mxu0 0.0
    %1907 = vmatprep.subr.mxu0 0.0
    %1908 = vmatpush1.msra.mxu0 0.0
    %1909 = vmatprep.subr.mxu0 0.0
    %1910 = vmatpush1.msra.mxu0 0.0
    %1911 = vmatprep.subr.mxu0 0.0
    %1912 = vmatpush1.msra.mxu0 0.0
    %1913 = vmatprep.subr.mxu0 0.0
    %1914 = vmatpush1.msra.mxu0 0.0
    %1915 = vmatprep.subr.mxu0 0.0
    %1916 = vmatpush1.msra.mxu0 0.0
    %1917 = vmatprep.subr.mxu0 0.0
    %1918 = vmatpush1.msra.mxu0 0.0
    %1919 = vmatprep.subr.mxu0 0.0
    %1920 = vmatpush1.msra.mxu0 0.0
    %1921 = vmatprep.mubr.f32.mxu0 0.0
    %v1922 = vand.u32 %v1853, 4294901760
    %v1923 = vsub.f32 %v1853, %v1922
    %v1924 = vand.u32 %v1923, 4294901760
    %v1925 = vsub.f32 %v1923, %v1924
    %v1926 = vand.u32 %v1925, 4294901760
    %1927 = vmatmul.mubr.f32.gmra.mrb[0].mxu0 %v1926
    %v1928 = vpop.f32.mrb[0].mxu0
    %v1929 = vadd.f32 0.0, %v1928
    %v1930 = vpop.f32.mrb[0].mxu0
    %1931 = vdwg.mxu0
    %1932 = vmatprep.subr.mxu0 0.0
    %v1933 = vand.u32 %v797, 4294901760
    %v1934 = vsub.f32 %v797, %v1933
    %v1935 = vand.u32 %v1934, 4294901760
    %v1936 = vsub.f32 %v1934, %v1935
    %v1937 = vand.u32 %v1936, 4294901760
    %1938 = vmatpush1.msra.mxu0 %v1937
    %1939 = vmatprep.subr.mxu0 0.0
    %v1940 = vand.u32 %v814, 4294901760
    %v1941 = vsub.f32 %v814, %v1940
    %v1942 = vand.u32 %v1941, 4294901760
    %v1943 = vsub.f32 %v1941, %v1942
    %v1944 = vand.u32 %v1943, 4294901760
    %1945 = vmatpush1.msra.mxu0 %v1944
    %1946 = vmatprep.subr.mxu0 0.0
    %1947 = vmatpush1.msra.mxu0 0.0
    %1948 = vmatprep.subr.mxu0 0.0
    %1949 = vmatpush1.msra.mxu0 0.0
    %1950 = vmatprep.subr.mxu0 0.0
    %1951 = vmatpush1.msra.mxu0 0.0
    %1952 = vmatprep.subr.mxu0 0.0
    %1953 = vmatpush1.msra.mxu0 0.0
    %1954 = vmatprep.subr.mxu0 0.0
    %1955 = vmatpush1.msra.mxu0 0.0
    %1956 = vmatprep.subr.mxu0 0.0
    %1957 = vmatpush1.msra.mxu0 0.0
    %1958 = vmatprep.subr.mxu0 0.0
    %1959 = vmatpush1.msra.mxu0 0.0
    %1960 = vmatprep.subr.mxu0 0.0
    %1961 = vmatpush1.msra.mxu0 0.0
    %1962 = vmatprep.subr.mxu0 0.0
    %1963 = vmatpush1.msra.mxu0 0.0
    %1964 = vmatprep.subr.mxu0 0.0
    %1965 = vmatpush1.msra.mxu0 0.0
    %1966 = vmatprep.subr.mxu0 0.0
    %1967 = vmatpush1.msra.mxu0 0.0
    %1968 = vmatprep.subr.mxu0 0.0
    %1969 = vmatpush1.msra.mxu0 0.0
    %1970 = vmatprep.subr.mxu0 0.0
    %1971 = vmatpush1.msra.mxu0 0.0
    %1972 = vmatprep.subr.mxu0 0.0
    %1973 = vmatpush1.msra.mxu0 0.0
    %1974 = vmatprep.subr.mxu0 0.0
    %1975 = vmatpush1.msra.mxu0 0.0
    %1976 = vmatprep.subr.mxu0 0.0
    %1977 = vmatpush1.msra.mxu0 0.0
    %1978 = vmatprep.subr.mxu0 0.0
    %1979 = vmatpush1.msra.mxu0 0.0
    %1980 = vmatprep.subr.mxu0 0.0
    %1981 = vmatpush1.msra.mxu0 0.0
    %1982 = vmatprep.subr.mxu0 0.0
    %1983 = vmatpush1.msra.mxu0 0.0
    %1984 = vmatprep.subr.mxu0 0.0
    %1985 = vmatpush1.msra.mxu0 0.0
    %1986 = vmatprep.subr.mxu0 0.0
    %1987 = vmatpush1.msra.mxu0 0.0
    %1988 = vmatprep.subr.mxu0 0.0
    %1989 = vmatpush1.msra.mxu0 0.0
    %1990 = vmatprep.subr.mxu0 0.0
    %1991 = vmatpush1.msra.mxu0 0.0
    %1992 = vmatprep.subr.mxu0 0.0
    %1993 = vmatpush1.msra.mxu0 0.0
    %1994 = vmatprep.subr.mxu0 0.0
    %1995 = vmatpush1.msra.mxu0 0.0
    %1996 = vmatprep.subr.mxu0 0.0
    %1997 = vmatpush1.msra.mxu0 0.0
    %1998 = vmatprep.subr.mxu0 0.0
    %1999 = vmatpush1.msra.mxu0 0.0
    %2000 = vmatprep.subr.mxu0 0.0
    %2001 = vmatpush1.msra.mxu0 0.0
    %2002 = vmatprep.subr.mxu0 0.0
    %2003 = vmatpush1.msra.mxu0 0.0
    %2004 = vmatprep.subr.mxu0 0.0
    %2005 = vmatpush1.msra.mxu0 0.0
    %2006 = vmatprep.mubr.f32.mxu0 0.0
    %v2007 = vand.u32 %v1853, 4294901760
    %2008 = vmatmul.mubr.f32.gmra.mrb[0].mxu0 %v2007
    %v2009 = vpop.f32.mrb[0].mxu0
    %v2010 = vadd.f32 %v1929, %v2009
    %v2011 = vpop.f32.mrb[0].mxu0
    %2012 = vdwg.mxu0
    %2013 = vmatprep.subr.mxu0 0.0
    %v2014 = vand.u32 %v797, 4294901760
    %v2015 = vsub.f32 %v797, %v2014
    %2016 = vmatpush1.msra.mxu0 %v2015
    %2017 = vmatprep.subr.mxu0 0.0
    %v2018 = vand.u32 %v814, 4294901760
    %v2019 = vsub.f32 %v814, %v2018
    %2020 = vmatpush1.msra.mxu0 %v2019
    %2021 = vmatprep.subr.mxu0 0.0
    %2022 = vmatpush1.msra.mxu0 0.0
    %2023 = vmatprep.subr.mxu0 0.0
    %2024 = vmatpush1.msra.mxu0 0.0
    %2025 = vmatprep.subr.mxu0 0.0
    %2026 = vmatpush1.msra.mxu0 0.0
    %2027 = vmatprep.subr.mxu0 0.0
    %2028 = vmatpush1.msra.mxu0 0.0
    %2029 = vmatprep.subr.mxu0 0.0
    %2030 = vmatpush1.msra.mxu0 0.0
    %2031 = vmatprep.subr.mxu0 0.0
    %2032 = vmatpush1.msra.mxu0 0.0
    %2033 = vmatprep.subr.mxu0 0.0
    %2034 = vmatpush1.msra.mxu0 0.0
    %2035 = vmatprep.subr.mxu0 0.0
    %2036 = vmatpush1.msra.mxu0 0.0
    %2037 = vmatprep.subr.mxu0 0.0
    %2038 = vmatpush1.msra.mxu0 0.0
    %2039 = vmatprep.subr.mxu0 0.0
    %2040 = vmatpush1.msra.mxu0 0.0
    %2041 = vmatprep.subr.mxu0 0.0
    %2042 = vmatpush1.msra.mxu0 0.0
    %2043 = vmatprep.subr.mxu0 0.0
    %2044 = vmatpush1.msra.mxu0 0.0
    %2045 = vmatprep.subr.mxu0 0.0
    %2046 = vmatpush1.msra.mxu0 0.0
    %2047 = vmatprep.subr.mxu0 0.0
    %2048 = vmatpush1.msra.mxu0 0.0
    %2049 = vmatprep.subr.mxu0 0.0
    %2050 = vmatpush1.msra.mxu0 0.0
    %2051 = vmatprep.subr.mxu0 0.0
    %2052 = vmatpush1.msra.mxu0 0.0
    %2053 = vmatprep.subr.mxu0 0.0
    %2054 = vmatpush1.msra.mxu0 0.0
    %2055 = vmatprep.subr.mxu0 0.0
    %2056 = vmatpush1.msra.mxu0 0.0
    %2057 = vmatprep.subr.mxu0 0.0
    %2058 = vmatpush1.msra.mxu0 0.0
    %2059 = vmatprep.subr.mxu0 0.0
    %2060 = vmatpush1.msra.mxu0 0.0
    %2061 = vmatprep.subr.mxu0 0.0
    %2062 = vmatpush1.msra.mxu0 0.0
    %2063 = vmatprep.subr.mxu0 0.0
    %2064 = vmatpush1.msra.mxu0 0.0
    %2065 = vmatprep.subr.mxu0 0.0
    %2066 = vmatpush1.msra.mxu0 0.0
    %2067 = vmatprep.subr.mxu0 0.0
    %2068 = vmatpush1.msra.mxu0 0.0
    %2069 = vmatprep.subr.mxu0 0.0
    %2070 = vmatpush1.msra.mxu0 0.0
    %2071 = vmatprep.subr.mxu0 0.0
    %2072 = vmatpush1.msra.mxu0 0.0
    %2073 = vmatprep.subr.mxu0 0.0
    %2074 = vmatpush1.msra.mxu0 0.0
    %2075 = vmatprep.subr.mxu0 0.0
    %2076 = vmatpush1.msra.mxu0 0.0
    %2077 = vmatprep.subr.mxu0 0.0
    %2078 = vmatpush1.msra.mxu0 0.0
    %2079 = vmatprep.subr.mxu0 0.0
    %2080 = vmatpush1.msra.mxu0 0.0
    %2081 = vmatprep.mubr.f32.mxu0 0.0
    %v2082 = vand.u32 %v1853, 4294901760
    %v2083 = vsub.f32 %v1853, %v2082
    %2084 = vmatmul.mubr.f32.gmra.mrb[0].mxu0 %v2083
    %v2085 = vpop.f32.mrb[0].mxu0
    %v2086 = vadd.f32 %v2010, %v2085
    %v2087 = vpop.f32.mrb[0].mxu0
    %2088 = vdwg.mxu0
    %2089 = vmatprep.subr.mxu0 0.0
    %v2090 = vand.u32 %v797, 4294901760
    %2091 = vmatpush1.msra.mxu0 %v2090
    %2092 = vmatprep.subr.mxu0 0.0
    %v2093 = vand.u32 %v814, 4294901760
    %2094 = vmatpush1.msra.mxu0 %v2093
    %2095 = vmatprep.subr.mxu0 0.0
    %2096 = vmatpush1.msra.mxu0 0.0
    %2097 = vmatprep.subr.mxu0 0.0
    %2098 = vmatpush1.msra.mxu0 0.0
    %2099 = vmatprep.subr.mxu0 0.0
    %2100 = vmatpush1.msra.mxu0 0.0
    %2101 = vmatprep.subr.mxu0 0.0
    %2102 = vmatpush1.msra.mxu0 0.0
    %2103 = vmatprep.subr.mxu0 0.0
    %2104 = vmatpush1.msra.mxu0 0.0
    %2105 = vmatprep.subr.mxu0 0.0
    %2106 = vmatpush1.msra.mxu0 0.0
    %2107 = vmatprep.subr.mxu0 0.0
    %2108 = vmatpush1.msra.mxu0 0.0
    %2109 = vmatprep.subr.mxu0 0.0
    %2110 = vmatpush1.msra.mxu0 0.0
    %2111 = vmatprep.subr.mxu0 0.0
    %2112 = vmatpush1.msra.mxu0 0.0
    %2113 = vmatprep.subr.mxu0 0.0
    %2114 = vmatpush1.msra.mxu0 0.0
    %2115 = vmatprep.subr.mxu0 0.0
    %2116 = vmatpush1.msra.mxu0 0.0
    %2117 = vmatprep.subr.mxu0 0.0
    %2118 = vmatpush1.msra.mxu0 0.0
    %2119 = vmatprep.subr.mxu0 0.0
    %2120 = vmatpush1.msra.mxu0 0.0
    %2121 = vmatprep.subr.mxu0 0.0
    %2122 = vmatpush1.msra.mxu0 0.0
    %2123 = vmatprep.subr.mxu0 0.0
    %2124 = vmatpush1.msra.mxu0 0.0
    %2125 = vmatprep.subr.mxu0 0.0
    %2126 = vmatpush1.msra.mxu0 0.0
    %2127 = vmatprep.subr.mxu0 0.0
    %2128 = vmatpush1.msra.mxu0 0.0
    %2129 = vmatprep.subr.mxu0 0.0
    %2130 = vmatpush1.msra.mxu0 0.0
    %2131 = vmatprep.subr.mxu0 0.0
    %2132 = vmatpush1.msra.mxu0 0.0
    %2133 = vmatprep.subr.mxu0 0.0
    %2134 = vmatpush1.msra.mxu0 0.0
    %2135 = vmatprep.subr.mxu0 0.0
    %2136 = vmatpush1.msra.mxu0 0.0
    %2137 = vmatprep.subr.mxu0 0.0
    %2138 = vmatpush1.msra.mxu0 0.0
    %2139 = vmatprep.subr.mxu0 0.0
    %2140 = vmatpush1.msra.mxu0 0.0
    %2141 = vmatprep.subr.mxu0 0.0
    %2142 = vmatpush1.msra.mxu0 0.0
    %2143 = vmatprep.subr.mxu0 0.0
    %2144 = vmatpush1.msra.mxu0 0.0
    %2145 = vmatprep.subr.mxu0 0.0
    %2146 = vmatpush1.msra.mxu0 0.0
    %2147 = vmatprep.subr.mxu0 0.0
    %2148 = vmatpush1.msra.mxu0 0.0
    %2149 = vmatprep.subr.mxu0 0.0
    %2150 = vmatpush1.msra.mxu0 0.0
    %2151 = vmatprep.subr.mxu0 0.0
    %2152 = vmatpush1.msra.mxu0 0.0
    %2153 = vmatprep.subr.mxu0 0.0
    %2154 = vmatpush1.msra.mxu0 0.0
    %2155 = vmatprep.mubr.f32.mxu0 0.0
    %v2156 = vand.u32 %v1853, 4294901760
    %v2157 = vsub.f32 %v1853, %v2156
    %v2158 = vand.u32 %v2157, 4294901760
    %2159 = vmatmul.mubr.f32.gmra.mrb[0].mxu0 %v2158
    %v2160 = vpop.f32.mrb[0].mxu0
    %v2161 = vadd.f32 %v2086, %v2160
    %v2162 = vpop.f32.mrb[0].mxu0
    %2163 = vdwg.mxu0
    %2164 = vmatprep.subr.mxu0 0.0
    %v2165 = vand.u32 %v797, 4294901760
    %v2166 = vsub.f32 %v797, %v2165
    %v2167 = vand.u32 %v2166, 4294901760
    %2168 = vmatpush1.msra.mxu0 %v2167
    %2169 = vmatprep.subr.mxu0 0.0
    %v2170 = vand.u32 %v814, 4294901760
    %v2171 = vsub.f32 %v814, %v2170
    %v2172 = vand.u32 %v2171, 4294901760
    %2173 = vmatpush1.msra.mxu0 %v2172
    %2174 = vmatprep.subr.mxu0 0.0
    %2175 = vmatpush1.msra.mxu0 0.0
    %2176 = vmatprep.subr.mxu0 0.0
    %2177 = vmatpush1.msra.mxu0 0.0
    %2178 = vmatprep.subr.mxu0 0.0
    %2179 = vmatpush1.msra.mxu0 0.0
    %2180 = vmatprep.subr.mxu0 0.0
    %2181 = vmatpush1.msra.mxu0 0.0
    %2182 = vmatprep.subr.mxu0 0.0
    %2183 = vmatpush1.msra.mxu0 0.0
    %2184 = vmatprep.subr.mxu0 0.0
    %2185 = vmatpush1.msra.mxu0 0.0
    %2186 = vmatprep.subr.mxu0 0.0
    %2187 = vmatpush1.msra.mxu0 0.0
    %2188 = vmatprep.subr.mxu0 0.0
    %2189 = vmatpush1.msra.mxu0 0.0
    %2190 = vmatprep.subr.mxu0 0.0
    %2191 = vmatpush1.msra.mxu0 0.0
    %2192 = vmatprep.subr.mxu0 0.0
    %2193 = vmatpush1.msra.mxu0 0.0
    %2194 = vmatprep.subr.mxu0 0.0
    %2195 = vmatpush1.msra.mxu0 0.0
    %2196 = vmatprep.subr.mxu0 0.0
    %2197 = vmatpush1.msra.mxu0 0.0
    %2198 = vmatprep.subr.mxu0 0.0
    %2199 = vmatpush1.msra.mxu0 0.0
    %2200 = vmatprep.subr.mxu0 0.0
    %2201 = vmatpush1.msra.mxu0 0.0
    %2202 = vmatprep.subr.mxu0 0.0
    %2203 = vmatpush1.msra.mxu0 0.0
    %2204 = vmatprep.subr.mxu0 0.0
    %2205 = vmatpush1.msra.mxu0 0.0
    %2206 = vmatprep.subr.mxu0 0.0
    %2207 = vmatpush1.msra.mxu0 0.0
    %2208 = vmatprep.subr.mxu0 0.0
    %2209 = vmatpush1.msra.mxu0 0.0
    %2210 = vmatprep.subr.mxu0 0.0
    %2211 = vmatpush1.msra.mxu0 0.0
    %2212 = vmatprep.subr.mxu0 0.0
    %2213 = vmatpush1.msra.mxu0 0.0
    %2214 = vmatprep.subr.mxu0 0.0
    %2215 = vmatpush1.msra.mxu0 0.0
    %2216 = vmatprep.subr.mxu0 0.0
    %2217 = vmatpush1.msra.mxu0 0.0
    %2218 = vmatprep.subr.mxu0 0.0
    %2219 = vmatpush1.msra.mxu0 0.0
    %2220 = vmatprep.subr.mxu0 0.0
    %2221 = vmatpush1.msra.mxu0 0.0
    %2222 = vmatprep.subr.mxu0 0.0
    %2223 = vmatpush1.msra.mxu0 0.0
    %2224 = vmatprep.subr.mxu0 0.0
    %2225 = vmatpush1.msra.mxu0 0.0
    %2226 = vmatprep.subr.mxu0 0.0
    %2227 = vmatpush1.msra.mxu0 0.0
    %2228 = vmatprep.subr.mxu0 0.0
    %2229 = vmatpush1.msra.mxu0 0.0
    %2230 = vmatprep.subr.mxu0 0.0
    %2231 = vmatpush1.msra.mxu0 0.0
    %2232 = vmatprep.subr.mxu0 0.0
    %2233 = vmatpush1.msra.mxu0 0.0
    %2234 = vmatprep.mubr.f32.mxu0 0.0
    %v2235 = vand.u32 %v1853, 4294901760
    %2236 = vmatmul.mubr.f32.gmra.mrb[0].mxu0 %v2235
    %v2237 = vpop.f32.mrb[0].mxu0
    %v2238 = vadd.f32 %v2161, %v2237
    %v2239 = vpop.f32.mrb[0].mxu0
    %2240 = vdwg.mxu0
    %2241 = vmatprep.subr.mxu0 0.0
    %v2242 = vand.u32 %v797, 4294901760
    %2243 = vmatpush1.msra.mxu0 %v2242
    %2244 = vmatprep.subr.mxu0 0.0
    %v2245 = vand.u32 %v814, 4294901760
    %2246 = vmatpush1.msra.mxu0 %v2245
    %2247 = vmatprep.subr.mxu0 0.0
    %2248 = vmatpush1.msra.mxu0 0.0
    %2249 = vmatprep.subr.mxu0 0.0
    %2250 = vmatpush1.msra.mxu0 0.0
    %2251 = vmatprep.subr.mxu0 0.0
    %2252 = vmatpush1.msra.mxu0 0.0
    %2253 = vmatprep.subr.mxu0 0.0
    %2254 = vmatpush1.msra.mxu0 0.0
    %2255 = vmatprep.subr.mxu0 0.0
    %2256 = vmatpush1.msra.mxu0 0.0
    %2257 = vmatprep.subr.mxu0 0.0
    %2258 = vmatpush1.msra.mxu0 0.0
    %2259 = vmatprep.subr.mxu0 0.0
    %2260 = vmatpush1.msra.mxu0 0.0
    %2261 = vmatprep.subr.mxu0 0.0
    %2262 = vmatpush1.msra.mxu0 0.0
    %2263 = vmatprep.subr.mxu0 0.0
    %2264 = vmatpush1.msra.mxu0 0.0
    %2265 = vmatprep.subr.mxu0 0.0
    %2266 = vmatpush1.msra.mxu0 0.0
    %2267 = vmatprep.subr.mxu0 0.0
    %2268 = vmatpush1.msra.mxu0 0.0
    %2269 = vmatprep.subr.mxu0 0.0
    %2270 = vmatpush1.msra.mxu0 0.0
    %2271 = vmatprep.subr.mxu0 0.0
    %2272 = vmatpush1.msra.mxu0 0.0
    %2273 = vmatprep.subr.mxu0 0.0
    %2274 = vmatpush1.msra.mxu0 0.0
    %2275 = vmatprep.subr.mxu0 0.0
    %2276 = vmatpush1.msra.mxu0 0.0
    %2277 = vmatprep.subr.mxu0 0.0
    %2278 = vmatpush1.msra.mxu0 0.0
    %2279 = vmatprep.subr.mxu0 0.0
    %2280 = vmatpush1.msra.mxu0 0.0
    %2281 = vmatprep.subr.mxu0 0.0
    %2282 = vmatpush1.msra.mxu0 0.0
    %2283 = vmatprep.subr.mxu0 0.0
    %2284 = vmatpush1.msra.mxu0 0.0
    %2285 = vmatprep.subr.mxu0 0.0
    %2286 = vmatpush1.msra.mxu0 0.0
    %2287 = vmatprep.subr.mxu0 0.0
    %2288 = vmatpush1.msra.mxu0 0.0
    %2289 = vmatprep.subr.mxu0 0.0
    %2290 = vmatpush1.msra.mxu0 0.0
    %2291 = vmatprep.subr.mxu0 0.0
    %2292 = vmatpush1.msra.mxu0 0.0
    %2293 = vmatprep.subr.mxu0 0.0
    %2294 = vmatpush1.msra.mxu0 0.0
    %2295 = vmatprep.subr.mxu0 0.0
    %2296 = vmatpush1.msra.mxu0 0.0
    %2297 = vmatprep.subr.mxu0 0.0
    %2298 = vmatpush1.msra.mxu0 0.0
    %2299 = vmatprep.subr.mxu0 0.0
    %2300 = vmatpush1.msra.mxu0 0.0
    %2301 = vmatprep.subr.mxu0 0.0
    %2302 = vmatpush1.msra.mxu0 0.0
    %2303 = vmatprep.subr.mxu0 0.0
    %2304 = vmatpush1.msra.mxu0 0.0
    %2305 = vmatprep.subr.mxu0 0.0
    %2306 = vmatpush1.msra.mxu0 0.0
    %2307 = vmatprep.mubr.f32.mxu0 0.0
    %v2308 = vand.u32 %v1853, 4294901760
    %2309 = vmatmul.mubr.f32.gmra.mrb[0].mxu0 %v2308
    %v2310 = vpop.f32.mrb[0].mxu0
    %v2311 = vadd.f32 %v2238, %v2310
    %v2312 = vpop.f32.mrb[0].mxu0
    %2313 = vdwg.mxu0
    %2314 = vxpose.xlu0.b32.start [1/16] %v1365, 128
    %2315 = vxpose.xlu0.b32.cont [2/16] 0.0, 128
    %2316 = vxpose.xlu0.b32.cont [3/16] 0.0, 128
    %2317 = vxpose.xlu0.b32.cont [4/16] 0.0, 128
    %2318 = vxpose.xlu0.b32.cont [5/16] 0.0, 128
    %2319 = vxpose.xlu0.b32.cont [6/16] 0.0, 128
    %2320 = vxpose.xlu0.b32.cont [7/16] 0.0, 128
    %2321 = vxpose.xlu0.b32.cont [8/16] 0.0, 128
    %2322 = vxpose.xlu0.b32.cont [9/16] 0.0, 128
    %2323 = vxpose.xlu0.b32.cont [10/16] 0.0, 128
    %2324 = vxpose.xlu0.b32.cont [11/16] 0.0, 128
    %2325 = vxpose.xlu0.b32.cont [12/16] 0.0, 128
    %2326 = vxpose.xlu0.b32.cont [13/16] 0.0, 128
    %2327 = vxpose.xlu0.b32.cont [14/16] 0.0, 128
    %2328 = vxpose.xlu0.b32.cont [15/16] 0.0, 128
    %2329 = vxpose.xlu0.b32.end [16/16] 0.0, 128
    %v2330 = vpop.trf.xlu0
    %v2331 = vpop.trf.xlu0
    %v2332 = vpop.trf.xlu0
    %v2333 = vpop.trf.xlu0
    %v2334 = vpop.trf.xlu0
    %v2335 = vpop.trf.xlu0
    %v2336 = vpop.trf.xlu0
    %v2337 = vpop.trf.xlu0
    %v2338 = vpop.trf.xlu0
    %v2339 = vpop.trf.xlu0
    %v2340 = vpop.trf.xlu0
    %v2341 = vpop.trf.xlu0
    %v2342 = vpop.trf.xlu0
    %v2343 = vpop.trf.xlu0
    %v2344 = vpop.trf.xlu0
    %v2345 = vpop.trf.xlu0
    %v2350 = vcombine.low %v76, %v85
    %v2351 = vcombine.low %v94, %v103
    %v2353 = vunpack.c.l.s4 1983009808
    %v2354 = vunpack.c.0.s8 %v2353
    %v2355 = vlaneseq
    %v2356 = vshrl.u32 %v2355, 7
    %v2357 = vsub.s32 %v2354, %v2356
    %v2358 = vrot.slane %v2350, %v2357
    %v2360 = vunpack.c.l.s4 1983009808
    %v2361 = vunpack.c.0.s8 %v2360
    %v2362 = vlaneseq
    %v2363 = vshrl.u32 %v2362, 7
    %v2364 = vsub.s32 %v2361, %v2363
    %v2365 = vrot.slane %v2351, %v2364
    %v2366 = vcombine.low %v2358, %v2365
    %vm2368 = vcmask 64512
    %v2370 = vsel %vm2368, %v2330, 0
    %v2373 = vsel %vm2368, %v2331, 0
    %2375 = vmatprep.subr.mxu0 0.0
    %v2376 = vand.u32 %v2366, 4294901760
    %2377 = vmatpush1.msra.mxu0 %v2376
    %2378 = vmatprep.subr.mxu0 0.0
    %2379 = vmatpush1.msra.mxu0 0.0
    %2380 = vmatprep.subr.mxu0 0.0
    %2381 = vmatpush1.msra.mxu0 0.0
    %2382 = vmatprep.subr.mxu0 0.0
    %2383 = vmatpush1.msra.mxu0 0.0
    %2384 = vmatprep.subr.mxu0 0.0
    %2385 = vmatpush1.msra.mxu0 0.0
    %2386 = vmatprep.subr.mxu0 0.0
    %2387 = vmatpush1.msra.mxu0 0.0
    %2388 = vmatprep.subr.mxu0 0.0
    %2389 = vmatpush1.msra.mxu0 0.0
    %2390 = vmatprep.subr.mxu0 0.0
    %2391 = vmatpush1.msra.mxu0 0.0
    %2392 = vmatprep.subr.mxu0 0.0
    %2393 = vmatpush1.msra.mxu0 0.0
    %2394 = vmatprep.subr.mxu0 0.0
    %2395 = vmatpush1.msra.mxu0 0.0
    %2396 = vmatprep.subr.mxu0 0.0
    %2397 = vmatpush1.msra.mxu0 0.0
    %2398 = vmatprep.subr.mxu0 0.0
    %2399 = vmatpush1.msra.mxu0 0.0
    %2400 = vmatprep.subr.mxu0 0.0
    %2401 = vmatpush1.msra.mxu0 0.0
    %2402 = vmatprep.subr.mxu0 0.0
    %2403 = vmatpush1.msra.mxu0 0.0
    %2404 = vmatprep.subr.mxu0 0.0
    %2405 = vmatpush1.msra.mxu0 0.0
    %2406 = vmatprep.subr.mxu0 0.0
    %2407 = vmatpush1.msra.mxu0 0.0
    %2408 = vmatprep.subr.mxu0 0.0
    %2409 = vmatpush1.msra.mxu0 0.0
    %2410 = vmatprep.subr.mxu0 0.0
    %2411 = vmatpush1.msra.mxu0 0.0
    %2412 = vmatprep.subr.mxu0 0.0
    %2413 = vmatpush1.msra.mxu0 0.0
    %2414 = vmatprep.subr.mxu0 0.0
    %2415 = vmatpush1.msra.mxu0 0.0
    %2416 = vmatprep.subr.mxu0 0.0
    %2417 = vmatpush1.msra.mxu0 0.0
    %2418 = vmatprep.subr.mxu0 0.0
    %2419 = vmatpush1.msra.mxu0 0.0
    %2420 = vmatprep.subr.mxu0 0.0
    %2421 = vmatpush1.msra.mxu0 0.0
    %2422 = vmatprep.subr.mxu0 0.0
    %2423 = vmatpush1.msra.mxu0 0.0
    %2424 = vmatprep.subr.mxu0 0.0
    %2425 = vmatpush1.msra.mxu0 0.0
    %2426 = vmatprep.subr.mxu0 0.0
    %2427 = vmatpush1.msra.mxu0 0.0
    %2428 = vmatprep.subr.mxu0 0.0
    %2429 = vmatpush1.msra.mxu0 0.0
    %2430 = vmatprep.subr.mxu0 0.0
    %2431 = vmatpush1.msra.mxu0 0.0
    %2432 = vmatprep.subr.mxu0 0.0
    %2433 = vmatpush1.msra.mxu0 0.0
    %2434 = vmatprep.subr.mxu0 0.0
    %2435 = vmatpush1.msra.mxu0 0.0
    %2436 = vmatprep.subr.mxu0 0.0
    %2437 = vmatpush1.msra.mxu0 0.0
    %2438 = vmatprep.subr.mxu0 0.0
    %2439 = vmatpush1.msra.mxu0 0.0
    %2440 = vmatprep.mubr.f32.mxu0 0.0
    %v2441 = vand.u32 %v2370, 4294901760
    %v2442 = vsub.f32 %v2370, %v2441
    %v2443 = vand.u32 %v2442, 4294901760
    %v2444 = vsub.f32 %v2442, %v2443
    %v2445 = vand.u32 %v2444, 4294901760
    %2446 = vmatmul.mubr.f32.gmra.mrb[0].mxu0 %v2445
    %v2447 = vpop.f32.mrb[0].mxu0
    %v2448 = vadd.f32 0.0, %v2447
    %v2449 = vpop.f32.mrb[0].mxu0
    %2450 = vmatprep.mubr.f32.mxu0 0.0
    %v2451 = vand.u32 %v2373, 4294901760
    %v2452 = vsub.f32 %v2373, %v2451
    %v2453 = vand.u32 %v2452, 4294901760
    %v2454 = vsub.f32 %v2452, %v2453
    %v2455 = vand.u32 %v2454, 4294901760
    %2456 = vmatmul.mubr.f32.gmra.mrb[0].mxu0 %v2455
    %v2457 = vpop.f32.mrb[0].mxu0
    %v2458 = vadd.f32 0.0, %v2457
    %v2459 = vpop.f32.mrb[0].mxu0
    %2460 = vdwg.mxu0
    %2461 = vmatprep.subr.mxu0 0.0
    %v2462 = vand.u32 %v2366, 4294901760
    %v2463 = vsub.f32 %v2366, %v2462
    %v2464 = vand.u32 %v2463, 4294901760
    %v2465 = vsub.f32 %v2463, %v2464
    %v2466 = vand.u32 %v2465, 4294901760
    %2467 = vmatpush1.msra.mxu0 %v2466
    %2468 = vmatprep.subr.mxu0 0.0
    %2469 = vmatpush1.msra.mxu0 0.0
    %2470 = vmatprep.subr.mxu0 0.0
    %2471 = vmatpush1.msra.mxu0 0.0
    %2472 = vmatprep.subr.mxu0 0.0
    %2473 = vmatpush1.msra.mxu0 0.0
    %2474 = vmatprep.subr.mxu0 0.0
    %2475 = vmatpush1.msra.mxu0 0.0
    %2476 = vmatprep.subr.mxu0 0.0
    %2477 = vmatpush1.msra.mxu0 0.0
    %2478 = vmatprep.subr.mxu0 0.0
    %2479 = vmatpush1.msra.mxu0 0.0
    %2480 = vmatprep.subr.mxu0 0.0
    %2481 = vmatpush1.msra.mxu0 0.0
    %2482 = vmatprep.subr.mxu0 0.0
    %2483 = vmatpush1.msra.mxu0 0.0
    %2484 = vmatprep.subr.mxu0 0.0
    %2485 = vmatpush1.msra.mxu0 0.0
    %2486 = vmatprep.subr.mxu0 0.0
    %2487 = vmatpush1.msra.mxu0 0.0
    %2488 = vmatprep.subr.mxu0 0.0
    %2489 = vmatpush1.msra.mxu0 0.0
    %2490 = vmatprep.subr.mxu0 0.0
    %2491 = vmatpush1.msra.mxu0 0.0
    %2492 = vmatprep.subr.mxu0 0.0
    %2493 = vmatpush1.msra.mxu0 0.0
    %2494 = vmatprep.subr.mxu0 0.0
    %2495 = vmatpush1.msra.mxu0 0.0
    %2496 = vmatprep.subr.mxu0 0.0
    %2497 = vmatpush1.msra.mxu0 0.0
    %2498 = vmatprep.subr.mxu0 0.0
    %2499 = vmatpush1.msra.mxu0 0.0
    %2500 = vmatprep.subr.mxu0 0.0
    %2501 = vmatpush1.msra.mxu0 0.0
    %2502 = vmatprep.subr.mxu0 0.0
    %2503 = vmatpush1.msra.mxu0 0.0
    %2504 = vmatprep.subr.mxu0 0.0
    %2505 = vmatpush1.msra.mxu0 0.0
    %2506 = vmatprep.subr.mxu0 0.0
    %2507 = vmatpush1.msra.mxu0 0.0
    %2508 = vmatprep.subr.mxu0 0.0
    %2509 = vmatpush1.msra.mxu0 0.0
    %2510 = vmatprep.subr.mxu0 0.0
    %2511 = vmatpush1.msra.mxu0 0.0
    %2512 = vmatprep.subr.mxu0 0.0
    %2513 = vmatpush1.msra.mxu0 0.0
    %2514 = vmatprep.subr.mxu0 0.0
    %2515 = vmatpush1.msra.mxu0 0.0
    %2516 = vmatprep.subr.mxu0 0.0
    %2517 = vmatpush1.msra.mxu0 0.0
    %2518 = vmatprep.subr.mxu0 0.0
    %2519 = vmatpush1.msra.mxu0 0.0
    %2520 = vmatprep.subr.mxu0 0.0
    %2521 = vmatpush1.msra.mxu0 0.0
    %2522 = vmatprep.subr.mxu0 0.0
    %2523 = vmatpush1.msra.mxu0 0.0
    %2524 = vmatprep.subr.mxu0 0.0
    %2525 = vmatpush1.msra.mxu0 0.0
    %2526 = vmatprep.subr.mxu0 0.0
    %2527 = vmatpush1.msra.mxu0 0.0
    %2528 = vmatprep.subr.mxu0 0.0
    %2529 = vmatpush1.msra.mxu0 0.0
    %2530 = vmatprep.mubr.f32.mxu0 0.0
    %v2531 = vand.u32 %v2370, 4294901760
    %2532 = vmatmul.mubr.f32.gmra.mrb[0].mxu0 %v2531
    %v2533 = vpop.f32.mrb[0].mxu0
    %v2534 = vadd.f32 %v2448, %v2533
    %v2535 = vpop.f32.mrb[0].mxu0
    %2536 = vmatprep.mubr.f32.mxu0 0.0
    %v2537 = vand.u32 %v2373, 4294901760
    %2538 = vmatmul.mubr.f32.gmra.mrb[0].mxu0 %v2537
    %v2539 = vpop.f32.mrb[0].mxu0
    %v2540 = vadd.f32 %v2458, %v2539
    %v2541 = vpop.f32.mrb[0].mxu0
    %2542 = vdwg.mxu0
    %2543 = vmatprep.subr.mxu0 0.0
    %v2544 = vand.u32 %v2366, 4294901760
    %v2545 = vsub.f32 %v2366, %v2544
    %2546 = vmatpush1.msra.mxu0 %v2545
    %2547 = vmatprep.subr.mxu0 0.0
    %2548 = vmatpush1.msra.mxu0 0.0
    %2549 = vmatprep.subr.mxu0 0.0
    %2550 = vmatpush1.msra.mxu0 0.0
    %2551 = vmatprep.subr.mxu0 0.0
    %2552 = vmatpush1.msra.mxu0 0.0
    %2553 = vmatprep.subr.mxu0 0.0
    %2554 = vmatpush1.msra.mxu0 0.0
    %2555 = vmatprep.subr.mxu0 0.0
    %2556 = vmatpush1.msra.mxu0 0.0
    %2557 = vmatprep.subr.mxu0 0.0
    %2558 = vmatpush1.msra.mxu0 0.0
    %2559 = vmatprep.subr.mxu0 0.0
    %2560 = vmatpush1.msra.mxu0 0.0
    %2561 = vmatprep.subr.mxu0 0.0
    %2562 = vmatpush1.msra.mxu0 0.0
    %2563 = vmatprep.subr.mxu0 0.0
    %2564 = vmatpush1.msra.mxu0 0.0
    %2565 = vmatprep.subr.mxu0 0.0
    %2566 = vmatpush1.msra.mxu0 0.0
    %2567 = vmatprep.subr.mxu0 0.0
    %2568 = vmatpush1.msra.mxu0 0.0
    %2569 = vmatprep.subr.mxu0 0.0
    %2570 = vmatpush1.msra.mxu0 0.0
    %2571 = vmatprep.subr.mxu0 0.0
    %2572 = vmatpush1.msra.mxu0 0.0
    %2573 = vmatprep.subr.mxu0 0.0
    %2574 = vmatpush1.msra.mxu0 0.0
    %2575 = vmatprep.subr.mxu0 0.0
    %2576 = vmatpush1.msra.mxu0 0.0
    %2577 = vmatprep.subr.mxu0 0.0
    %2578 = vmatpush1.msra.mxu0 0.0
    %2579 = vmatprep.subr.mxu0 0.0
    %2580 = vmatpush1.msra.mxu0 0.0
    %2581 = vmatprep.subr.mxu0 0.0
    %2582 = vmatpush1.msra.mxu0 0.0
    %2583 = vmatprep.subr.mxu0 0.0
    %2584 = vmatpush1.msra.mxu0 0.0
    %2585 = vmatprep.subr.mxu0 0.0
    %2586 = vmatpush1.msra.mxu0 0.0
    %2587 = vmatprep.subr.mxu0 0.0
    %2588 = vmatpush1.msra.mxu0 0.0
    %2589 = vmatprep.subr.mxu0 0.0
    %2590 = vmatpush1.msra.mxu0 0.0
    %2591 = vmatprep.subr.mxu0 0.0
    %2592 = vmatpush1.msra.mxu0 0.0
    %2593 = vmatprep.subr.mxu0 0.0
    %2594 = vmatpush1.msra.mxu0 0.0
    %2595 = vmatprep.subr.mxu0 0.0
    %2596 = vmatpush1.msra.mxu0 0.0
    %2597 = vmatprep.subr.mxu0 0.0
    %2598 = vmatpush1.msra.mxu0 0.0
    %2599 = vmatprep.subr.mxu0 0.0
    %2600 = vmatpush1.msra.mxu0 0.0
    %2601 = vmatprep.subr.mxu0 0.0
    %2602 = vmatpush1.msra.mxu0 0.0
    %2603 = vmatprep.subr.mxu0 0.0
    %2604 = vmatpush1.msra.mxu0 0.0
    %2605 = vmatprep.subr.mxu0 0.0
    %2606 = vmatpush1.msra.mxu0 0.0
    %2607 = vmatprep.subr.mxu0 0.0
    %2608 = vmatpush1.msra.mxu0 0.0
    %2609 = vmatprep.mubr.f32.mxu0 0.0
    %v2610 = vand.u32 %v2370, 4294901760
    %v2611 = vsub.f32 %v2370, %v2610
    %2612 = vmatmul.mubr.f32.gmra.mrb[0].mxu0 %v2611
    %v2613 = vpop.f32.mrb[0].mxu0
    %v2614 = vadd.f32 %v2534, %v2613
    %v2615 = vpop.f32.mrb[0].mxu0
    %2616 = vmatprep.mubr.f32.mxu0 0.0
    %v2617 = vand.u32 %v2373, 4294901760
    %v2618 = vsub.f32 %v2373, %v2617
    %2619 = vmatmul.mubr.f32.gmra.mrb[0].mxu0 %v2618
    %v2620 = vpop.f32.mrb[0].mxu0
    %v2621 = vadd.f32 %v2540, %v2620
    %v2622 = vpop.f32.mrb[0].mxu0
    %2623 = vdwg.mxu0
    %2624 = vmatprep.subr.mxu0 0.0
    %v2625 = vand.u32 %v2366, 4294901760
    %2626 = vmatpush1.msra.mxu0 %v2625
    %2627 = vmatprep.subr.mxu0 0.0
    %2628 = vmatpush1.msra.mxu0 0.0
    %2629 = vmatprep.subr.mxu0 0.0
    %2630 = vmatpush1.msra.mxu0 0.0
    %2631 = vmatprep.subr.mxu0 0.0
    %2632 = vmatpush1.msra.mxu0 0.0
    %2633 = vmatprep.subr.mxu0 0.0
    %2634 = vmatpush1.msra.mxu0 0.0
    %2635 = vmatprep.subr.mxu0 0.0
    %2636 = vmatpush1.msra.mxu0 0.0
    %2637 = vmatprep.subr.mxu0 0.0
    %2638 = vmatpush1.msra.mxu0 0.0
    %2639 = vmatprep.subr.mxu0 0.0
    %2640 = vmatpush1.msra.mxu0 0.0
    %2641 = vmatprep.subr.mxu0 0.0
    %2642 = vmatpush1.msra.mxu0 0.0
    %2643 = vmatprep.subr.mxu0 0.0
    %2644 = vmatpush1.msra.mxu0 0.0
    %2645 = vmatprep.subr.mxu0 0.0
    %2646 = vmatpush1.msra.mxu0 0.0
    %2647 = vmatprep.subr.mxu0 0.0
    %2648 = vmatpush1.msra.mxu0 0.0
    %2649 = vmatprep.subr.mxu0 0.0
    %2650 = vmatpush1.msra.mxu0 0.0
    %2651 = vmatprep.subr.mxu0 0.0
    %2652 = vmatpush1.msra.mxu0 0.0
    %2653 = vmatprep.subr.mxu0 0.0
    %2654 = vmatpush1.msra.mxu0 0.0
    %2655 = vmatprep.subr.mxu0 0.0
    %2656 = vmatpush1.msra.mxu0 0.0
    %2657 = vmatprep.subr.mxu0 0.0
    %2658 = vmatpush1.msra.mxu0 0.0
    %2659 = vmatprep.subr.mxu0 0.0
    %2660 = vmatpush1.msra.mxu0 0.0
    %2661 = vmatprep.subr.mxu0 0.0
    %2662 = vmatpush1.msra.mxu0 0.0
    %2663 = vmatprep.subr.mxu0 0.0
    %2664 = vmatpush1.msra.mxu0 0.0
    %2665 = vmatprep.subr.mxu0 0.0
    %2666 = vmatpush1.msra.mxu0 0.0
    %2667 = vmatprep.subr.mxu0 0.0
    %2668 = vmatpush1.msra.mxu0 0.0
    %2669 = vmatprep.subr.mxu0 0.0
    %2670 = vmatpush1.msra.mxu0 0.0
    %2671 = vmatprep.subr.mxu0 0.0
    %2672 = vmatpush1.msra.mxu0 0.0
    %2673 = vmatprep.subr.mxu0 0.0
    %2674 = vmatpush1.msra.mxu0 0.0
    %2675 = vmatprep.subr.mxu0 0.0
    %2676 = vmatpush1.msra.mxu0 0.0
    %2677 = vmatprep.subr.mxu0 0.0
    %2678 = vmatpush1.msra.mxu0 0.0
    %2679 = vmatprep.subr.mxu0 0.0
    %2680 = vmatpush1.msra.mxu0 0.0
    %2681 = vmatprep.subr.mxu0 0.0
    %2682 = vmatpush1.msra.mxu0 0.0
    %2683 = vmatprep.subr.mxu0 0.0
    %2684 = vmatpush1.msra.mxu0 0.0
    %2685 = vmatprep.subr.mxu0 0.0
    %2686 = vmatpush1.msra.mxu0 0.0
    %2687 = vmatprep.subr.mxu0 0.0
    %2688 = vmatpush1.msra.mxu0 0.0
    %2689 = vmatprep.mubr.f32.mxu0 0.0
    %v2690 = vand.u32 %v2370, 4294901760
    %v2691 = vsub.f32 %v2370, %v2690
    %v2692 = vand.u32 %v2691, 4294901760
    %2693 = vmatmul.mubr.f32.gmra.mrb[0].mxu0 %v2692
    %v2694 = vpop.f32.mrb[0].mxu0
    %v2695 = vadd.f32 %v2614, %v2694
    %v2696 = vpop.f32.mrb[0].mxu0
    %2697 = vmatprep.mubr.f32.mxu0 0.0
    %v2698 = vand.u32 %v2373, 4294901760
    %v2699 = vsub.f32 %v2373, %v2698
    %v2700 = vand.u32 %v2699, 4294901760
    %2701 = vmatmul.mubr.f32.gmra.mrb[0].mxu0 %v2700
    %v2702 = vpop.f32.mrb[0].mxu0
    %v2703 = vadd.f32 %v2621, %v2702
    %v2704 = vpop.f32.mrb[0].mxu0
    %2705 = vdwg.mxu0
    %2706 = vmatprep.subr.mxu0 0.0
    %v2707 = vand.u32 %v2366, 4294901760
    %v2708 = vsub.f32 %v2366, %v2707
    %v2709 = vand.u32 %v2708, 4294901760
    %2710 = vmatpush1.msra.mxu0 %v2709
    %2711 = vmatprep.subr.mxu0 0.0
    %2712 = vmatpush1.msra.mxu0 0.0
    %2713 = vmatprep.subr.mxu0 0.0
    %2714 = vmatpush1.msra.mxu0 0.0
    %2715 = vmatprep.subr.mxu0 0.0
    %2716 = vmatpush1.msra.mxu0 0.0
    %2717 = vmatprep.subr.mxu0 0.0
    %2718 = vmatpush1.msra.mxu0 0.0
    %2719 = vmatprep.subr.mxu0 0.0
    %2720 = vmatpush1.msra.mxu0 0.0
    %2721 = vmatprep.subr.mxu0 0.0
    %2722 = vmatpush1.msra.mxu0 0.0
    %2723 = vmatprep.subr.mxu0 0.0
    %2724 = vmatpush1.msra.mxu0 0.0
    %2725 = vmatprep.subr.mxu0 0.0
    %2726 = vmatpush1.msra.mxu0 0.0
    %2727 = vmatprep.subr.mxu0 0.0
    %2728 = vmatpush1.msra.mxu0 0.0
    %2729 = vmatprep.subr.mxu0 0.0
    %2730 = vmatpush1.msra.mxu0 0.0
    %2731 = vmatprep.subr.mxu0 0.0
    %2732 = vmatpush1.msra.mxu0 0.0
    %2733 = vmatprep.subr.mxu0 0.0
    %2734 = vmatpush1.msra.mxu0 0.0
    %2735 = vmatprep.subr.mxu0 0.0
    %2736 = vmatpush1.msra.mxu0 0.0
    %2737 = vmatprep.subr.mxu0 0.0
    %2738 = vmatpush1.msra.mxu0 0.0
    %2739 = vmatprep.subr.mxu0 0.0
    %2740 = vmatpush1.msra.mxu0 0.0
    %2741 = vmatprep.subr.mxu0 0.0
    %2742 = vmatpush1.msra.mxu0 0.0
    %2743 = vmatprep.subr.mxu0 0.0
    %2744 = vmatpush1.msra.mxu0 0.0
    %2745 = vmatprep.subr.mxu0 0.0
    %2746 = vmatpush1.msra.mxu0 0.0
    %2747 = vmatprep.subr.mxu0 0.0
    %2748 = vmatpush1.msra.mxu0 0.0
    %2749 = vmatprep.subr.mxu0 0.0
    %2750 = vmatpush1.msra.mxu0 0.0
    %2751 = vmatprep.subr.mxu0 0.0
    %2752 = vmatpush1.msra.mxu0 0.0
    %2753 = vmatprep.subr.mxu0 0.0
    %2754 = vmatpush1.msra.mxu0 0.0
    %2755 = vmatprep.subr.mxu0 0.0
    %2756 = vmatpush1.msra.mxu0 0.0
    %2757 = vmatprep.subr.mxu0 0.0
    %2758 = vmatpush1.msra.mxu0 0.0
    %2759 = vmatprep.subr.mxu0 0.0
    %2760 = vmatpush1.msra.mxu0 0.0
    %2761 = vmatprep.subr.mxu0 0.0
    %2762 = vmatpush1.msra.mxu0 0.0
    %2763 = vmatprep.subr.mxu0 0.0
    %2764 = vmatpush1.msra.mxu0 0.0
    %2765 = vmatprep.subr.mxu0 0.0
    %2766 = vmatpush1.msra.mxu0 0.0
    %2767 = vmatprep.subr.mxu0 0.0
    %2768 = vmatpush1.msra.mxu0 0.0
    %2769 = vmatprep.subr.mxu0 0.0
    %2770 = vmatpush1.msra.mxu0 0.0
    %2771 = vmatprep.subr.mxu0 0.0
    %2772 = vmatpush1.msra.mxu0 0.0
    %2773 = vmatprep.mubr.f32.mxu0 0.0
    %v2774 = vand.u32 %v2370, 4294901760
    %2775 = vmatmul.mubr.f32.gmra.mrb[0].mxu0 %v2774
    %v2776 = vpop.f32.mrb[0].mxu0
    %v2777 = vadd.f32 %v2695, %v2776
    %v2778 = vpop.f32.mrb[0].mxu0
    %2779 = vmatprep.mubr.f32.mxu0 0.0
    %v2780 = vand.u32 %v2373, 4294901760
    %2781 = vmatmul.mubr.f32.gmra.mrb[0].mxu0 %v2780
    %v2782 = vpop.f32.mrb[0].mxu0
    %v2783 = vadd.f32 %v2703, %v2782
    %v2784 = vpop.f32.mrb[0].mxu0
    %2785 = vdwg.mxu0
    %2786 = vmatprep.subr.mxu0 0.0
    %v2787 = vand.u32 %v2366, 4294901760
    %2788 = vmatpush1.msra.mxu0 %v2787
    %2789 = vmatprep.subr.mxu0 0.0
    %2790 = vmatpush1.msra.mxu0 0.0
    %2791 = vmatprep.subr.mxu0 0.0
    %2792 = vmatpush1.msra.mxu0 0.0
    %2793 = vmatprep.subr.mxu0 0.0
    %2794 = vmatpush1.msra.mxu0 0.0
    %2795 = vmatprep.subr.mxu0 0.0
    %2796 = vmatpush1.msra.mxu0 0.0
    %2797 = vmatprep.subr.mxu0 0.0
    %2798 = vmatpush1.msra.mxu0 0.0
    %2799 = vmatprep.subr.mxu0 0.0
    %2800 = vmatpush1.msra.mxu0 0.0
    %2801 = vmatprep.subr.mxu0 0.0
    %2802 = vmatpush1.msra.mxu0 0.0
    %2803 = vmatprep.subr.mxu0 0.0
    %2804 = vmatpush1.msra.mxu0 0.0
    %2805 = vmatprep.subr.mxu0 0.0
    %2806 = vmatpush1.msra.mxu0 0.0
    %2807 = vmatprep.subr.mxu0 0.0
    %2808 = vmatpush1.msra.mxu0 0.0
    %2809 = vmatprep.subr.mxu0 0.0
    %2810 = vmatpush1.msra.mxu0 0.0
    %2811 = vmatprep.subr.mxu0 0.0
    %2812 = vmatpush1.msra.mxu0 0.0
    %2813 = vmatprep.subr.mxu0 0.0
    %2814 = vmatpush1.msra.mxu0 0.0
    %2815 = vmatprep.subr.mxu0 0.0
    %2816 = vmatpush1.msra.mxu0 0.0
    %2817 = vmatprep.subr.mxu0 0.0
    %2818 = vmatpush1.msra.mxu0 0.0
    %2819 = vmatprep.subr.mxu0 0.0
    %2820 = vmatpush1.msra.mxu0 0.0
    %2821 = vmatprep.subr.mxu0 0.0
    %2822 = vmatpush1.msra.mxu0 0.0
    %2823 = vmatprep.subr.mxu0 0.0
    %2824 = vmatpush1.msra.mxu0 0.0
    %2825 = vmatprep.subr.mxu0 0.0
    %2826 = vmatpush1.msra.mxu0 0.0
    %2827 = vmatprep.subr.mxu0 0.0
    %2828 = vmatpush1.msra.mxu0 0.0
    %2829 = vmatprep.subr.mxu0 0.0
    %2830 = vmatpush1.msra.mxu0 0.0
    %2831 = vmatprep.subr.mxu0 0.0
    %2832 = vmatpush1.msra.mxu0 0.0
    %2833 = vmatprep.subr.mxu0 0.0
    %2834 = vmatpush1.msra.mxu0 0.0
    %2835 = vmatprep.subr.mxu0 0.0
    %2836 = vmatpush1.msra.mxu0 0.0
    %2837 = vmatprep.subr.mxu0 0.0
    %2838 = vmatpush1.msra.mxu0 0.0
    %2839 = vmatprep.subr.mxu0 0.0
    %2840 = vmatpush1.msra.mxu0 0.0
    %2841 = vmatprep.subr.mxu0 0.0
    %2842 = vmatpush1.msra.mxu0 0.0
    %2843 = vmatprep.subr.mxu0 0.0
    %2844 = vmatpush1.msra.mxu0 0.0
    %2845 = vmatprep.subr.mxu0 0.0
    %2846 = vmatpush1.msra.mxu0 0.0
    %2847 = vmatprep.subr.mxu0 0.0
    %2848 = vmatpush1.msra.mxu0 0.0
    %2849 = vmatprep.subr.mxu0 0.0
    %2850 = vmatpush1.msra.mxu0 0.0
    %2851 = vmatprep.mubr.f32.mxu0 0.0
    %v2852 = vand.u32 %v2370, 4294901760
    %2853 = vmatmul.mubr.f32.gmra.mrb[0].mxu0 %v2852
    %v2854 = vpop.f32.mrb[0].mxu0
    %v2855 = vadd.f32 %v2777, %v2854
    %v2856 = vpop.f32.mrb[0].mxu0
    %2857 = vmatprep.mubr.f32.mxu0 0.0
    %v2858 = vand.u32 %v2373, 4294901760
    %2859 = vmatmul.mubr.f32.gmra.mrb[0].mxu0 %v2858
    %v2860 = vpop.f32.mrb[0].mxu0
    %v2861 = vadd.f32 %v2783, %v2860
    %v2862 = vpop.f32.mrb[0].mxu0
    %2863 = vdwg.mxu0
    %2864 = vxpose.xlu0.b32.start [1/16] %v1367, 128
    %2865 = vxpose.xlu0.b32.cont [2/16] 0.0, 128
    %2866 = vxpose.xlu0.b32.cont [3/16] 0.0, 128
    %2867 = vxpose.xlu0.b32.cont [4/16] 0.0, 128
    %2868 = vxpose.xlu0.b32.cont [5/16] 0.0, 128
    %2869 = vxpose.xlu0.b32.cont [6/16] 0.0, 128
    %2870 = vxpose.xlu0.b32.cont [7/16] 0.0, 128
    %2871 = vxpose.xlu0.b32.cont [8/16] 0.0, 128
    %2872 = vxpose.xlu0.b32.cont [9/16] 0.0, 128
    %2873 = vxpose.xlu0.b32.cont [10/16] 0.0, 128
    %2874 = vxpose.xlu0.b32.cont [11/16] 0.0, 128
    %2875 = vxpose.xlu0.b32.cont [12/16] 0.0, 128
    %2876 = vxpose.xlu0.b32.cont [13/16] 0.0, 128
    %2877 = vxpose.xlu0.b32.cont [14/16] 0.0, 128
    %2878 = vxpose.xlu0.b32.cont [15/16] 0.0, 128
    %2879 = vxpose.xlu0.b32.end [16/16] 0.0, 128
    %v2880 = vpop.trf.xlu0
    %v2881 = vpop.trf.xlu0
    %v2882 = vpop.trf.xlu0
    %v2883 = vpop.trf.xlu0
    %v2884 = vpop.trf.xlu0
    %v2885 = vpop.trf.xlu0
    %v2886 = vpop.trf.xlu0
    %v2887 = vpop.trf.xlu0
    %v2888 = vpop.trf.xlu0
    %v2889 = vpop.trf.xlu0
    %v2890 = vpop.trf.xlu0
    %v2891 = vpop.trf.xlu0
    %v2892 = vpop.trf.xlu0
    %v2893 = vpop.trf.xlu0
    %v2894 = vpop.trf.xlu0
    %v2895 = vpop.trf.xlu0
    %v2900 = vcombine.low %v77, %v86
    %v2901 = vcombine.low %v95, %v104
    %v2903 = vunpack.c.l.s4 1983009808
    %v2904 = vunpack.c.0.s8 %v2903
    %v2905 = vlaneseq
    %v2906 = vshrl.u32 %v2905, 7
    %v2907 = vsub.s32 %v2904, %v2906
    %v2908 = vrot.slane %v2900, %v2907
    %v2910 = vunpack.c.l.s4 1983009808
    %v2911 = vunpack.c.0.s8 %v2910
    %v2912 = vlaneseq
    %v2913 = vshrl.u32 %v2912, 7
    %v2914 = vsub.s32 %v2911, %v2913
    %v2915 = vrot.slane %v2901, %v2914
    %v2916 = vcombine.low %v2908, %v2915
    %v2919 = vsel %vm2368, %v2880, 0
    %v2922 = vsel %vm2368, %v2881, 0
    %2924 = vmatprep.subr.mxu0 0.0
    %v2925 = vand.u32 %v2916, 4294901760
    %2926 = vmatpush1.msra.mxu0 %v2925
    %2927 = vmatprep.subr.mxu0 0.0
    %2928 = vmatpush1.msra.mxu0 0.0
    %2929 = vmatprep.subr.mxu0 0.0
    %2930 = vmatpush1.msra.mxu0 0.0
    %2931 = vmatprep.subr.mxu0 0.0
    %2932 = vmatpush1.msra.mxu0 0.0
    %2933 = vmatprep.subr.mxu0 0.0
    %2934 = vmatpush1.msra.mxu0 0.0
    %2935 = vmatprep.subr.mxu0 0.0
    %2936 = vmatpush1.msra.mxu0 0.0
    %2937 = vmatprep.subr.mxu0 0.0
    %2938 = vmatpush1.msra.mxu0 0.0
    %2939 = vmatprep.subr.mxu0 0.0
    %2940 = vmatpush1.msra.mxu0 0.0
    %2941 = vmatprep.subr.mxu0 0.0
    %2942 = vmatpush1.msra.mxu0 0.0
    %2943 = vmatprep.subr.mxu0 0.0
    %2944 = vmatpush1.msra.mxu0 0.0
    %2945 = vmatprep.subr.mxu0 0.0
    %2946 = vmatpush1.msra.mxu0 0.0
    %2947 = vmatprep.subr.mxu0 0.0
    %2948 = vmatpush1.msra.mxu0 0.0
    %2949 = vmatprep.subr.mxu0 0.0
    %2950 = vmatpush1.msra.mxu0 0.0
    %2951 = vmatprep.subr.mxu0 0.0
    %2952 = vmatpush1.msra.mxu0 0.0
    %2953 = vmatprep.subr.mxu0 0.0
    %2954 = vmatpush1.msra.mxu0 0.0
    %2955 = vmatprep.subr.mxu0 0.0
    %2956 = vmatpush1.msra.mxu0 0.0
    %2957 = vmatprep.subr.mxu0 0.0
    %2958 = vmatpush1.msra.mxu0 0.0
    %2959 = vmatprep.subr.mxu0 0.0
    %2960 = vmatpush1.msra.mxu0 0.0
    %2961 = vmatprep.subr.mxu0 0.0
    %2962 = vmatpush1.msra.mxu0 0.0
    %2963 = vmatprep.subr.mxu0 0.0
    %2964 = vmatpush1.msra.mxu0 0.0
    %2965 = vmatprep.subr.mxu0 0.0
    %2966 = vmatpush1.msra.mxu0 0.0
    %2967 = vmatprep.subr.mxu0 0.0
    %2968 = vmatpush1.msra.mxu0 0.0
    %2969 = vmatprep.subr.mxu0 0.0
    %2970 = vmatpush1.msra.mxu0 0.0
    %2971 = vmatprep.subr.mxu0 0.0
    %2972 = vmatpush1.msra.mxu0 0.0
    %2973 = vmatprep.subr.mxu0 0.0
    %2974 = vmatpush1.msra.mxu0 0.0
    %2975 = vmatprep.subr.mxu0 0.0
    %2976 = vmatpush1.msra.mxu0 0.0
    %2977 = vmatprep.subr.mxu0 0.0
    %2978 = vmatpush1.msra.mxu0 0.0
    %2979 = vmatprep.subr.mxu0 0.0
    %2980 = vmatpush1.msra.mxu0 0.0
    %2981 = vmatprep.subr.mxu0 0.0
    %2982 = vmatpush1.msra.mxu0 0.0
    %2983 = vmatprep.subr.mxu0 0.0
    %2984 = vmatpush1.msra.mxu0 0.0
    %2985 = vmatprep.subr.mxu0 0.0
    %2986 = vmatpush1.msra.mxu0 0.0
    %2987 = vmatprep.subr.mxu0 0.0
    %2988 = vmatpush1.msra.mxu0 0.0
    %2989 = vmatprep.mubr.f32.mxu0 0.0
    %v2990 = vand.u32 %v2919, 4294901760
    %v2991 = vsub.f32 %v2919, %v2990
    %v2992 = vand.u32 %v2991, 4294901760
    %v2993 = vsub.f32 %v2991, %v2992
    %v2994 = vand.u32 %v2993, 4294901760
    %2995 = vmatmul.mubr.f32.gmra.mrb[0].mxu0 %v2994
    %v2996 = vpop.f32.mrb[0].mxu0
    %v2997 = vadd.f32 0.0, %v2996
    %v2998 = vpop.f32.mrb[0].mxu0
    %2999 = vmatprep.mubr.f32.mxu0 0.0
    %v3000 = vand.u32 %v2922, 4294901760
    %v3001 = vsub.f32 %v2922, %v3000
    %v3002 = vand.u32 %v3001, 4294901760
    %v3003 = vsub.f32 %v3001, %v3002
    %v3004 = vand.u32 %v3003, 4294901760
    %3005 = vmatmul.mubr.f32.gmra.mrb[0].mxu0 %v3004
    %v3006 = vpop.f32.mrb[0].mxu0
    %v3007 = vadd.f32 0.0, %v3006
    %v3008 = vpop.f32.mrb[0].mxu0
    %3009 = vdwg.mxu0
    %3010 = vmatprep.subr.mxu0 0.0
    %v3011 = vand.u32 %v2916, 4294901760
    %v3012 = vsub.f32 %v2916, %v3011
    %v3013 = vand.u32 %v3012, 4294901760
    %v3014 = vsub.f32 %v3012, %v3013
    %v3015 = vand.u32 %v3014, 4294901760
    %3016 = vmatpush1.msra.mxu0 %v3015
    %3017 = vmatprep.subr.mxu0 0.0
    %3018 = vmatpush1.msra.mxu0 0.0
    %3019 = vmatprep.subr.mxu0 0.0
    %3020 = vmatpush1.msra.mxu0 0.0
    %3021 = vmatprep.subr.mxu0 0.0
    %3022 = vmatpush1.msra.mxu0 0.0
    %3023 = vmatprep.subr.mxu0 0.0
    %3024 = vmatpush1.msra.mxu0 0.0
    %3025 = vmatprep.subr.mxu0 0.0
    %3026 = vmatpush1.msra.mxu0 0.0
    %3027 = vmatprep.subr.mxu0 0.0
    %3028 = vmatpush1.msra.mxu0 0.0
    %3029 = vmatprep.subr.mxu0 0.0
    %3030 = vmatpush1.msra.mxu0 0.0
    %3031 = vmatprep.subr.mxu0 0.0
    %3032 = vmatpush1.msra.mxu0 0.0
    %3033 = vmatprep.subr.mxu0 0.0
    %3034 = vmatpush1.msra.mxu0 0.0
    %3035 = vmatprep.subr.mxu0 0.0
    %3036 = vmatpush1.msra.mxu0 0.0
    %3037 = vmatprep.subr.mxu0 0.0
    %3038 = vmatpush1.msra.mxu0 0.0
    %3039 = vmatprep.subr.mxu0 0.0
    %3040 = vmatpush1.msra.mxu0 0.0
    %3041 = vmatprep.subr.mxu0 0.0
    %3042 = vmatpush1.msra.mxu0 0.0
    %3043 = vmatprep.subr.mxu0 0.0
    %3044 = vmatpush1.msra.mxu0 0.0
    %3045 = vmatprep.subr.mxu0 0.0
    %3046 = vmatpush1.msra.mxu0 0.0
    %3047 = vmatprep.subr.mxu0 0.0
    %3048 = vmatpush1.msra.mxu0 0.0
    %3049 = vmatprep.subr.mxu0 0.0
    %3050 = vmatpush1.msra.mxu0 0.0
    %3051 = vmatprep.subr.mxu0 0.0
    %3052 = vmatpush1.msra.mxu0 0.0
    %3053 = vmatprep.subr.mxu0 0.0
    %3054 = vmatpush1.msra.mxu0 0.0
    %3055 = vmatprep.subr.mxu0 0.0
    %3056 = vmatpush1.msra.mxu0 0.0
    %3057 = vmatprep.subr.mxu0 0.0
    %3058 = vmatpush1.msra.mxu0 0.0
    %3059 = vmatprep.subr.mxu0 0.0
    %3060 = vmatpush1.msra.mxu0 0.0
    %3061 = vmatprep.subr.mxu0 0.0
    %3062 = vmatpush1.msra.mxu0 0.0
    %3063 = vmatprep.subr.mxu0 0.0
    %3064 = vmatpush1.msra.mxu0 0.0
    %3065 = vmatprep.subr.mxu0 0.0
    %3066 = vmatpush1.msra.mxu0 0.0
    %3067 = vmatprep.subr.mxu0 0.0
    %3068 = vmatpush1.msra.mxu0 0.0
    %3069 = vmatprep.subr.mxu0 0.0
    %3070 = vmatpush1.msra.mxu0 0.0
    %3071 = vmatprep.subr.mxu0 0.0
    %3072 = vmatpush1.msra.mxu0 0.0
    %3073 = vmatprep.subr.mxu0 0.0
    %3074 = vmatpush1.msra.mxu0 0.0
    %3075 = vmatprep.subr.mxu0 0.0
    %3076 = vmatpush1.msra.mxu0 0.0
    %3077 = vmatprep.subr.mxu0 0.0
    %3078 = vmatpush1.msra.mxu0 0.0
    %3079 = vmatprep.mubr.f32.mxu0 0.0
    %v3080 = vand.u32 %v2919, 4294901760
    %3081 = vmatmul.mubr.f32.gmra.mrb[0].mxu0 %v3080
    %v3082 = vpop.f32.mrb[0].mxu0
    %v3083 = vadd.f32 %v2997, %v3082
    %v3084 = vpop.f32.mrb[0].mxu0
    %3085 = vmatprep.mubr.f32.mxu0 0.0
    %v3086 = vand.u32 %v2922, 4294901760
    %3087 = vmatmul.mubr.f32.gmra.mrb[0].mxu0 %v3086
    %v3088 = vpop.f32.mrb[0].mxu0
    %v3089 = vadd.f32 %v3007, %v3088
    %v3090 = vpop.f32.mrb[0].mxu0
    %3091 = vdwg.mxu0
    %3092 = vmatprep.subr.mxu0 0.0
    %v3093 = vand.u32 %v2916, 4294901760
    %v3094 = vsub.f32 %v2916, %v3093
    %3095 = vmatpush1.msra.mxu0 %v3094
    %3096 = vmatprep.subr.mxu0 0.0
    %3097 = vmatpush1.msra.mxu0 0.0
    %3098 = vmatprep.subr.mxu0 0.0
    %3099 = vmatpush1.msra.mxu0 0.0
    %3100 = vmatprep.subr.mxu0 0.0
    %3101 = vmatpush1.msra.mxu0 0.0
    %3102 = vmatprep.subr.mxu0 0.0
    %3103 = vmatpush1.msra.mxu0 0.0
    %3104 = vmatprep.subr.mxu0 0.0
    %3105 = vmatpush1.msra.mxu0 0.0
    %3106 = vmatprep.subr.mxu0 0.0
    %3107 = vmatpush1.msra.mxu0 0.0
    %3108 = vmatprep.subr.mxu0 0.0
    %3109 = vmatpush1.msra.mxu0 0.0
    %3110 = vmatprep.subr.mxu0 0.0
    %3111 = vmatpush1.msra.mxu0 0.0
    %3112 = vmatprep.subr.mxu0 0.0
    %3113 = vmatpush1.msra.mxu0 0.0
    %3114 = vmatprep.subr.mxu0 0.0
    %3115 = vmatpush1.msra.mxu0 0.0
    %3116 = vmatprep.subr.mxu0 0.0
    %3117 = vmatpush1.msra.mxu0 0.0
    %3118 = vmatprep.subr.mxu0 0.0
    %3119 = vmatpush1.msra.mxu0 0.0
    %3120 = vmatprep.subr.mxu0 0.0
    %3121 = vmatpush1.msra.mxu0 0.0
    %3122 = vmatprep.subr.mxu0 0.0
    %3123 = vmatpush1.msra.mxu0 0.0
    %3124 = vmatprep.subr.mxu0 0.0
    %3125 = vmatpush1.msra.mxu0 0.0
    %3126 = vmatprep.subr.mxu0 0.0
    %3127 = vmatpush1.msra.mxu0 0.0
    %3128 = vmatprep.subr.mxu0 0.0
    %3129 = vmatpush1.msra.mxu0 0.0
    %3130 = vmatprep.subr.mxu0 0.0
    %3131 = vmatpush1.msra.mxu0 0.0
    %3132 = vmatprep.subr.mxu0 0.0
    %3133 = vmatpush1.msra.mxu0 0.0
    %3134 = vmatprep.subr.mxu0 0.0
    %3135 = vmatpush1.msra.mxu0 0.0
    %3136 = vmatprep.subr.mxu0 0.0
    %3137 = vmatpush1.msra.mxu0 0.0
    %3138 = vmatprep.subr.mxu0 0.0
    %3139 = vmatpush1.msra.mxu0 0.0
    %3140 = vmatprep.subr.mxu0 0.0
    %3141 = vmatpush1.msra.mxu0 0.0
    %3142 = vmatprep.subr.mxu0 0.0
    %3143 = vmatpush1.msra.mxu0 0.0
    %3144 = vmatprep.subr.mxu0 0.0
    %3145 = vmatpush1.msra.mxu0 0.0
    %3146 = vmatprep.subr.mxu0 0.0
    %3147 = vmatpush1.msra.mxu0 0.0
    %3148 = vmatprep.subr.mxu0 0.0
    %3149 = vmatpush1.msra.mxu0 0.0
    %3150 = vmatprep.subr.mxu0 0.0
    %3151 = vmatpush1.msra.mxu0 0.0
    %3152 = vmatprep.subr.mxu0 0.0
    %3153 = vmatpush1.msra.mxu0 0.0
    %3154 = vmatprep.subr.mxu0 0.0
    %3155 = vmatpush1.msra.mxu0 0.0
    %3156 = vmatprep.subr.mxu0 0.0
    %3157 = vmatpush1.msra.mxu0 0.0
    %3158 = vmatprep.mubr.f32.mxu0 0.0
    %v3159 = vand.u32 %v2919, 4294901760
    %v3160 = vsub.f32 %v2919, %v3159
    %3161 = vmatmul.mubr.f32.gmra.mrb[0].mxu0 %v3160
    %v3162 = vpop.f32.mrb[0].mxu0
    %v3163 = vadd.f32 %v3083, %v3162
    %v3164 = vpop.f32.mrb[0].mxu0
    %3165 = vmatprep.mubr.f32.mxu0 0.0
    %v3166 = vand.u32 %v2922, 4294901760
    %v3167 = vsub.f32 %v2922, %v3166
    %3168 = vmatmul.mubr.f32.gmra.mrb[0].mxu0 %v3167
    %v3169 = vpop.f32.mrb[0].mxu0
    %v3170 = vadd.f32 %v3089, %v3169
    %v3171 = vpop.f32.mrb[0].mxu0
    %3172 = vdwg.mxu0
    %3173 = vmatprep.subr.mxu0 0.0
    %v3174 = vand.u32 %v2916, 4294901760
    %3175 = vmatpush1.msra.mxu0 %v3174
    %3176 = vmatprep.subr.mxu0 0.0
    %3177 = vmatpush1.msra.mxu0 0.0
    %3178 = vmatprep.subr.mxu0 0.0
    %3179 = vmatpush1.msra.mxu0 0.0
    %3180 = vmatprep.subr.mxu0 0.0
    %3181 = vmatpush1.msra.mxu0 0.0
    %3182 = vmatprep.subr.mxu0 0.0
    %3183 = vmatpush1.msra.mxu0 0.0
    %3184 = vmatprep.subr.mxu0 0.0
    %3185 = vmatpush1.msra.mxu0 0.0
    %3186 = vmatprep.subr.mxu0 0.0
    %3187 = vmatpush1.msra.mxu0 0.0
    %3188 = vmatprep.subr.mxu0 0.0
    %3189 = vmatpush1.msra.mxu0 0.0
    %3190 = vmatprep.subr.mxu0 0.0
    %3191 = vmatpush1.msra.mxu0 0.0
    %3192 = vmatprep.subr.mxu0 0.0
    %3193 = vmatpush1.msra.mxu0 0.0
    %3194 = vmatprep.subr.mxu0 0.0
    %3195 = vmatpush1.msra.mxu0 0.0
    %3196 = vmatprep.subr.mxu0 0.0
    %3197 = vmatpush1.msra.mxu0 0.0
    %3198 = vmatprep.subr.mxu0 0.0
    %3199 = vmatpush1.msra.mxu0 0.0
    %3200 = vmatprep.subr.mxu0 0.0
    %3201 = vmatpush1.msra.mxu0 0.0
    %3202 = vmatprep.subr.mxu0 0.0
    %3203 = vmatpush1.msra.mxu0 0.0
    %3204 = vmatprep.subr.mxu0 0.0
    %3205 = vmatpush1.msra.mxu0 0.0
    %3206 = vmatprep.subr.mxu0 0.0
    %3207 = vmatpush1.msra.mxu0 0.0
    %3208 = vmatprep.subr.mxu0 0.0
    %3209 = vmatpush1.msra.mxu0 0.0
    %3210 = vmatprep.subr.mxu0 0.0
    %3211 = vmatpush1.msra.mxu0 0.0
    %3212 = vmatprep.subr.mxu0 0.0
    %3213 = vmatpush1.msra.mxu0 0.0
    %3214 = vmatprep.subr.mxu0 0.0
    %3215 = vmatpush1.msra.mxu0 0.0
    %3216 = vmatprep.subr.mxu0 0.0
    %3217 = vmatpush1.msra.mxu0 0.0
    %3218 = vmatprep.subr.mxu0 0.0
    %3219 = vmatpush1.msra.mxu0 0.0
    %3220 = vmatprep.subr.mxu0 0.0
    %3221 = vmatpush1.msra.mxu0 0.0
    %3222 = vmatprep.subr.mxu0 0.0
    %3223 = vmatpush1.msra.mxu0 0.0
    %3224 = vmatprep.subr.mxu0 0.0
    %3225 = vmatpush1.msra.mxu0 0.0
    %3226 = vmatprep.subr.mxu0 0.0
    %3227 = vmatpush1.msra.mxu0 0.0
    %3228 = vmatprep.subr.mxu0 0.0
    %3229 = vmatpush1.msra.mxu0 0.0
    %3230 = vmatprep.subr.mxu0 0.0
    %3231 = vmatpush1.msra.mxu0 0.0
    %3232 = vmatprep.subr.mxu0 0.0
    %3233 = vmatpush1.msra.mxu0 0.0
    %3234 = vmatprep.subr.mxu0 0.0
    %3235 = vmatpush1.msra.mxu0 0.0
    %3236 = vmatprep.subr.mxu0 0.0
    %3237 = vmatpush1.msra.mxu0 0.0
    %3238 = vmatprep.mubr.f32.mxu0 0.0
    %v3239 = vand.u32 %v2919, 4294901760
    %v3240 = vsub.f32 %v2919, %v3239
    %v3241 = vand.u32 %v3240, 4294901760
    %3242 = vmatmul.mubr.f32.gmra.mrb[0].mxu0 %v3241
    %v3243 = vpop.f32.mrb[0].mxu0
    %v3244 = vadd.f32 %v3163, %v3243
    %v3245 = vpop.f32.mrb[0].mxu0
    %3246 = vmatprep.mubr.f32.mxu0 0.0
    %v3247 = vand.u32 %v2922, 4294901760
    %v3248 = vsub.f32 %v2922, %v3247
    %v3249 = vand.u32 %v3248, 4294901760
    %3250 = vmatmul.mubr.f32.gmra.mrb[0].mxu0 %v3249
    %v3251 = vpop.f32.mrb[0].mxu0
    %v3252 = vadd.f32 %v3170, %v3251
    %v3253 = vpop.f32.mrb[0].mxu0
    %3254 = vdwg.mxu0
    %3255 = vmatprep.subr.mxu0 0.0
    %v3256 = vand.u32 %v2916, 4294901760
    %v3257 = vsub.f32 %v2916, %v3256
    %v3258 = vand.u32 %v3257, 4294901760
    %3259 = vmatpush1.msra.mxu0 %v3258
    %3260 = vmatprep.subr.mxu0 0.0
    %3261 = vmatpush1.msra.mxu0 0.0
    %3262 = vmatprep.subr.mxu0 0.0
    %3263 = vmatpush1.msra.mxu0 0.0
    %3264 = vmatprep.subr.mxu0 0.0
    %3265 = vmatpush1.msra.mxu0 0.0
    %3266 = vmatprep.subr.mxu0 0.0
    %3267 = vmatpush1.msra.mxu0 0.0
    %3268 = vmatprep.subr.mxu0 0.0
    %3269 = vmatpush1.msra.mxu0 0.0
    %3270 = vmatprep.subr.mxu0 0.0
    %3271 = vmatpush1.msra.mxu0 0.0
    %3272 = vmatprep.subr.mxu0 0.0
    %3273 = vmatpush1.msra.mxu0 0.0
    %3274 = vmatprep.subr.mxu0 0.0
    %3275 = vmatpush1.msra.mxu0 0.0
    %3276 = vmatprep.subr.mxu0 0.0
    %3277 = vmatpush1.msra.mxu0 0.0
    %3278 = vmatprep.subr.mxu0 0.0
    %3279 = vmatpush1.msra.mxu0 0.0
    %3280 = vmatprep.subr.mxu0 0.0
    %3281 = vmatpush1.msra.mxu0 0.0
    %3282 = vmatprep.subr.mxu0 0.0
    %3283 = vmatpush1.msra.mxu0 0.0
    %3284 = vmatprep.subr.mxu0 0.0
    %3285 = vmatpush1.msra.mxu0 0.0
    %3286 = vmatprep.subr.mxu0 0.0
    %3287 = vmatpush1.msra.mxu0 0.0
    %3288 = vmatprep.subr.mxu0 0.0
    %3289 = vmatpush1.msra.mxu0 0.0
    %3290 = vmatprep.subr.mxu0 0.0
    %3291 = vmatpush1.msra.mxu0 0.0
    %3292 = vmatprep.subr.mxu0 0.0
    %3293 = vmatpush1.msra.mxu0 0.0
    %3294 = vmatprep.subr.mxu0 0.0
    %3295 = vmatpush1.msra.mxu0 0.0
    %3296 = vmatprep.subr.mxu0 0.0
    %3297 = vmatpush1.msra.mxu0 0.0
    %3298 = vmatprep.subr.mxu0 0.0
    %3299 = vmatpush1.msra.mxu0 0.0
    %3300 = vmatprep.subr.mxu0 0.0
    %3301 = vmatpush1.msra.mxu0 0.0
    %3302 = vmatprep.subr.mxu0 0.0
    %3303 = vmatpush1.msra.mxu0 0.0
    %3304 = vmatprep.subr.mxu0 0.0
    %3305 = vmatpush1.msra.mxu0 0.0
    %3306 = vmatprep.subr.mxu0 0.0
    %3307 = vmatpush1.msra.mxu0 0.0
    %3308 = vmatprep.subr.mxu0 0.0
    %3309 = vmatpush1.msra.mxu0 0.0
    %3310 = vmatprep.subr.mxu0 0.0
    %3311 = vmatpush1.msra.mxu0 0.0
    %3312 = vmatprep.subr.mxu0 0.0
    %3313 = vmatpush1.msra.mxu0 0.0
    %3314 = vmatprep.subr.mxu0 0.0
    %3315 = vmatpush1.msra.mxu0 0.0
    %3316 = vmatprep.subr.mxu0 0.0
    %3317 = vmatpush1.msra.mxu0 0.0
    %3318 = vmatprep.subr.mxu0 0.0
    %3319 = vmatpush1.msra.mxu0 0.0
    %3320 = vmatprep.subr.mxu0 0.0
    %3321 = vmatpush1.msra.mxu0 0.0
    %3322 = vmatprep.mubr.f32.mxu0 0.0
    %v3323 = vand.u32 %v2919, 4294901760
    %3324 = vmatmul.mubr.f32.gmra.mrb[0].mxu0 %v3323
    %v3325 = vpop.f32.mrb[0].mxu0
    %v3326 = vadd.f32 %v3244, %v3325
    %v3327 = vpop.f32.mrb[0].mxu0
    %3328 = vmatprep.mubr.f32.mxu0 0.0
    %v3329 = vand.u32 %v2922, 4294901760
    %3330 = vmatmul.mubr.f32.gmra.mrb[0].mxu0 %v3329
    %v3331 = vpop.f32.mrb[0].mxu0
    %v3332 = vadd.f32 %v3252, %v3331
    %v3333 = vpop.f32.mrb[0].mxu0
    %3334 = vdwg.mxu0
    %3335 = vmatprep.subr.mxu0 0.0
    %v3336 = vand.u32 %v2916, 4294901760
    %3337 = vmatpush1.msra.mxu0 %v3336
    %3338 = vmatprep.subr.mxu0 0.0
    %3339 = vmatpush1.msra.mxu0 0.0
    %3340 = vmatprep.subr.mxu0 0.0
    %3341 = vmatpush1.msra.mxu0 0.0
    %3342 = vmatprep.subr.mxu0 0.0
    %3343 = vmatpush1.msra.mxu0 0.0
    %3344 = vmatprep.subr.mxu0 0.0
    %3345 = vmatpush1.msra.mxu0 0.0
    %3346 = vmatprep.subr.mxu0 0.0
    %3347 = vmatpush1.msra.mxu0 0.0
    %3348 = vmatprep.subr.mxu0 0.0
    %3349 = vmatpush1.msra.mxu0 0.0
    %3350 = vmatprep.subr.mxu0 0.0
    %3351 = vmatpush1.msra.mxu0 0.0
    %3352 = vmatprep.subr.mxu0 0.0
    %3353 = vmatpush1.msra.mxu0 0.0
    %3354 = vmatprep.subr.mxu0 0.0
    %3355 = vmatpush1.msra.mxu0 0.0
    %3356 = vmatprep.subr.mxu0 0.0
    %3357 = vmatpush1.msra.mxu0 0.0
    %3358 = vmatprep.subr.mxu0 0.0
    %3359 = vmatpush1.msra.mxu0 0.0
    %3360 = vmatprep.subr.mxu0 0.0
    %3361 = vmatpush1.msra.mxu0 0.0
    %3362 = vmatprep.subr.mxu0 0.0
    %3363 = vmatpush1.msra.mxu0 0.0
    %3364 = vmatprep.subr.mxu0 0.0
    %3365 = vmatpush1.msra.mxu0 0.0
    %3366 = vmatprep.subr.mxu0 0.0
    %3367 = vmatpush1.msra.mxu0 0.0
    %3368 = vmatprep.subr.mxu0 0.0
    %3369 = vmatpush1.msra.mxu0 0.0
    %3370 = vmatprep.subr.mxu0 0.0
    %3371 = vmatpush1.msra.mxu0 0.0
    %3372 = vmatprep.subr.mxu0 0.0
    %3373 = vmatpush1.msra.mxu0 0.0
    %3374 = vmatprep.subr.mxu0 0.0
    %3375 = vmatpush1.msra.mxu0 0.0
    %3376 = vmatprep.subr.mxu0 0.0
    %3377 = vmatpush1.msra.mxu0 0.0
    %3378 = vmatprep.subr.mxu0 0.0
    %3379 = vmatpush1.msra.mxu0 0.0
    %3380 = vmatprep.subr.mxu0 0.0
    %3381 = vmatpush1.msra.mxu0 0.0
    %3382 = vmatprep.subr.mxu0 0.0
    %3383 = vmatpush1.msra.mxu0 0.0
    %3384 = vmatprep.subr.mxu0 0.0
    %3385 = vmatpush1.msra.mxu0 0.0
    %3386 = vmatprep.subr.mxu0 0.0
    %3387 = vmatpush1.msra.mxu0 0.0
    %3388 = vmatprep.subr.mxu0 0.0
    %3389 = vmatpush1.msra.mxu0 0.0
    %3390 = vmatprep.subr.mxu0 0.0
    %3391 = vmatpush1.msra.mxu0 0.0
    %3392 = vmatprep.subr.mxu0 0.0
    %3393 = vmatpush1.msra.mxu0 0.0
    %3394 = vmatprep.subr.mxu0 0.0
    %3395 = vmatpush1.msra.mxu0 0.0
    %3396 = vmatprep.subr.mxu0 0.0
    %3397 = vmatpush1.msra.mxu0 0.0
    %3398 = vmatprep.subr.mxu0 0.0
    %3399 = vmatpush1.msra.mxu0 0.0
    %3400 = vmatprep.mubr.f32.mxu0 0.0
    %v3401 = vand.u32 %v2919, 4294901760
    %3402 = vmatmul.mubr.f32.gmra.mrb[0].mxu0 %v3401
    %v3403 = vpop.f32.mrb[0].mxu0
    %v3404 = vadd.f32 %v3326, %v3403
    %v3405 = vpop.f32.mrb[0].mxu0
    %3406 = vmatprep.mubr.f32.mxu0 0.0
    %v3407 = vand.u32 %v2922, 4294901760
    %3408 = vmatmul.mubr.f32.gmra.mrb[0].mxu0 %v3407
    %v3409 = vpop.f32.mrb[0].mxu0
    %v3410 = vadd.f32 %v3332, %v3409
    %v3411 = vpop.f32.mrb[0].mxu0
    %3412 = vdwg.mxu0
    %3413 = vxpose.xlu0.b32.start [1/16] %v1374, 128
    %3414 = vxpose.xlu0.b32.cont [2/16] 0.0, 128
    %3415 = vxpose.xlu0.b32.cont [3/16] 0.0, 128
    %3416 = vxpose.xlu0.b32.cont [4/16] 0.0, 128
    %3417 = vxpose.xlu0.b32.cont [5/16] 0.0, 128
    %3418 = vxpose.xlu0.b32.cont [6/16] 0.0, 128
    %3419 = vxpose.xlu0.b32.cont [7/16] 0.0, 128
    %3420 = vxpose.xlu0.b32.cont [8/16] 0.0, 128
    %3421 = vxpose.xlu0.b32.cont [9/16] 0.0, 128
    %3422 = vxpose.xlu0.b32.cont [10/16] 0.0, 128
    %3423 = vxpose.xlu0.b32.cont [11/16] 0.0, 128
    %3424 = vxpose.xlu0.b32.cont [12/16] 0.0, 128
    %3425 = vxpose.xlu0.b32.cont [13/16] 0.0, 128
    %3426 = vxpose.xlu0.b32.cont [14/16] 0.0, 128
    %3427 = vxpose.xlu0.b32.cont [15/16] 0.0, 128
    %3428 = vxpose.xlu0.b32.end [16/16] 0.0, 128
    %v3429 = vpop.trf.xlu0
    %v3430 = vpop.trf.xlu0
    %v3431 = vpop.trf.xlu0
    %v3432 = vpop.trf.xlu0
    %v3433 = vpop.trf.xlu0
    %v3434 = vpop.trf.xlu0
    %v3435 = vpop.trf.xlu0
    %v3436 = vpop.trf.xlu0
    %v3437 = vpop.trf.xlu0
    %v3438 = vpop.trf.xlu0
    %v3439 = vpop.trf.xlu0
    %v3440 = vpop.trf.xlu0
    %v3441 = vpop.trf.xlu0
    %v3442 = vpop.trf.xlu0
    %v3443 = vpop.trf.xlu0
    %v3444 = vpop.trf.xlu0
    %3445 = vxpose.xlu0.b32.start [1/16] %v1381, 128
    %3446 = vxpose.xlu0.b32.cont [2/16] 0.0, 128
    %3447 = vxpose.xlu0.b32.cont [3/16] 0.0, 128
    %3448 = vxpose.xlu0.b32.cont [4/16] 0.0, 128
    %3449 = vxpose.xlu0.b32.cont [5/16] 0.0, 128
    %3450 = vxpose.xlu0.b32.cont [6/16] 0.0, 128
    %3451 = vxpose.xlu0.b32.cont [7/16] 0.0, 128
    %3452 = vxpose.xlu0.b32.cont [8/16] 0.0, 128
    %3453 = vxpose.xlu0.b32.cont [9/16] 0.0, 128
    %3454 = vxpose.xlu0.b32.cont [10/16] 0.0, 128
    %3455 = vxpose.xlu0.b32.cont [11/16] 0.0, 128
    %3456 = vxpose.xlu0.b32.cont [12/16] 0.0, 128
    %3457 = vxpose.xlu0.b32.cont [13/16] 0.0, 128
    %3458 = vxpose.xlu0.b32.cont [14/16] 0.0, 128
    %3459 = vxpose.xlu0.b32.cont [15/16] 0.0, 128
    %3460 = vxpose.xlu0.b32.end [16/16] 0.0, 128
    %v3461 = vpop.trf.xlu0
    %v3462 = vpop.trf.xlu0
    %v3463 = vpop.trf.xlu0
    %v3464 = vpop.trf.xlu0
    %v3465 = vpop.trf.xlu0
    %v3466 = vpop.trf.xlu0
    %v3467 = vpop.trf.xlu0
    %v3468 = vpop.trf.xlu0
    %v3469 = vpop.trf.xlu0
    %v3470 = vpop.trf.xlu0
    %v3471 = vpop.trf.xlu0
    %v3472 = vpop.trf.xlu0
    %v3473 = vpop.trf.xlu0
    %v3474 = vpop.trf.xlu0
    %v3475 = vpop.trf.xlu0
    %v3476 = vpop.trf.xlu0
    %v3477 = vrcp.pop %v1383
    %v3478 = vrcp.pop %v1385
    %v3479 = vrcp.pop %v3429
    %v3480 = vrcp.pop %v3430
    %v3481 = vrcp.pop %v3461
    %v3482 = vrcp.pop %v3462
    %v3483 = vsel %vm286, %v268, 0.0
    %v3484 = vsel %vm286, %v285, 0.0
    %v3485 = vadd.f32 %v3483, %v3484
    %v3486 = vrot.slane %v3485, 4
    %v3487 = vadd.f32 %v3485, %v3486
    %v3488 = vrot.slane %v3487, 2
    %v3489 = vadd.f32 %v3487, %v3488
    %v3490 = vrot.slane %v3489, 1
    %v3491 = vadd.f32 %v3489, %v3490
    %v3492 = vsel %vm286, %v797, 0.0
    %v3493 = vsel %vm286, %v814, 0.0
    %v3494 = vadd.f32 %v3492, %v3493
    %v3495 = vrot.slane %v3494, 4
    %v3496 = vadd.f32 %v3494, %v3495
    %v3497 = vrot.slane %v3496, 2
    %v3498 = vadd.f32 %v3496, %v3497
    %v3499 = vrot.slane %v3498, 1
    %v3500 = vadd.f32 %v3498, %v3499
    %v3501 = vrcp.pop 16.0
    %v3502 = vmul.f32 %v3491, %v3501
    %v3503 = vmul.f32 %v3500, %v3501
    %v3504 = vsel %vm286, %v2366, 0.0
    %v3505 = vrot.slane %v3504, 4
    %v3506 = vadd.f32 %v3504, %v3505
    %v3507 = vrot.slane %v3506, 2
    %v3508 = vadd.f32 %v3506, %v3507
    %v3509 = vrot.slane %v3508, 1
    %v3510 = vadd.f32 %v3508, %v3509
    %v3511 = vsel %vm286, %v2916, 0.0
    %v3512 = vrot.slane %v3511, 4
    %v3513 = vadd.f32 %v3511, %v3512
    %v3514 = vrot.slane %v3513, 2
    %v3515 = vadd.f32 %v3513, %v3514
    %v3516 = vrot.slane %v3515, 1
    %v3517 = vadd.f32 %v3515, %v3516
    %v3518 = vrcp.pop 8.0
    %v3519 = vmul.f32 %v3510, %v3518
    %v3520 = vmul.f32 %v3517, %v3518
    %vm3521 = vcmp.gt.f32.partialorder %v1383, 0.0
    %vm3522 = vcmp.gt.f32.partialorder %v1385, 0.0
    %v3523 = vmul.f32 %v1847, %v3477
    %v3524 = vmul.f32 %v2311, %v3478
    %v3525 = vsel %vm3521, 1, 0
    %v3526 = vsel %vm3522, 1, 0
    %vm3527 = vcmp.eq.s32.totalorder %v3525, 1
    %vm3528 = vcmp.eq.s32.totalorder %v3526, 1
    %v3529 = vsel %vm3527, %v3523, %v3502
    %v3530 = vsel %vm3528, %v3524, %v3503
    %vm3531 = vcmp.gt.f32.partialorder %v3429, 0.0
    %vm3532 = vcmp.gt.f32.partialorder %v3430, 0.0
    %vm3533 = vcmp.gt.f32.partialorder %v3461, 0.0
    %vm3534 = vcmp.gt.f32.partialorder %v3462, 0.0
    %3536 = vset.pattern.permute.xlu0 0
    %3537 = vperm.xlu0 %3536, %v3479
    %v3538 = vpop.permute.xlu0 %3537
    %3541 = vset.pattern.permute.xlu0 0
    %3542 = vperm.xlu0 %3541, %v3480
    %v3543 = vpop.permute.xlu0 %3542
    %3546 = vset.pattern.permute.xlu0 0
    %3547 = vperm.xlu0 %3546, %v3481
    %v3548 = vpop.permute.xlu0 %3547
    %3551 = vset.pattern.permute.xlu0 0
    %3552 = vperm.xlu0 %3551, %v3482
    %v3553 = vpop.permute.xlu0 %3552
    %v3555 = vmul.f32 %v2855, %v3538
    %v3556 = vmul.f32 %v2861, %v3543
    %v3557 = vmul.f32 %v3404, %v3548
    %v3558 = vmul.f32 %v3410, %v3553
    %v3559 = vsel %vm3531, 1, 0
    %v3560 = vsel %vm3532, 1, 0
    %v3561 = vsel %vm3533, 1, 0
    %v3562 = vsel %vm3534, 1, 0
    %3563 = vset.pattern.permute.xlu0 0
    %3564 = vperm.xlu0 %3563, %v3559
    %v3565 = vpop.permute.xlu0 %3564
    %3566 = vset.pattern.permute.xlu0 0
    %3567 = vperm.xlu0 %3566, %v3560
    %v3568 = vpop.permute.xlu0 %3567
    %3569 = vset.pattern.permute.xlu0 0
    %3570 = vperm.xlu0 %3569, %v3561
    %v3571 = vpop.permute.xlu0 %3570
    %3572 = vset.pattern.permute.xlu0 0
    %3573 = vperm.xlu0 %3572, %v3562
    %v3574 = vpop.permute.xlu0 %3573
    %vm3575 = vcmp.eq.s32.totalorder %v3565, 1
    %vm3576 = vcmp.eq.s32.totalorder %v3568, 1
    %vm3577 = vcmp.eq.s32.totalorder %v3571, 1
    %vm3578 = vcmp.eq.s32.totalorder %v3574, 1
    %v3579 = vsel %vm3575, %v3555, %v3519
    %v3580 = vsel %vm3576, %v3556, %v3519
    %v3581 = vsel %vm3577, %v3557, %v3520
    %v3582 = vsel %vm3578, %v3558, %v3520
    %v3583 = vcombine.high %v3529, 0.0
    %v3585 = vunpack.c.l.s4 1983009808
    %v3586 = vunpack.c.0.s8 %v3585
    %v3587 = vlaneseq
    %v3588 = vshrl.u32 %v3587, 7
    %v3589 = vsub.s32 %v3586, %v3588
    %v3590 = vrot.slane %v3529, %v3589
    %v3592 = vunpack.c.l.s4 1983009808
    %v3593 = vunpack.c.0.s8 %v3592
    %v3594 = vlaneseq
    %v3595 = vshrl.u32 %v3594, 7
    %v3596 = vsub.s32 %v3593, %v3595
    %v3597 = vrot.slane %v3583, %v3596
    %v3598 = vcombine.high %v3530, 0.0
    %v3600 = vunpack.c.l.s4 1983009808
    %v3601 = vunpack.c.0.s8 %v3600
    %v3602 = vlaneseq
    %v3603 = vshrl.u32 %v3602, 7
    %v3604 = vsub.s32 %v3601, %v3603
    %v3605 = vrot.slane %v3530, %v3604
    %v3607 = vunpack.c.l.s4 1983009808
    %v3608 = vunpack.c.0.s8 %v3607
    %v3609 = vlaneseq
    %v3610 = vshrl.u32 %v3609, 7
    %v3611 = vsub.s32 %v3608, %v3610
    %v3612 = vrot.slane %v3598, %v3611
    %v3613 = vcombine.low %v3590, %v3605
    %v3614 = vcombine.high %v3590, %v3605
    %v3616 = vunpack.c.l.s4 1934713408
    %v3617 = vunpack.c.0.s8 %v3616
    %v3618 = vlaneseq
    %v3619 = vshrl.u32 %v3618, 7
    %v3620 = vsub.s32 %v3617, %v3619
    %v3621 = vrot.slane %v3613, %v3620
    %v3623 = vunpack.c.l.s4 1934713408
    %v3624 = vunpack.c.0.s8 %v3623
    %v3625 = vlaneseq
    %v3626 = vshrl.u32 %v3625, 7
    %v3627 = vsub.s32 %v3624, %v3626
    %v3628 = vrot.slane %v3614, %v3627
    %v3629 = vcombine.low %v3597, %v3612
    %v3630 = vcombine.high %v3597, %v3612
    %v3632 = vunpack.c.l.s4 1934713408
    %v3633 = vunpack.c.0.s8 %v3632
    %v3634 = vlaneseq
    %v3635 = vshrl.u32 %v3634, 7
    %v3636 = vsub.s32 %v3633, %v3635
    %v3637 = vrot.slane %v3629, %v3636
    %v3639 = vunpack.c.l.s4 1934713408
    %v3640 = vunpack.c.0.s8 %v3639
    %v3641 = vlaneseq
    %v3642 = vshrl.u32 %v3641, 7
    %v3643 = vsub.s32 %v3640, %v3642
    %v3644 = vrot.slane %v3630, %v3643
    %v3645 = vcombine.high %v3621, 0.0
    %v3646 = vcombine.high %v3628, 0.0
    %v3647 = vcombine.high %v3637, 0.0
    %v3648 = vcombine.high %v3644, 0.0
    %3650 = vrot.lane.b32.xlu0 %v3645, 32
    %v3651 = vpop.permute.xlu0 %3650
    %3654 = vrot.lane.b32.xlu0 %v3628, 64
    %v3655 = vpop.permute.xlu0 %3654
    %3658 = vrot.lane.b32.xlu0 %v3646, 96
    %v3659 = vpop.permute.xlu0 %3658
    %3662 = vrot.lane.b32.xlu0 %v3647, 32
    %v3663 = vpop.permute.xlu0 %3662
    %3666 = vrot.lane.b32.xlu0 %v3644, 64
    %v3667 = vpop.permute.xlu0 %3666
    %3670 = vrot.lane.b32.xlu0 %v3648, 96
    %v3671 = vpop.permute.xlu0 %3670
    %v3673 = vsel %vm286, %v3621, %v3651
    %vm3674 = vcmask 523264
    %v3675 = vsel %vm3674, %v3673, %v3655
    %vm3676 = vcmask 785408
    %v3677 = vsel %vm3676, %v3675, %v3659
    %v3678 = vsel %vm286, %v3637, %v3663
    %v3679 = vsel %vm3674, %v3678, %v3667
    %v3680 = vsel %vm3676, %v3679, %v3671
    %v3683 = vcombine.low %v3677, %v3680
    %v3685 = vunpack.c.l.s4 1983009808
    %v3686 = vunpack.c.0.s8 %v3685
    %v3687 = vlaneseq
    %v3688 = vshrl.u32 %v3687, 7
    %v3689 = vsub.s32 %v3686, %v3688
    %v3690 = vrot.slane %v3683, %v3689
    %3692 = vst [vmem:[#allocation8] sm:$0xf] %v3690
    %v3693 = vcombine.high %v3579, 0.0
    %v3695 = vunpack.c.l.s4 1983009808
    %v3696 = vunpack.c.0.s8 %v3695
    %v3697 = vlaneseq
    %v3698 = vshrl.u32 %v3697, 7
    %v3699 = vsub.s32 %v3696, %v3698
    %v3700 = vrot.slane %v3579, %v3699
    %v3702 = vunpack.c.l.s4 1983009808
    %v3703 = vunpack.c.0.s8 %v3702
    %v3704 = vlaneseq
    %v3705 = vshrl.u32 %v3704, 7
    %v3706 = vsub.s32 %v3703, %v3705
    %v3707 = vrot.slane %v3693, %v3706
    %v3708 = vcombine.high %v3581, 0.0
    %v3710 = vunpack.c.l.s4 1983009808
    %v3711 = vunpack.c.0.s8 %v3710
    %v3712 = vlaneseq
    %v3713 = vshrl.u32 %v3712, 7
    %v3714 = vsub.s32 %v3711, %v3713
    %v3715 = vrot.slane %v3581, %v3714
    %v3717 = vunpack.c.l.s4 1983009808
    %v3718 = vunpack.c.0.s8 %v3717
    %v3719 = vlaneseq
    %v3720 = vshrl.u32 %v3719, 7
    %v3721 = vsub.s32 %v3718, %v3720
    %v3722 = vrot.slane %v3708, %v3721
    %v3723 = vcombine.low %v3700, %v3715
    %v3724 = vcombine.high %v3700, %v3715
    %v3726 = vunpack.c.l.s4 1934713408
    %v3727 = vunpack.c.0.s8 %v3726
    %v3728 = vlaneseq
    %v3729 = vshrl.u32 %v3728, 7
    %v3730 = vsub.s32 %v3727, %v3729
    %v3731 = vrot.slane %v3723, %v3730
    %v3733 = vunpack.c.l.s4 1934713408
    %v3734 = vunpack.c.0.s8 %v3733
    %v3735 = vlaneseq
    %v3736 = vshrl.u32 %v3735, 7
    %v3737 = vsub.s32 %v3734, %v3736
    %v3738 = vrot.slane %v3724, %v3737
    %v3739 = vcombine.low %v3707, %v3722
    %v3740 = vcombine.high %v3707, %v3722
    %v3742 = vunpack.c.l.s4 1934713408
    %v3743 = vunpack.c.0.s8 %v3742
    %v3744 = vlaneseq
    %v3745 = vshrl.u32 %v3744, 7
    %v3746 = vsub.s32 %v3743, %v3745
    %v3747 = vrot.slane %v3739, %v3746
    %v3749 = vunpack.c.l.s4 1934713408
    %v3750 = vunpack.c.0.s8 %v3749
    %v3751 = vlaneseq
    %v3752 = vshrl.u32 %v3751, 7
    %v3753 = vsub.s32 %v3750, %v3752
    %v3754 = vrot.slane %v3740, %v3753
    %v3755 = vcombine.high %v3731, 0.0
    %v3756 = vcombine.high %v3738, 0.0
    %v3757 = vcombine.high %v3747, 0.0
    %v3758 = vcombine.high %v3754, 0.0
    %v3759 = vcombine.high %v3580, 0.0
    %v3761 = vunpack.c.l.s4 1983009808
    %v3762 = vunpack.c.0.s8 %v3761
    %v3763 = vlaneseq
    %v3764 = vshrl.u32 %v3763, 7
    %v3765 = vsub.s32 %v3762, %v3764
    %v3766 = vrot.slane %v3580, %v3765
    %v3768 = vunpack.c.l.s4 1983009808
    %v3769 = vunpack.c.0.s8 %v3768
    %v3770 = vlaneseq
    %v3771 = vshrl.u32 %v3770, 7
    %v3772 = vsub.s32 %v3769, %v3771
    %v3773 = vrot.slane %v3759, %v3772
    %v3774 = vcombine.high %v3582, 0.0
    %v3776 = vunpack.c.l.s4 1983009808
    %v3777 = vunpack.c.0.s8 %v3776
    %v3778 = vlaneseq
    %v3779 = vshrl.u32 %v3778, 7
    %v3780 = vsub.s32 %v3777, %v3779
    %v3781 = vrot.slane %v3582, %v3780
    %v3783 = vunpack.c.l.s4 1983009808
    %v3784 = vunpack.c.0.s8 %v3783
    %v3785 = vlaneseq
    %v3786 = vshrl.u32 %v3785, 7
    %v3787 = vsub.s32 %v3784, %v3786
    %v3788 = vrot.slane %v3774, %v3787
    %v3789 = vcombine.low %v3766, %v3781
    %v3790 = vcombine.high %v3766, %v3781
    %v3792 = vunpack.c.l.s4 1934713408
    %v3793 = vunpack.c.0.s8 %v3792
    %v3794 = vlaneseq
    %v3795 = vshrl.u32 %v3794, 7
    %v3796 = vsub.s32 %v3793, %v3795
    %v3797 = vrot.slane %v3789, %v3796
    %v3799 = vunpack.c.l.s4 1934713408
    %v3800 = vunpack.c.0.s8 %v3799
    %v3801 = vlaneseq
    %v3802 = vshrl.u32 %v3801, 7
    %v3803 = vsub.s32 %v3800, %v3802
    %v3804 = vrot.slane %v3790, %v3803
    %v3805 = vcombine.low %v3773, %v3788
    %v3806 = vcombine.high %v3773, %v3788
    %v3808 = vunpack.c.l.s4 1934713408
    %v3809 = vunpack.c.0.s8 %v3808
    %v3810 = vlaneseq
    %v3811 = vshrl.u32 %v3810, 7
    %v3812 = vsub.s32 %v3809, %v3811
    %v3813 = vrot.slane %v3805, %v3812
    %v3815 = vunpack.c.l.s4 1934713408
    %v3816 = vunpack.c.0.s8 %v3815
    %v3817 = vlaneseq
    %v3818 = vshrl.u32 %v3817, 7
    %v3819 = vsub.s32 %v3816, %v3818
    %v3820 = vrot.slane %v3806, %v3819
    %v3821 = vcombine.high %v3797, 0.0
    %v3822 = vcombine.high %v3804, 0.0
    %v3823 = vcombine.high %v3813, 0.0
    %v3824 = vcombine.high %v3820, 0.0
    %3826 = vrot.lane.b32.xlu0 %v3755, 32
    %v3827 = vpop.permute.xlu0 %3826
    %3830 = vrot.lane.b32.xlu0 %v3738, 64
    %v3831 = vpop.permute.xlu0 %3830
    %3834 = vrot.lane.b32.xlu0 %v3756, 96
    %v3835 = vpop.permute.xlu0 %3834
    %3838 = vrot.lane.b32.xlu0 %v3757, 32
    %v3839 = vpop.permute.xlu0 %3838
    %3842 = vrot.lane.b32.xlu0 %v3754, 64
    %v3843 = vpop.permute.xlu0 %3842
    %3846 = vrot.lane.b32.xlu0 %v3758, 96
    %v3847 = vpop.permute.xlu0 %3846
    %3850 = vrot.lane.b32.xlu0 %v3821, 32
    %v3851 = vpop.permute.xlu0 %3850
    %3854 = vrot.lane.b32.xlu0 %v3804, 64
    %v3855 = vpop.permute.xlu0 %3854
    %3858 = vrot.lane.b32.xlu0 %v3822, 96
    %v3859 = vpop.permute.xlu0 %3858
    %3862 = vrot.lane.b32.xlu0 %v3823, 32
    %v3863 = vpop.permute.xlu0 %3862
    %3866 = vrot.lane.b32.xlu0 %v3820, 64
    %v3867 = vpop.permute.xlu0 %3866
    %3870 = vrot.lane.b32.xlu0 %v3824, 96
    %v3871 = vpop.permute.xlu0 %3870
    %v3873 = vsel %vm286, %v3731, %v3827
    %v3874 = vsel %vm3674, %v3873, %v3831
    %v3875 = vsel %vm3676, %v3874, %v3835
    %v3876 = vsel %vm286, %v3747, %v3839
    %v3877 = vsel %vm3674, %v3876, %v3843
    %v3878 = vsel %vm3676, %v3877, %v3847
    %v3879 = vsel %vm286, %v3797, %v3851
    %v3880 = vsel %vm3674, %v3879, %v3855
    %v3881 = vsel %vm3676, %v3880, %v3859
    %v3882 = vsel %vm286, %v3813, %v3863
    %v3883 = vsel %vm3674, %v3882, %v3867
    %v3884 = vsel %vm3676, %v3883, %v3871
    %v3889 = vcombine.low %v3875, %v3878
    %v3890 = vcombine.low %v3881, %v3884
    %v3892 = vunpack.c.l.s4 1983009808
    %v3893 = vunpack.c.0.s8 %v3892
    %v3894 = vlaneseq
    %v3895 = vshrl.u32 %v3894, 7
    %v3896 = vsub.s32 %v3893, %v3895
    %v3897 = vrot.slane %v3889, %v3896
    %v3899 = vunpack.c.l.s4 1983009808
    %v3900 = vunpack.c.0.s8 %v3899
    %v3901 = vlaneseq
    %v3902 = vshrl.u32 %v3901, 7
    %v3903 = vsub.s32 %v3900, %v3902
    %v3904 = vrot.slane %v3890, %v3903
    %v3905 = vcombine.low %v3897, %v3904
    %3907 = vst [vmem:[#allocation9] sm:$0xff] %v3905
    // Predicated region
    $region30: #{tpu_custom_call.1} parent=1 // pred_check
      _
    $region31: #{tpu_custom_call.1} parent=1 // pred_check_branch
      %3909 = sbr.rel (0) target = $region33
    $region32: #{tpu_custom_call.1} parent=1 // pred_region
      %s3911 = ssub.s32 64, 64
      %3912 = vsyncadd [#allocation5], %s3911
      %s3914 = sshll.u32 [#allocation8], 4
      %s3915 = int_to_ptr.vmem [resolvable:$true] %s3914
      %3917 = dma.vmem_to_hbm [thread:$0]  %s3915, 64, %s5, [#allocation5]
    $region33: #{tpu_custom_call.1} parent=1 // pred_fallthru
      _
    // Predicated region
    $region34: #{tpu_custom_call.1} parent=1 // pred_check
      _
    $region35: #{tpu_custom_call.1} parent=1 // pred_check_branch
      %3919 = sbr.rel (0) target = $region37
    $region36: #{tpu_custom_call.1} parent=1 // pred_region
      %s3921 = ssub.s32 128, 128
      %3922 = vsyncadd [#allocation10], %s3921
      %s3924 = sshll.u32 [#allocation9], 4
      %s3925 = int_to_ptr.vmem [resolvable:$true] %s3924
      %3927 = dma.vmem_to_hbm [thread:$0]  %s3925, 128, %s6, [#allocation10]
    $region37: #{tpu_custom_call.1} parent=1 // pred_fallthru
      _
    // Predicated region
    $region38: #{tpu_custom_call.1} parent=1 // pred_check
      _
    $region39: #{tpu_custom_call.1} parent=1 // pred_check_branch
      %3929 = sbr.rel (0) target = $region41
    $region40: #{tpu_custom_call.1} parent=1 // pred_region
      %3930 = dma.done [#allocation5], 64
    $region41: #{tpu_custom_call.1} parent=1 // pred_fallthru
      _
    // Predicated region
    $region42: #{tpu_custom_call.1} parent=1 // pred_check
      _
    $region43: #{tpu_custom_call.1} parent=1 // pred_check_branch
      %3932 = sbr.rel (0) target = $region45
    $region44: #{tpu_custom_call.1} parent=1 // pred_region
      %3933 = dma.done [#allocation10], 128
    $region45: #{tpu_custom_call.1} parent=1 // pred_fallthru
      _
    %3934 = vsyncpa [#allocation4], 1
    %3935 = vsyncpa [#allocation7], 1
    %3936 = vsyncpa [#allocation5], 1
    %3937 = vsyncpa [#allocation10], 1

</llo_original>
